<compile_context>
chip_gen: v5e
topology: v5e:2x2
jax: 0.10.0
libtpu: 0.0.40
codegen_flags: <defaults>
</compile_context>

<pallas_src>
import jax
import jax.numpy as jnp
from jax.experimental import pallas as pl
from jax.experimental.pallas import tpu as pltpu

# ---------------- small, module-consistent hyper-parameters ----------------
EMBED = 40          # d_model (must be divisible by NHEAD=10, as in the module)
NHEAD = 10          # hardcoded nhead=10 in the module
HEAD_DIM = EMBED // NHEAD
MAX_LEN = 8         # sequence length
FFN = 64            # dim_feedforward (PyTorch default 2048; small synthetic)
NUM_LAYERS = 2
NUM_CLASSES = 2
BATCH = 2
EPS = 1e-5

# rows of the packed per-layer (1, E) parameter slab
_BO, _LN1W, _LN1B, _LN2W, _LN2B, _B2 = range(6)


def _layernorm(x, w, b):
    # x: (B*S, E), w/b: (1, E)
    mu = jnp.mean(x, axis=-1, keepdims=True)
    xc = x - mu
    var = jnp.mean(xc * xc, axis=-1, keepdims=True)
    return xc * jax.lax.rsqrt(var + EPS) * w + b


def transformer_kernel(x_ref, mask_ref, wqkv_ref, wo_ref, w1_ref, w2_ref,
                       bqkv_ref, b1_ref, epack_ref, fcw_ref, fcb_ref, out_ref):
    """Single step: whole folded batch through all encoder layers + classifier."""
    x = x_ref[...]                      # (B*S, E) -- batch folded into rows
    neg_mask = mask_ref[...]            # (B*S, B*S): 0 within batch, -1e30 across
    bs = x.shape[0]
    b = bs // MAX_LEN
    scale = float(HEAD_DIM) ** -0.5

    for l in range(NUM_LAYERS):
        ep = epack_ref[l]               # (6, E) packed bias / LayerNorm params

        # ---- fused QKV projection (weight pre-transposed host-side) ----
        qkv = jnp.dot(x, wqkv_ref[l],
                      preferred_element_type=jnp.float32) + bqkv_ref[l]
        q = qkv[:, :EMBED] * scale
        k = qkv[:, EMBED:2 * EMBED]
        v = qkv[:, 2 * EMBED:]

        # ---- per-head attention; both batch elements share each matmul ----
        heads = []
        for h in range(NHEAD):
            lo, hi = h * HEAD_DIM, (h + 1) * HEAD_DIM
            s = jax.lax.dot_general(q[:, lo:hi], k[:, lo:hi],
                                    (((1,), (1,)), ((), ())),
                                    preferred_element_type=jnp.float32)
            s = s + neg_mask
            s = s - jnp.max(s, axis=-1, keepdims=True)
            p = jnp.exp(s)
            p = p * pl.reciprocal(jnp.sum(p, axis=-1, keepdims=True), approx=True)
            heads.append(jnp.dot(p, v[:, lo:hi],
                                 preferred_element_type=jnp.float32))

        # ---- fused output projection: ONE (B*S,E)x(E,E) matmul ----
        attn = jnp.concatenate(heads, axis=-1)
        attn = jnp.dot(attn, wo_ref[l],
                       preferred_element_type=jnp.float32) + ep[_BO:_BO + 1, :]

        x = _layernorm(x + attn, ep[_LN1W:_LN1W + 1, :], ep[_LN1B:_LN1B + 1, :])

        # ---- feed-forward ----
        h1 = jnp.dot(x, w1_ref[l], preferred_element_type=jnp.float32) + b1_ref[l]
        h1 = jnp.maximum(h1, 0.0)
        h2 = jnp.dot(h1, w2_ref[l],
                     preferred_element_type=jnp.float32) + ep[_B2:_B2 + 1, :]

        x = _layernorm(x + h2, ep[_LN2W:_LN2W + 1, :], ep[_LN2B:_LN2B + 1, :])

    # ---- classifier: logits[b,c] = sum_{s,e} x[b,s,e]*fcw[s,c,e] + fcb[c] ----
    # Pure VPU/XLU contraction (broadcast-mul + reductions): avoids an in-kernel
    # (16,40)->(2,320) lane-relayout flatten and the resulting skinny matmul.
    x3 = x.reshape(b, MAX_LEN, EMBED)           # split leading dim only (free)
    fcw = fcw_ref[...]                          # (S, C, E)
    cols = []
    for c in range(NUM_CLASSES):
        prod = x3 * fcw[:, c, :][None, :, :]    # (B, S, E)
        cols.append(jnp.sum(jnp.sum(prod, axis=2), axis=1, keepdims=True))  # (B, 1)
    out_ref[...] = jnp.concatenate(cols, axis=1) + fcb_ref[...]


def _full(shape):
    n = len(shape)
    return pl.BlockSpec(shape, lambda i, _n=n: (0,) * _n)


@jax.jit
def transformer_forward(x, params):
    """x: (B, S, E) float32 -> logits (B, C) float32."""
    (wqkv, bqkv, wo, bo, ln1w, ln1b, ln2w, ln2b,
     w1, b1, w2, b2, fcw, fcb) = params
    B, S, E = x.shape
    assert S == MAX_LEN and E == EMBED

    # host-side re-layout (cheap wrapper plumbing, fused by jit): removes all
    # in-kernel transposes.
    x_flat = x.reshape(B * S, E)
    wqkv_t = jnp.transpose(wqkv, (0, 2, 1))                              # (L, E, 3E)
    wo_t = jnp.transpose(wo, (0, 2, 1))                                  # (L, E, E)
    w1_t = jnp.transpose(w1, (0, 2, 1))                                  # (L, E, F)
    w2_t = jnp.transpose(w2, (0, 2, 1))                                  # (L, F, E)
    epack = jnp.concatenate([bo, ln1w, ln1b, ln2w, ln2b, b2], axis=1)    # (L, 6, E)
    fcw_k = jnp.transpose(fcw.reshape(NUM_CLASSES, S, E), (1, 0, 2))     # (S, C, E)

    # additive mask keeping attention block-diagonal over the folded batch
    bid = jnp.arange(B * S, dtype=jnp.int32) // S
    neg_mask = jnp.where(bid[:, None] == bid[None, :], 0.0, -1e30)
    neg_mask = neg_mask.astype(jnp.float32)

    args = (x_flat, neg_mask, wqkv_t, wo_t, w1_t, w2_t,
            bqkv, b1, epack, fcw_k, fcb)
    out = pl.pallas_call(
        transformer_kernel,
        out_shape=jax.ShapeDtypeStruct((B, NUM_CLASSES), jnp.float32),
        grid=(1,),
        in_specs=[_full(a.shape) for a in args],
        out_specs=_full((B, NUM_CLASSES)),
        compiler_params=pltpu.CompilerParams(
            dimension_semantics=("arbitrary",)),
    )(*args)
    return out


# ----------------------------- pure-JAX reference -----------------------------
def reference_forward(x, params):
    (wqkv, bqkv, wo, bo, ln1w, ln1b, ln2w, ln2b,
     w1, b1, w2, b2, fcw, fcb) = params
    B, S, E = x.shape

    def ln(z, w, b):
        mu = jnp.mean(z, axis=-1, keepdims=True)
        var = jnp.mean((z - mu) ** 2, axis=-1, keepdims=True)
        return (z - mu) / jnp.sqrt(var + EPS) * w + b

    # Force full-f32 matmuls in the reference so the comparison is not polluted by
    # XLA's default (bf16 single-pass) MXU precision; the Pallas kernel accumulates
    # in f32.
    with jax.default_matmul_precision("float32"):
        for l in range(NUM_LAYERS):
            qkv = x @ wqkv[l].T + bqkv[l][0]
            q, k, v = jnp.split(qkv, 3, axis=-1)
            q = q.reshape(B, S, NHEAD, HEAD_DIM)
            k = k.reshape(B, S, NHEAD, HEAD_DIM)
            v = v.reshape(B, S, NHEAD, HEAD_DIM)
            scores = jnp.einsum('bshd,bthd->bhst', q, k) * (HEAD_DIM ** -0.5)
            p = jax.nn.softmax(scores, axis=-1)
            o = jnp.einsum('bhst,bthd->bshd', p, v).reshape(B, S, E)
            o = o @ wo[l].T + bo[l][0]
            x = ln(x + o, ln1w[l][0], ln1b[l][0])
            ff = jax.nn.relu(x @ w1[l].T + b1[l][0]) @ w2[l].T + b2[l][0]
            x = ln(x + ff, ln2w[l][0], ln2b[l][0])

        flat = x.reshape(B, S * E)
        return flat @ fcw.T + fcb


# ----------------------------- parameter init -----------------------------
def init_params(key):
    ks = jax.random.split(key, 10)
    std = 0.1
    L, E, F, S, C = NUM_LAYERS, EMBED, FFN, MAX_LEN, NUM_CLASSES
    wqkv = std * jax.random.normal(ks[0], (L, 3 * E, E), jnp.float32)
    bqkv = std * jax.random.normal(ks[1], (L, 1, 3 * E), jnp.float32)
    wo = std * jax.random.normal(ks[2], (L, E, E), jnp.float32)
    bo = std * jax.random.normal(ks[3], (L, 1, E), jnp.float32)
    ln1w = jnp.ones((L, 1, E), jnp.float32)
    ln1b = jnp.zeros((L, 1, E), jnp.float32)
    ln2w = jnp.ones((L, 1, E), jnp.float32)
    ln2b = jnp.zeros((L, 1, E), jnp.float32)
    w1 = std * jax.random.normal(ks[4], (L, F, E), jnp.float32)
    b1 = std * jax.random.normal(ks[5], (L, 1, F), jnp.float32)
    w2 = std * jax.random.normal(ks[6], (L, E, F), jnp.float32)
    b2 = std * jax.random.normal(ks[7], (L, 1, E), jnp.float32)
    fcw = std * jax.random.normal(ks[8], (C, S * E), jnp.float32)   # PyTorch layout
    fcb = std * jax.random.normal(ks[9], (1, C), jnp.float32)
    return (wqkv, bqkv, wo, bo, ln1w, ln1b, ln2w, ln2b,
            w1, b1, w2, b2, fcw, fcb)


if __name__ == "__main__":
    key = jax.random.PRNGKey(0)
    kx, kp = jax.random.split(key)
    x = jax.random.normal(kx, (BATCH, MAX_LEN, EMBED), jnp.float32)
    params = init_params(kp)

    out = jax.block_until_ready(transformer_forward(x, params))
    ref = jax.block_until_ready(reference_forward(x, params))

    assert out.shape == (BATCH, NUM_CLASSES), out.shape
    # tolerance 2e-3: the softmax denominator uses the EUP approximate reciprocal
    # (pl.reciprocal(approx=True)); everything else is f32-accurate on both sides.
    assert jnp.allclose(out, ref, atol=2e-3, rtol=2e-3), (out, ref)
    print("KERNEL_OK")
</pallas_src>

<mosaic_0001>
module attributes {stable_mosaic.version = 11 : i64} {
  func.func @transformer_kernel(%arg0: i32, %arg1: memref<16x40xf32, #tpu.memory_space<vmem>>, %arg2: memref<16x16xf32, #tpu.memory_space<vmem>>, %arg3: memref<2x40x120xf32, #tpu.memory_space<vmem>>, %arg4: memref<2x40x40xf32, #tpu.memory_space<vmem>>, %arg5: memref<2x40x64xf32, #tpu.memory_space<vmem>>, %arg6: memref<2x64x40xf32, #tpu.memory_space<vmem>>, %arg7: memref<2x1x120xf32, #tpu.memory_space<vmem>>, %arg8: memref<2x1x64xf32, #tpu.memory_space<vmem>>, %arg9: memref<2x6x40xf32, #tpu.memory_space<vmem>>, %arg10: memref<8x2x40xf32, #tpu.memory_space<vmem>>, %arg11: memref<1x2xf32, #tpu.memory_space<vmem>>, %arg12: memref<2x2xf32, #tpu.memory_space<vmem>>) attributes {dimension_semantics = [#tpu.dimension_semantics<arbitrary>], iteration_bounds = array<i64: 1>, scalar_prefetch = 0 : i64, scratch_operands = 0 : i64, tpu.core_type = #tpu.core_type<tc>, window_params = [{pipeline_mode = #tpu.pipeline_mode<synchronous>, transform_indices = @transform_0, window_bounds = array<i64: 16, 40>}, {pipeline_mode = #tpu.pipeline_mode<synchronous>, transform_indices = @transform_1, window_bounds = array<i64: 16, 16>}, {pipeline_mode = #tpu.pipeline_mode<synchronous>, transform_indices = @transform_2, window_bounds = array<i64: 2, 40, 120>}, {pipeline_mode = #tpu.pipeline_mode<synchronous>, transform_indices = @transform_3, window_bounds = array<i64: 2, 40, 40>}, {pipeline_mode = #tpu.pipeline_mode<synchronous>, transform_indices = @transform_4, window_bounds = array<i64: 2, 40, 64>}, {pipeline_mode = #tpu.pipeline_mode<synchronous>, transform_indices = @transform_5, window_bounds = array<i64: 2, 64, 40>}, {pipeline_mode = #tpu.pipeline_mode<synchronous>, transform_indices = @transform_6, window_bounds = array<i64: 2, 1, 120>}, {pipeline_mode = #tpu.pipeline_mode<synchronous>, transform_indices = @transform_7, window_bounds = array<i64: 2, 1, 64>}, {pipeline_mode = #tpu.pipeline_mode<synchronous>, transform_indices = @transform_8, window_bounds = array<i64: 2, 6, 40>}, {pipeline_mode = #tpu.pipeline_mode<synchronous>, transform_indices = @transform_9, window_bounds = array<i64: 8, 2, 40>}, {pipeline_mode = #tpu.pipeline_mode<synchronous>, transform_indices = @transform_10, window_bounds = array<i64: 1, 2>}, {pipeline_mode = #tpu.pipeline_mode<synchronous>, transform_indices = @transform_11, window_bounds = array<i64: 2, 2>}]} {
    %c0 = arith.constant 0 : index
    %c0_0 = arith.constant 0 : index
    %0 = vector.load %arg1[%c0, %c0_0] : memref<16x40xf32, #tpu.memory_space<vmem>>, vector<16x40xf32>
    %c0_1 = arith.constant 0 : index
    %c0_2 = arith.constant 0 : index
    %1 = vector.load %arg2[%c0_1, %c0_2] : memref<16x16xf32, #tpu.memory_space<vmem>>, vector<16x16xf32>
    %c0_3 = arith.constant 0 : index
    %c0_4 = arith.constant 0 : index
    %c0_5 = arith.constant 0 : index
    %2 = vector.load %arg9[%c0_3, %c0_4, %c0_5] : memref<2x6x40xf32, #tpu.memory_space<vmem>>, vector<1x6x40xf32>
    %3 = vector.shape_cast %2 : vector<1x6x40xf32> to vector<6x40xf32>
    %c0_6 = arith.constant 0 : index
    %c0_7 = arith.constant 0 : index
    %c0_8 = arith.constant 0 : index
    %4 = vector.load %arg3[%c0_6, %c0_7, %c0_8] : memref<2x40x120xf32, #tpu.memory_space<vmem>>, vector<1x40x120xf32>
    %5 = vector.shape_cast %4 : vector<1x40x120xf32> to vector<40x120xf32>
    %cst = arith.constant dense<0.000000e+00> : vector<16x120xf32>
    %6 = tpu.matmul %0, %5, %cst {dimension_numbers = #tpu.dot_dimension_numbers<[1], [0], [0], [1], [0, 0, 1, 1], [], []>} : vector<16x40xf32>, vector<40x120xf32>, vector<16x120xf32> -> vector<16x120xf32>
    %c0_9 = arith.constant 0 : index
    %c0_10 = arith.constant 0 : index
    %c0_11 = arith.constant 0 : index
    %7 = vector.load %arg7[%c0_9, %c0_10, %c0_11] : memref<2x1x120xf32, #tpu.memory_space<vmem>>, vector<1x1x120xf32>
    %8 = vector.shape_cast %7 : vector<1x1x120xf32> to vector<1x120xf32>
    %9 = vector.broadcast %8 : vector<1x120xf32> to vector<16x120xf32>
    %10 = arith.addf %6, %9 : vector<16x120xf32>
    %11 = vector.extract_strided_slice %10 {offsets = [0, 0], sizes = [16, 40], strides = [1, 1]} : vector<16x120xf32> to vector<16x40xf32>
    %cst_12 = arith.constant 5.000000e-01 : f32
    %12 = vector.broadcast %cst_12 : f32 to vector<16x40xf32>
    %13 = arith.mulf %11, %12 : vector<16x40xf32>
    %14 = vector.extract_strided_slice %10 {offsets = [0, 40], sizes = [16, 40], strides = [1, 1]} : vector<16x120xf32> to vector<16x40xf32>
    %15 = vector.extract_strided_slice %10 {offsets = [0, 80], sizes = [16, 40], strides = [1, 1]} : vector<16x120xf32> to vector<16x40xf32>
    %16 = vector.extract_strided_slice %13 {offsets = [0, 0], sizes = [16, 4], strides = [1, 1]} : vector<16x40xf32> to vector<16x4xf32>
    %17 = vector.extract_strided_slice %14 {offsets = [0, 0], sizes = [16, 4], strides = [1, 1]} : vector<16x40xf32> to vector<16x4xf32>
    %cst_13 = arith.constant dense<0.000000e+00> : vector<16x16xf32>
    %18 = tpu.matmul %16, %17, %cst_13 {dimension_numbers = #tpu.dot_dimension_numbers<[1], [1], [0], [0], [0, 0, 1, 0], [], []>} : vector<16x4xf32>, vector<16x4xf32>, vector<16x16xf32> -> vector<16x16xf32>
    %19 = arith.addf %18, %1 : vector<16x16xf32>
    %cst_14 = arith.constant dense<0xFF800000> : vector<16xf32>
    %20 = vector.multi_reduction <maximumf>, %19, %cst_14 [1] : vector<16x16xf32> to vector<16xf32>
    %21 = vector.shape_cast %20 : vector<16xf32> to vector<16x1xf32>
    %22 = vector.broadcast %21 : vector<16x1xf32> to vector<16x16xf32>
    %23 = arith.subf %19, %22 : vector<16x16xf32>
    %24 = math.exp %23 : vector<16x16xf32>
    %cst_15 = arith.constant dense<0.000000e+00> : vector<16xf32>
    %25 = vector.multi_reduction <add>, %24, %cst_15 [1] : vector<16x16xf32> to vector<16xf32>
    %26 = vector.shape_cast %25 : vector<16xf32> to vector<16x1xf32>
    %27 = tpu.reciprocal %26 {approx = true} : vector<16x1xf32> -> vector<16x1xf32>
    %28 = vector.broadcast %27 : vector<16x1xf32> to vector<16x16xf32>
    %29 = arith.mulf %24, %28 : vector<16x16xf32>
    %30 = vector.extract_strided_slice %15 {offsets = [0, 0], sizes = [16, 4], strides = [1, 1]} : vector<16x40xf32> to vector<16x4xf32>
    %cst_16 = arith.constant dense<0.000000e+00> : vector<16x4xf32>
    %31 = tpu.matmul %29, %30, %cst_16 {dimension_numbers = #tpu.dot_dimension_numbers<[1], [0], [0], [1], [0, 0, 1, 1], [], []>} : vector<16x16xf32>, vector<16x4xf32>, vector<16x4xf32> -> vector<16x4xf32>
    %32 = vector.extract_strided_slice %13 {offsets = [0, 4], sizes = [16, 4], strides = [1, 1]} : vector<16x40xf32> to vector<16x4xf32>
    %33 = vector.extract_strided_slice %14 {offsets = [0, 4], sizes = [16, 4], strides = [1, 1]} : vector<16x40xf32> to vector<16x4xf32>
    %cst_17 = arith.constant dense<0.000000e+00> : vector<16x16xf32>
    %34 = tpu.matmul %32, %33, %cst_17 {dimension_numbers = #tpu.dot_dimension_numbers<[1], [1], [0], [0], [0, 0, 1, 0], [], []>} : vector<16x4xf32>, vector<16x4xf32>, vector<16x16xf32> -> vector<16x16xf32>
    %35 = arith.addf %34, %1 : vector<16x16xf32>
    %cst_18 = arith.constant dense<0xFF800000> : vector<16xf32>
    %36 = vector.multi_reduction <maximumf>, %35, %cst_18 [1] : vector<16x16xf32> to vector<16xf32>
    %37 = vector.shape_cast %36 : vector<16xf32> to vector<16x1xf32>
    %38 = vector.broadcast %37 : vector<16x1xf32> to vector<16x16xf32>
    %39 = arith.subf %35, %38 : vector<16x16xf32>
    %40 = math.exp %39 : vector<16x16xf32>
    %cst_19 = arith.constant dense<0.000000e+00> : vector<16xf32>
    %41 = vector.multi_reduction <add>, %40, %cst_19 [1] : vector<16x16xf32> to vector<16xf32>
    %42 = vector.shape_cast %41 : vector<16xf32> to vector<16x1xf32>
    %43 = tpu.reciprocal %42 {approx = true} : vector<16x1xf32> -> vector<16x1xf32>
    %44 = vector.broadcast %43 : vector<16x1xf32> to vector<16x16xf32>
    %45 = arith.mulf %40, %44 : vector<16x16xf32>
    %46 = vector.extract_strided_slice %15 {offsets = [0, 4], sizes = [16, 4], strides = [1, 1]} : vector<16x40xf32> to vector<16x4xf32>
    %cst_20 = arith.constant dense<0.000000e+00> : vector<16x4xf32>
    %47 = tpu.matmul %45, %46, %cst_20 {dimension_numbers = #tpu.dot_dimension_numbers<[1], [0], [0], [1], [0, 0, 1, 1], [], []>} : vector<16x16xf32>, vector<16x4xf32>, vector<16x4xf32> -> vector<16x4xf32>
    %48 = vector.extract_strided_slice %13 {offsets = [0, 8], sizes = [16, 4], strides = [1, 1]} : vector<16x40xf32> to vector<16x4xf32>
    %49 = vector.extract_strided_slice %14 {offsets = [0, 8], sizes = [16, 4], strides = [1, 1]} : vector<16x40xf32> to vector<16x4xf32>
    %cst_21 = arith.constant dense<0.000000e+00> : vector<16x16xf32>
    %50 = tpu.matmul %48, %49, %cst_21 {dimension_numbers = #tpu.dot_dimension_numbers<[1], [1], [0], [0], [0, 0, 1, 0], [], []>} : vector<16x4xf32>, vector<16x4xf32>, vector<16x16xf32> -> vector<16x16xf32>
    %51 = arith.addf %50, %1 : vector<16x16xf32>
    %cst_22 = arith.constant dense<0xFF800000> : vector<16xf32>
    %52 = vector.multi_reduction <maximumf>, %51, %cst_22 [1] : vector<16x16xf32> to vector<16xf32>
    %53 = vector.shape_cast %52 : vector<16xf32> to vector<16x1xf32>
    %54 = vector.broadcast %53 : vector<16x1xf32> to vector<16x16xf32>
    %55 = arith.subf %51, %54 : vector<16x16xf32>
    %56 = math.exp %55 : vector<16x16xf32>
    %cst_23 = arith.constant dense<0.000000e+00> : vector<16xf32>
    %57 = vector.multi_reduction <add>, %56, %cst_23 [1] : vector<16x16xf32> to vector<16xf32>
    %58 = vector.shape_cast %57 : vector<16xf32> to vector<16x1xf32>
    %59 = tpu.reciprocal %58 {approx = true} : vector<16x1xf32> -> vector<16x1xf32>
    %60 = vector.broadcast %59 : vector<16x1xf32> to vector<16x16xf32>
    %61 = arith.mulf %56, %60 : vector<16x16xf32>
    %62 = vector.extract_strided_slice %15 {offsets = [0, 8], sizes = [16, 4], strides = [1, 1]} : vector<16x40xf32> to vector<16x4xf32>
    %cst_24 = arith.constant dense<0.000000e+00> : vector<16x4xf32>
    %63 = tpu.matmul %61, %62, %cst_24 {dimension_numbers = #tpu.dot_dimension_numbers<[1], [0], [0], [1], [0, 0, 1, 1], [], []>} : vector<16x16xf32>, vector<16x4xf32>, vector<16x4xf32> -> vector<16x4xf32>
    %64 = vector.extract_strided_slice %13 {offsets = [0, 12], sizes = [16, 4], strides = [1, 1]} : vector<16x40xf32> to vector<16x4xf32>
    %65 = vector.extract_strided_slice %14 {offsets = [0, 12], sizes = [16, 4], strides = [1, 1]} : vector<16x40xf32> to vector<16x4xf32>
    %cst_25 = arith.constant dense<0.000000e+00> : vector<16x16xf32>
    %66 = tpu.matmul %64, %65, %cst_25 {dimension_numbers = #tpu.dot_dimension_numbers<[1], [1], [0], [0], [0, 0, 1, 0], [], []>} : vector<16x4xf32>, vector<16x4xf32>, vector<16x16xf32> -> vector<16x16xf32>
    %67 = arith.addf %66, %1 : vector<16x16xf32>
    %cst_26 = arith.constant dense<0xFF800000> : vector<16xf32>
    %68 = vector.multi_reduction <maximumf>, %67, %cst_26 [1] : vector<16x16xf32> to vector<16xf32>
    %69 = vector.shape_cast %68 : vector<16xf32> to vector<16x1xf32>
    %70 = vector.broadcast %69 : vector<16x1xf32> to vector<16x16xf32>
    %71 = arith.subf %67, %70 : vector<16x16xf32>
    %72 = math.exp %71 : vector<16x16xf32>
    %cst_27 = arith.constant dense<0.000000e+00> : vector<16xf32>
    %73 = vector.multi_reduction <add>, %72, %cst_27 [1] : vector<16x16xf32> to vector<16xf32>
    %74 = vector.shape_cast %73 : vector<16xf32> to vector<16x1xf32>
    %75 = tpu.reciprocal %74 {approx = true} : vector<16x1xf32> -> vector<16x1xf32>
    %76 = vector.broadcast %75 : vector<16x1xf32> to vector<16x16xf32>
    %77 = arith.mulf %72, %76 : vector<16x16xf32>
    %78 = vector.extract_strided_slice %15 {offsets = [0, 12], sizes = [16, 4], strides = [1, 1]} : vector<16x40xf32> to vector<16x4xf32>
    %cst_28 = arith.constant dense<0.000000e+00> : vector<16x4xf32>
    %79 = tpu.matmul %77, %78, %cst_28 {dimension_numbers = #tpu.dot_dimension_numbers<[1], [0], [0], [1], [0, 0, 1, 1], [], []>} : vector<16x16xf32>, vector<16x4xf32>, vector<16x4xf32> -> vector<16x4xf32>
    %80 = vector.extract_strided_slice %13 {offsets = [0, 16], sizes = [16, 4], strides = [1, 1]} : vector<16x40xf32> to vector<16x4xf32>
    %81 = vector.extract_strided_slice %14 {offsets = [0, 16], sizes = [16, 4], strides = [1, 1]} : vector<16x40xf32> to vector<16x4xf32>
    %cst_29 = arith.constant dense<0.000000e+00> : vector<16x16xf32>
    %82 = tpu.matmul %80, %81, %cst_29 {dimension_numbers = #tpu.dot_dimension_numbers<[1], [1], [0], [0], [0, 0, 1, 0], [], []>} : vector<16x4xf32>, vector<16x4xf32>, vector<16x16xf32> -> vector<16x16xf32>
    %83 = arith.addf %82, %1 : vector<16x16xf32>
    %cst_30 = arith.constant dense<0xFF800000> : vector<16xf32>
    %84 = vector.multi_reduction <maximumf>, %83, %cst_30 [1] : vector<16x16xf32> to vector<16xf32>
    %85 = vector.shape_cast %84 : vector<16xf32> to vector<16x1xf32>
    %86 = vector.broadcast %85 : vector<16x1xf32> to vector<16x16xf32>
    %87 = arith.subf %83, %86 : vector<16x16xf32>
    %88 = math.exp %87 : vector<16x16xf32>
    %cst_31 = arith.constant dense<0.000000e+00> : vector<16xf32>
    %89 = vector.multi_reduction <add>, %88, %cst_31 [1] : vector<16x16xf32> to vector<16xf32>
    %90 = vector.shape_cast %89 : vector<16xf32> to vector<16x1xf32>
    %91 = tpu.reciprocal %90 {approx = true} : vector<16x1xf32> -> vector<16x1xf32>
    %92 = vector.broadcast %91 : vector<16x1xf32> to vector<16x16xf32>
    %93 = arith.mulf %88, %92 : vector<16x16xf32>
    %94 = vector.extract_strided_slice %15 {offsets = [0, 16], sizes = [16, 4], strides = [1, 1]} : vector<16x40xf32> to vector<16x4xf32>
    %cst_32 = arith.constant dense<0.000000e+00> : vector<16x4xf32>
    %95 = tpu.matmul %93, %94, %cst_32 {dimension_numbers = #tpu.dot_dimension_numbers<[1], [0], [0], [1], [0, 0, 1, 1], [], []>} : vector<16x16xf32>, vector<16x4xf32>, vector<16x4xf32> -> vector<16x4xf32>
    %96 = vector.extract_strided_slice %13 {offsets = [0, 20], sizes = [16, 4], strides = [1, 1]} : vector<16x40xf32> to vector<16x4xf32>
    %97 = vector.extract_strided_slice %14 {offsets = [0, 20], sizes = [16, 4], strides = [1, 1]} : vector<16x40xf32> to vector<16x4xf32>
    %cst_33 = arith.constant dense<0.000000e+00> : vector<16x16xf32>
    %98 = tpu.matmul %96, %97, %cst_33 {dimension_numbers = #tpu.dot_dimension_numbers<[1], [1], [0], [0], [0, 0, 1, 0], [], []>} : vector<16x4xf32>, vector<16x4xf32>, vector<16x16xf32> -> vector<16x16xf32>
    %99 = arith.addf %98, %1 : vector<16x16xf32>
    %cst_34 = arith.constant dense<0xFF800000> : vector<16xf32>
    %100 = vector.multi_reduction <maximumf>, %99, %cst_34 [1] : vector<16x16xf32> to vector<16xf32>
    %101 = vector.shape_cast %100 : vector<16xf32> to vector<16x1xf32>
    %102 = vector.broadcast %101 : vector<16x1xf32> to vector<16x16xf32>
    %103 = arith.subf %99, %102 : vector<16x16xf32>
    %104 = math.exp %103 : vector<16x16xf32>
    %cst_35 = arith.constant dense<0.000000e+00> : vector<16xf32>
    %105 = vector.multi_reduction <add>, %104, %cst_35 [1] : vector<16x16xf32> to vector<16xf32>
    %106 = vector.shape_cast %105 : vector<16xf32> to vector<16x1xf32>
    %107 = tpu.reciprocal %106 {approx = true} : vector<16x1xf32> -> vector<16x1xf32>
    %108 = vector.broadcast %107 : vector<16x1xf32> to vector<16x16xf32>
    %109 = arith.mulf %104, %108 : vector<16x16xf32>
    %110 = vector.extract_strided_slice %15 {offsets = [0, 20], sizes = [16, 4], strides = [1, 1]} : vector<16x40xf32> to vector<16x4xf32>
    %cst_36 = arith.constant dense<0.000000e+00> : vector<16x4xf32>
    %111 = tpu.matmul %109, %110, %cst_36 {dimension_numbers = #tpu.dot_dimension_numbers<[1], [0], [0], [1], [0, 0, 1, 1], [], []>} : vector<16x16xf32>, vector<16x4xf32>, vector<16x4xf32> -> vector<16x4xf32>
    %112 = vector.extract_strided_slice %13 {offsets = [0, 24], sizes = [16, 4], strides = [1, 1]} : vector<16x40xf32> to vector<16x4xf32>
    %113 = vector.extract_strided_slice %14 {offsets = [0, 24], sizes = [16, 4], strides = [1, 1]} : vector<16x40xf32> to vector<16x4xf32>
    %cst_37 = arith.constant dense<0.000000e+00> : vector<16x16xf32>
    %114 = tpu.matmul %112, %113, %cst_37 {dimension_numbers = #tpu.dot_dimension_numbers<[1], [1], [0], [0], [0, 0, 1, 0], [], []>} : vector<16x4xf32>, vector<16x4xf32>, vector<16x16xf32> -> vector<16x16xf32>
    %115 = arith.addf %114, %1 : vector<16x16xf32>
    %cst_38 = arith.constant dense<0xFF800000> : vector<16xf32>
    %116 = vector.multi_reduction <maximumf>, %115, %cst_38 [1] : vector<16x16xf32> to vector<16xf32>
    %117 = vector.shape_cast %116 : vector<16xf32> to vector<16x1xf32>
    %118 = vector.broadcast %117 : vector<16x1xf32> to vector<16x16xf32>
    %119 = arith.subf %115, %118 : vector<16x16xf32>
    %120 = math.exp %119 : vector<16x16xf32>
    %cst_39 = arith.constant dense<0.000000e+00> : vector<16xf32>
    %121 = vector.multi_reduction <add>, %120, %cst_39 [1] : vector<16x16xf32> to vector<16xf32>
    %122 = vector.shape_cast %121 : vector<16xf32> to vector<16x1xf32>
    %123 = tpu.reciprocal %122 {approx = true} : vector<16x1xf32> -> vector<16x1xf32>
    %124 = vector.broadcast %123 : vector<16x1xf32> to vector<16x16xf32>
    %125 = arith.mulf %120, %124 : vector<16x16xf32>
    %126 = vector.extract_strided_slice %15 {offsets = [0, 24], sizes = [16, 4], strides = [1, 1]} : vector<16x40xf32> to vector<16x4xf32>
    %cst_40 = arith.constant dense<0.000000e+00> : vector<16x4xf32>
    %127 = tpu.matmul %125, %126, %cst_40 {dimension_numbers = #tpu.dot_dimension_numbers<[1], [0], [0], [1], [0, 0, 1, 1], [], []>} : vector<16x16xf32>, vector<16x4xf32>, vector<16x4xf32> -> vector<16x4xf32>
    %128 = vector.extract_strided_slice %13 {offsets = [0, 28], sizes = [16, 4], strides = [1, 1]} : vector<16x40xf32> to vector<16x4xf32>
    %129 = vector.extract_strided_slice %14 {offsets = [0, 28], sizes = [16, 4], strides = [1, 1]} : vector<16x40xf32> to vector<16x4xf32>
    %cst_41 = arith.constant dense<0.000000e+00> : vector<16x16xf32>
    %130 = tpu.matmul %128, %129, %cst_41 {dimension_numbers = #tpu.dot_dimension_numbers<[1], [1], [0], [0], [0, 0, 1, 0], [], []>} : vector<16x4xf32>, vector<16x4xf32>, vector<16x16xf32> -> vector<16x16xf32>
    %131 = arith.addf %130, %1 : vector<16x16xf32>
    %cst_42 = arith.constant dense<0xFF800000> : vector<16xf32>
    %132 = vector.multi_reduction <maximumf>, %131, %cst_42 [1] : vector<16x16xf32> to vector<16xf32>
    %133 = vector.shape_cast %132 : vector<16xf32> to vector<16x1xf32>
    %134 = vector.broadcast %133 : vector<16x1xf32> to vector<16x16xf32>
    %135 = arith.subf %131, %134 : vector<16x16xf32>
    %136 = math.exp %135 : vector<16x16xf32>
    %cst_43 = arith.constant dense<0.000000e+00> : vector<16xf32>
    %137 = vector.multi_reduction <add>, %136, %cst_43 [1] : vector<16x16xf32> to vector<16xf32>
    %138 = vector.shape_cast %137 : vector<16xf32> to vector<16x1xf32>
    %139 = tpu.reciprocal %138 {approx = true} : vector<16x1xf32> -> vector<16x1xf32>
    %140 = vector.broadcast %139 : vector<16x1xf32> to vector<16x16xf32>
    %141 = arith.mulf %136, %140 : vector<16x16xf32>
    %142 = vector.extract_strided_slice %15 {offsets = [0, 28], sizes = [16, 4], strides = [1, 1]} : vector<16x40xf32> to vector<16x4xf32>
    %cst_44 = arith.constant dense<0.000000e+00> : vector<16x4xf32>
    %143 = tpu.matmul %141, %142, %cst_44 {dimension_numbers = #tpu.dot_dimension_numbers<[1], [0], [0], [1], [0, 0, 1, 1], [], []>} : vector<16x16xf32>, vector<16x4xf32>, vector<16x4xf32> -> vector<16x4xf32>
    %144 = vector.extract_strided_slice %13 {offsets = [0, 32], sizes = [16, 4], strides = [1, 1]} : vector<16x40xf32> to vector<16x4xf32>
    %145 = vector.extract_strided_slice %14 {offsets = [0, 32], sizes = [16, 4], strides = [1, 1]} : vector<16x40xf32> to vector<16x4xf32>
    %cst_45 = arith.constant dense<0.000000e+00> : vector<16x16xf32>
    %146 = tpu.matmul %144, %145, %cst_45 {dimension_numbers = #tpu.dot_dimension_numbers<[1], [1], [0], [0], [0, 0, 1, 0], [], []>} : vector<16x4xf32>, vector<16x4xf32>, vector<16x16xf32> -> vector<16x16xf32>
    %147 = arith.addf %146, %1 : vector<16x16xf32>
    %cst_46 = arith.constant dense<0xFF800000> : vector<16xf32>
    %148 = vector.multi_reduction <maximumf>, %147, %cst_46 [1] : vector<16x16xf32> to vector<16xf32>
    %149 = vector.shape_cast %148 : vector<16xf32> to vector<16x1xf32>
    %150 = vector.broadcast %149 : vector<16x1xf32> to vector<16x16xf32>
    %151 = arith.subf %147, %150 : vector<16x16xf32>
    %152 = math.exp %151 : vector<16x16xf32>
    %cst_47 = arith.constant dense<0.000000e+00> : vector<16xf32>
    %153 = vector.multi_reduction <add>, %152, %cst_47 [1] : vector<16x16xf32> to vector<16xf32>
    %154 = vector.shape_cast %153 : vector<16xf32> to vector<16x1xf32>
    %155 = tpu.reciprocal %154 {approx = true} : vector<16x1xf32> -> vector<16x1xf32>
    %156 = vector.broadcast %155 : vector<16x1xf32> to vector<16x16xf32>
    %157 = arith.mulf %152, %156 : vector<16x16xf32>
    %158 = vector.extract_strided_slice %15 {offsets = [0, 32], sizes = [16, 4], strides = [1, 1]} : vector<16x40xf32> to vector<16x4xf32>
    %cst_48 = arith.constant dense<0.000000e+00> : vector<16x4xf32>
    %159 = tpu.matmul %157, %158, %cst_48 {dimension_numbers = #tpu.dot_dimension_numbers<[1], [0], [0], [1], [0, 0, 1, 1], [], []>} : vector<16x16xf32>, vector<16x4xf32>, vector<16x4xf32> -> vector<16x4xf32>
    %160 = vector.extract_strided_slice %13 {offsets = [0, 36], sizes = [16, 4], strides = [1, 1]} : vector<16x40xf32> to vector<16x4xf32>
    %161 = vector.extract_strided_slice %14 {offsets = [0, 36], sizes = [16, 4], strides = [1, 1]} : vector<16x40xf32> to vector<16x4xf32>
    %cst_49 = arith.constant dense<0.000000e+00> : vector<16x16xf32>
    %162 = tpu.matmul %160, %161, %cst_49 {dimension_numbers = #tpu.dot_dimension_numbers<[1], [1], [0], [0], [0, 0, 1, 0], [], []>} : vector<16x4xf32>, vector<16x4xf32>, vector<16x16xf32> -> vector<16x16xf32>
    %163 = arith.addf %162, %1 : vector<16x16xf32>
    %cst_50 = arith.constant dense<0xFF800000> : vector<16xf32>
    %164 = vector.multi_reduction <maximumf>, %163, %cst_50 [1] : vector<16x16xf32> to vector<16xf32>
    %165 = vector.shape_cast %164 : vector<16xf32> to vector<16x1xf32>
    %166 = vector.broadcast %165 : vector<16x1xf32> to vector<16x16xf32>
    %167 = arith.subf %163, %166 : vector<16x16xf32>
    %168 = math.exp %167 : vector<16x16xf32>
    %cst_51 = arith.constant dense<0.000000e+00> : vector<16xf32>
    %169 = vector.multi_reduction <add>, %168, %cst_51 [1] : vector<16x16xf32> to vector<16xf32>
    %170 = vector.shape_cast %169 : vector<16xf32> to vector<16x1xf32>
    %171 = tpu.reciprocal %170 {approx = true} : vector<16x1xf32> -> vector<16x1xf32>
    %172 = vector.broadcast %171 : vector<16x1xf32> to vector<16x16xf32>
    %173 = arith.mulf %168, %172 : vector<16x16xf32>
    %174 = vector.extract_strided_slice %15 {offsets = [0, 36], sizes = [16, 4], strides = [1, 1]} : vector<16x40xf32> to vector<16x4xf32>
    %cst_52 = arith.constant dense<0.000000e+00> : vector<16x4xf32>
    %175 = tpu.matmul %173, %174, %cst_52 {dimension_numbers = #tpu.dot_dimension_numbers<[1], [0], [0], [1], [0, 0, 1, 1], [], []>} : vector<16x16xf32>, vector<16x4xf32>, vector<16x4xf32> -> vector<16x4xf32>
    %176 = tpu.concatenate %31, %47, %63, %79, %95, %111, %127, %143, %159, %175 in 1 : vector<16x4xf32>, vector<16x4xf32>, vector<16x4xf32>, vector<16x4xf32>, vector<16x4xf32>, vector<16x4xf32>, vector<16x4xf32>, vector<16x4xf32>, vector<16x4xf32>, vector<16x4xf32> -> vector<16x40xf32>
    %c0_53 = arith.constant 0 : index
    %c0_54 = arith.constant 0 : index
    %c0_55 = arith.constant 0 : index
    %177 = vector.load %arg4[%c0_53, %c0_54, %c0_55] : memref<2x40x40xf32, #tpu.memory_space<vmem>>, vector<1x40x40xf32>
    %178 = vector.shape_cast %177 : vector<1x40x40xf32> to vector<40x40xf32>
    %cst_56 = arith.constant dense<0.000000e+00> : vector<16x40xf32>
    %179 = tpu.matmul %176, %178, %cst_56 {dimension_numbers = #tpu.dot_dimension_numbers<[1], [0], [0], [1], [0, 0, 1, 1], [], []>} : vector<16x40xf32>, vector<40x40xf32>, vector<16x40xf32> -> vector<16x40xf32>
    %180 = vector.extract_strided_slice %3 {offsets = [0, 0], sizes = [1, 40], strides = [1, 1]} : vector<6x40xf32> to vector<1x40xf32>
    %181 = vector.broadcast %180 : vector<1x40xf32> to vector<16x40xf32>
    %182 = arith.addf %179, %181 : vector<16x40xf32>
    %183 = arith.addf %0, %182 : vector<16x40xf32>
    %184 = vector.extract_strided_slice %3 {offsets = [1, 0], sizes = [1, 40], strides = [1, 1]} : vector<6x40xf32> to vector<1x40xf32>
    %185 = vector.extract_strided_slice %3 {offsets = [2, 0], sizes = [1, 40], strides = [1, 1]} : vector<6x40xf32> to vector<1x40xf32>
    %cst_57 = arith.constant dense<0.000000e+00> : vector<16xf32>
    %186 = vector.multi_reduction <add>, %183, %cst_57 [1] : vector<16x40xf32> to vector<16xf32>
    %187 = vector.shape_cast %186 : vector<16xf32> to vector<16x1xf32>
    %cst_58 = arith.constant 4.000000e+01 : f32
    %188 = vector.broadcast %cst_58 : f32 to vector<16x1xf32>
    %189 = arith.divf %187, %188 : vector<16x1xf32>
    %190 = vector.broadcast %189 : vector<16x1xf32> to vector<16x40xf32>
    %191 = arith.subf %183, %190 : vector<16x40xf32>
    %192 = arith.mulf %191, %191 : vector<16x40xf32>
    %cst_59 = arith.constant dense<0.000000e+00> : vector<16xf32>
    %193 = vector.multi_reduction <add>, %192, %cst_59 [1] : vector<16x40xf32> to vector<16xf32>
    %194 = vector.shape_cast %193 : vector<16xf32> to vector<16x1xf32>
    %cst_60 = arith.constant 4.000000e+01 : f32
    %195 = vector.broadcast %cst_60 : f32 to vector<16x1xf32>
    %196 = arith.divf %194, %195 : vector<16x1xf32>
    %cst_61 = arith.constant 9.99999974E-6 : f32
    %197 = vector.broadcast %cst_61 : f32 to vector<16x1xf32>
    %198 = arith.addf %196, %197 : vector<16x1xf32>
    %199 = math.rsqrt %198 : vector<16x1xf32>
    %200 = vector.broadcast %199 : vector<16x1xf32> to vector<16x40xf32>
    %201 = arith.mulf %191, %200 : vector<16x40xf32>
    %202 = vector.broadcast %184 : vector<1x40xf32> to vector<16x40xf32>
    %203 = arith.mulf %201, %202 : vector<16x40xf32>
    %204 = vector.broadcast %185 : vector<1x40xf32> to vector<16x40xf32>
    %205 = arith.addf %203, %204 : vector<16x40xf32>
    %c0_62 = arith.constant 0 : index
    %c0_63 = arith.constant 0 : index
    %c0_64 = arith.constant 0 : index
    %206 = vector.load %arg5[%c0_62, %c0_63, %c0_64] : memref<2x40x64xf32, #tpu.memory_space<vmem>>, vector<1x40x64xf32>
    %207 = vector.shape_cast %206 : vector<1x40x64xf32> to vector<40x64xf32>
    %cst_65 = arith.constant dense<0.000000e+00> : vector<16x64xf32>
    %208 = tpu.matmul %205, %207, %cst_65 {dimension_numbers = #tpu.dot_dimension_numbers<[1], [0], [0], [1], [0, 0, 1, 1], [], []>} : vector<16x40xf32>, vector<40x64xf32>, vector<16x64xf32> -> vector<16x64xf32>
    %c0_66 = arith.constant 0 : index
    %c0_67 = arith.constant 0 : index
    %c0_68 = arith.constant 0 : index
    %209 = vector.load %arg8[%c0_66, %c0_67, %c0_68] : memref<2x1x64xf32, #tpu.memory_space<vmem>>, vector<1x1x64xf32>
    %210 = vector.shape_cast %209 : vector<1x1x64xf32> to vector<1x64xf32>
    %211 = vector.broadcast %210 : vector<1x64xf32> to vector<16x64xf32>
    %212 = arith.addf %208, %211 : vector<16x64xf32>
    %cst_69 = arith.constant 0.000000e+00 : f32
    %213 = vector.broadcast %cst_69 : f32 to vector<16x64xf32>
    %214 = arith.maximumf %212, %213 : vector<16x64xf32>
    %c0_70 = arith.constant 0 : index
    %c0_71 = arith.constant 0 : index
    %c0_72 = arith.constant 0 : index
    %215 = vector.load %arg6[%c0_70, %c0_71, %c0_72] : memref<2x64x40xf32, #tpu.memory_space<vmem>>, vector<1x64x40xf32>
    %216 = vector.shape_cast %215 : vector<1x64x40xf32> to vector<64x40xf32>
    %cst_73 = arith.constant dense<0.000000e+00> : vector<16x40xf32>
    %217 = tpu.matmul %214, %216, %cst_73 {dimension_numbers = #tpu.dot_dimension_numbers<[1], [0], [0], [1], [0, 0, 1, 1], [], []>} : vector<16x64xf32>, vector<64x40xf32>, vector<16x40xf32> -> vector<16x40xf32>
    %218 = vector.extract_strided_slice %3 {offsets = [5, 0], sizes = [1, 40], strides = [1, 1]} : vector<6x40xf32> to vector<1x40xf32>
    %219 = vector.broadcast %218 : vector<1x40xf32> to vector<16x40xf32>
    %220 = arith.addf %217, %219 : vector<16x40xf32>
    %221 = arith.addf %205, %220 : vector<16x40xf32>
    %222 = vector.extract_strided_slice %3 {offsets = [3, 0], sizes = [1, 40], strides = [1, 1]} : vector<6x40xf32> to vector<1x40xf32>
    %223 = vector.extract_strided_slice %3 {offsets = [4, 0], sizes = [1, 40], strides = [1, 1]} : vector<6x40xf32> to vector<1x40xf32>
    %cst_74 = arith.constant dense<0.000000e+00> : vector<16xf32>
    %224 = vector.multi_reduction <add>, %221, %cst_74 [1] : vector<16x40xf32> to vector<16xf32>
    %225 = vector.shape_cast %224 : vector<16xf32> to vector<16x1xf32>
    %cst_75 = arith.constant 4.000000e+01 : f32
    %226 = vector.broadcast %cst_75 : f32 to vector<16x1xf32>
    %227 = arith.divf %225, %226 : vector<16x1xf32>
    %228 = vector.broadcast %227 : vector<16x1xf32> to vector<16x40xf32>
    %229 = arith.subf %221, %228 : vector<16x40xf32>
    %230 = arith.mulf %229, %229 : vector<16x40xf32>
    %cst_76 = arith.constant dense<0.000000e+00> : vector<16xf32>
    %231 = vector.multi_reduction <add>, %230, %cst_76 [1] : vector<16x40xf32> to vector<16xf32>
    %232 = vector.shape_cast %231 : vector<16xf32> to vector<16x1xf32>
    %cst_77 = arith.constant 4.000000e+01 : f32
    %233 = vector.broadcast %cst_77 : f32 to vector<16x1xf32>
    %234 = arith.divf %232, %233 : vector<16x1xf32>
    %cst_78 = arith.constant 9.99999974E-6 : f32
    %235 = vector.broadcast %cst_78 : f32 to vector<16x1xf32>
    %236 = arith.addf %234, %235 : vector<16x1xf32>
    %237 = math.rsqrt %236 : vector<16x1xf32>
    %238 = vector.broadcast %237 : vector<16x1xf32> to vector<16x40xf32>
    %239 = arith.mulf %229, %238 : vector<16x40xf32>
    %240 = vector.broadcast %222 : vector<1x40xf32> to vector<16x40xf32>
    %241 = arith.mulf %239, %240 : vector<16x40xf32>
    %242 = vector.broadcast %223 : vector<1x40xf32> to vector<16x40xf32>
    %243 = arith.addf %241, %242 : vector<16x40xf32>
    %c1 = arith.constant 1 : index
    %c0_79 = arith.constant 0 : index
    %c0_80 = arith.constant 0 : index
    %244 = vector.load %arg9[%c1, %c0_79, %c0_80] : memref<2x6x40xf32, #tpu.memory_space<vmem>>, vector<1x6x40xf32>
    %245 = vector.shape_cast %244 : vector<1x6x40xf32> to vector<6x40xf32>
    %c1_81 = arith.constant 1 : index
    %c0_82 = arith.constant 0 : index
    %c0_83 = arith.constant 0 : index
    %246 = vector.load %arg3[%c1_81, %c0_82, %c0_83] : memref<2x40x120xf32, #tpu.memory_space<vmem>>, vector<1x40x120xf32>
    %247 = vector.shape_cast %246 : vector<1x40x120xf32> to vector<40x120xf32>
    %cst_84 = arith.constant dense<0.000000e+00> : vector<16x120xf32>
    %248 = tpu.matmul %243, %247, %cst_84 {dimension_numbers = #tpu.dot_dimension_numbers<[1], [0], [0], [1], [0, 0, 1, 1], [], []>} : vector<16x40xf32>, vector<40x120xf32>, vector<16x120xf32> -> vector<16x120xf32>
    %c1_85 = arith.constant 1 : index
    %c0_86 = arith.constant 0 : index
    %c0_87 = arith.constant 0 : index
    %249 = vector.load %arg7[%c1_85, %c0_86, %c0_87] : memref<2x1x120xf32, #tpu.memory_space<vmem>>, vector<1x1x120xf32>
    %250 = vector.shape_cast %249 : vector<1x1x120xf32> to vector<1x120xf32>
    %251 = vector.broadcast %250 : vector<1x120xf32> to vector<16x120xf32>
    %252 = arith.addf %248, %251 : vector<16x120xf32>
    %253 = vector.extract_strided_slice %252 {offsets = [0, 0], sizes = [16, 40], strides = [1, 1]} : vector<16x120xf32> to vector<16x40xf32>
    %cst_88 = arith.constant 5.000000e-01 : f32
    %254 = vector.broadcast %cst_88 : f32 to vector<16x40xf32>
    %255 = arith.mulf %253, %254 : vector<16x40xf32>
    %256 = vector.extract_strided_slice %252 {offsets = [0, 40], sizes = [16, 40], strides = [1, 1]} : vector<16x120xf32> to vector<16x40xf32>
    %257 = vector.extract_strided_slice %252 {offsets = [0, 80], sizes = [16, 40], strides = [1, 1]} : vector<16x120xf32> to vector<16x40xf32>
    %258 = vector.extract_strided_slice %255 {offsets = [0, 0], sizes = [16, 4], strides = [1, 1]} : vector<16x40xf32> to vector<16x4xf32>
    %259 = vector.extract_strided_slice %256 {offsets = [0, 0], sizes = [16, 4], strides = [1, 1]} : vector<16x40xf32> to vector<16x4xf32>
    %cst_89 = arith.constant dense<0.000000e+00> : vector<16x16xf32>
    %260 = tpu.matmul %258, %259, %cst_89 {dimension_numbers = #tpu.dot_dimension_numbers<[1], [1], [0], [0], [0, 0, 1, 0], [], []>} : vector<16x4xf32>, vector<16x4xf32>, vector<16x16xf32> -> vector<16x16xf32>
    %261 = arith.addf %260, %1 : vector<16x16xf32>
    %cst_90 = arith.constant dense<0xFF800000> : vector<16xf32>
    %262 = vector.multi_reduction <maximumf>, %261, %cst_90 [1] : vector<16x16xf32> to vector<16xf32>
    %263 = vector.shape_cast %262 : vector<16xf32> to vector<16x1xf32>
    %264 = vector.broadcast %263 : vector<16x1xf32> to vector<16x16xf32>
    %265 = arith.subf %261, %264 : vector<16x16xf32>
    %266 = math.exp %265 : vector<16x16xf32>
    %cst_91 = arith.constant dense<0.000000e+00> : vector<16xf32>
    %267 = vector.multi_reduction <add>, %266, %cst_91 [1] : vector<16x16xf32> to vector<16xf32>
    %268 = vector.shape_cast %267 : vector<16xf32> to vector<16x1xf32>
    %269 = tpu.reciprocal %268 {approx = true} : vector<16x1xf32> -> vector<16x1xf32>
    %270 = vector.broadcast %269 : vector<16x1xf32> to vector<16x16xf32>
    %271 = arith.mulf %266, %270 : vector<16x16xf32>
    %272 = vector.extract_strided_slice %257 {offsets = [0, 0], sizes = [16, 4], strides = [1, 1]} : vector<16x40xf32> to vector<16x4xf32>
    %cst_92 = arith.constant dense<0.000000e+00> : vector<16x4xf32>
    %273 = tpu.matmul %271, %272, %cst_92 {dimension_numbers = #tpu.dot_dimension_numbers<[1], [0], [0], [1], [0, 0, 1, 1], [], []>} : vector<16x16xf32>, vector<16x4xf32>, vector<16x4xf32> -> vector<16x4xf32>
    %274 = vector.extract_strided_slice %255 {offsets = [0, 4], sizes = [16, 4], strides = [1, 1]} : vector<16x40xf32> to vector<16x4xf32>
    %275 = vector.extract_strided_slice %256 {offsets = [0, 4], sizes = [16, 4], strides = [1, 1]} : vector<16x40xf32> to vector<16x4xf32>
    %cst_93 = arith.constant dense<0.000000e+00> : vector<16x16xf32>
    %276 = tpu.matmul %274, %275, %cst_93 {dimension_numbers = #tpu.dot_dimension_numbers<[1], [1], [0], [0], [0, 0, 1, 0], [], []>} : vector<16x4xf32>, vector<16x4xf32>, vector<16x16xf32> -> vector<16x16xf32>
    %277 = arith.addf %276, %1 : vector<16x16xf32>
    %cst_94 = arith.constant dense<0xFF800000> : vector<16xf32>
    %278 = vector.multi_reduction <maximumf>, %277, %cst_94 [1] : vector<16x16xf32> to vector<16xf32>
    %279 = vector.shape_cast %278 : vector<16xf32> to vector<16x1xf32>
    %280 = vector.broadcast %279 : vector<16x1xf32> to vector<16x16xf32>
    %281 = arith.subf %277, %280 : vector<16x16xf32>
    %282 = math.exp %281 : vector<16x16xf32>
    %cst_95 = arith.constant dense<0.000000e+00> : vector<16xf32>
    %283 = vector.multi_reduction <add>, %282, %cst_95 [1] : vector<16x16xf32> to vector<16xf32>
    %284 = vector.shape_cast %283 : vector<16xf32> to vector<16x1xf32>
    %285 = tpu.reciprocal %284 {approx = true} : vector<16x1xf32> -> vector<16x1xf32>
    %286 = vector.broadcast %285 : vector<16x1xf32> to vector<16x16xf32>
    %287 = arith.mulf %282, %286 : vector<16x16xf32>
    %288 = vector.extract_strided_slice %257 {offsets = [0, 4], sizes = [16, 4], strides = [1, 1]} : vector<16x40xf32> to vector<16x4xf32>
    %cst_96 = arith.constant dense<0.000000e+00> : vector<16x4xf32>
    %289 = tpu.matmul %287, %288, %cst_96 {dimension_numbers = #tpu.dot_dimension_numbers<[1], [0], [0], [1], [0, 0, 1, 1], [], []>} : vector<16x16xf32>, vector<16x4xf32>, vector<16x4xf32> -> vector<16x4xf32>
    %290 = vector.extract_strided_slice %255 {offsets = [0, 8], sizes = [16, 4], strides = [1, 1]} : vector<16x40xf32> to vector<16x4xf32>
    %291 = vector.extract_strided_slice %256 {offsets = [0, 8], sizes = [16, 4], strides = [1, 1]} : vector<16x40xf32> to vector<16x4xf32>
    %cst_97 = arith.constant dense<0.000000e+00> : vector<16x16xf32>
    %292 = tpu.matmul %290, %291, %cst_97 {dimension_numbers = #tpu.dot_dimension_numbers<[1], [1], [0], [0], [0, 0, 1, 0], [], []>} : vector<16x4xf32>, vector<16x4xf32>, vector<16x16xf32> -> vector<16x16xf32>
    %293 = arith.addf %292, %1 : vector<16x16xf32>
    %cst_98 = arith.constant dense<0xFF800000> : vector<16xf32>
    %294 = vector.multi_reduction <maximumf>, %293, %cst_98 [1] : vector<16x16xf32> to vector<16xf32>
    %295 = vector.shape_cast %294 : vector<16xf32> to vector<16x1xf32>
    %296 = vector.broadcast %295 : vector<16x1xf32> to vector<16x16xf32>
    %297 = arith.subf %293, %296 : vector<16x16xf32>
    %298 = math.exp %297 : vector<16x16xf32>
    %cst_99 = arith.constant dense<0.000000e+00> : vector<16xf32>
    %299 = vector.multi_reduction <add>, %298, %cst_99 [1] : vector<16x16xf32> to vector<16xf32>
    %300 = vector.shape_cast %299 : vector<16xf32> to vector<16x1xf32>
    %301 = tpu.reciprocal %300 {approx = true} : vector<16x1xf32> -> vector<16x1xf32>
    %302 = vector.broadcast %301 : vector<16x1xf32> to vector<16x16xf32>
    %303 = arith.mulf %298, %302 : vector<16x16xf32>
    %304 = vector.extract_strided_slice %257 {offsets = [0, 8], sizes = [16, 4], strides = [1, 1]} : vector<16x40xf32> to vector<16x4xf32>
    %cst_100 = arith.constant dense<0.000000e+00> : vector<16x4xf32>
    %305 = tpu.matmul %303, %304, %cst_100 {dimension_numbers = #tpu.dot_dimension_numbers<[1], [0], [0], [1], [0, 0, 1, 1], [], []>} : vector<16x16xf32>, vector<16x4xf32>, vector<16x4xf32> -> vector<16x4xf32>
    %306 = vector.extract_strided_slice %255 {offsets = [0, 12], sizes = [16, 4], strides = [1, 1]} : vector<16x40xf32> to vector<16x4xf32>
    %307 = vector.extract_strided_slice %256 {offsets = [0, 12], sizes = [16, 4], strides = [1, 1]} : vector<16x40xf32> to vector<16x4xf32>
    %cst_101 = arith.constant dense<0.000000e+00> : vector<16x16xf32>
    %308 = tpu.matmul %306, %307, %cst_101 {dimension_numbers = #tpu.dot_dimension_numbers<[1], [1], [0], [0], [0, 0, 1, 0], [], []>} : vector<16x4xf32>, vector<16x4xf32>, vector<16x16xf32> -> vector<16x16xf32>
    %309 = arith.addf %308, %1 : vector<16x16xf32>
    %cst_102 = arith.constant dense<0xFF800000> : vector<16xf32>
    %310 = vector.multi_reduction <maximumf>, %309, %cst_102 [1] : vector<16x16xf32> to vector<16xf32>
    %311 = vector.shape_cast %310 : vector<16xf32> to vector<16x1xf32>
    %312 = vector.broadcast %311 : vector<16x1xf32> to vector<16x16xf32>
    %313 = arith.subf %309, %312 : vector<16x16xf32>
    %314 = math.exp %313 : vector<16x16xf32>
    %cst_103 = arith.constant dense<0.000000e+00> : vector<16xf32>
    %315 = vector.multi_reduction <add>, %314, %cst_103 [1] : vector<16x16xf32> to vector<16xf32>
    %316 = vector.shape_cast %315 : vector<16xf32> to vector<16x1xf32>
    %317 = tpu.reciprocal %316 {approx = true} : vector<16x1xf32> -> vector<16x1xf32>
    %318 = vector.broadcast %317 : vector<16x1xf32> to vector<16x16xf32>
    %319 = arith.mulf %314, %318 : vector<16x16xf32>
    %320 = vector.extract_strided_slice %257 {offsets = [0, 12], sizes = [16, 4], strides = [1, 1]} : vector<16x40xf32> to vector<16x4xf32>
    %cst_104 = arith.constant dense<0.000000e+00> : vector<16x4xf32>
    %321 = tpu.matmul %319, %320, %cst_104 {dimension_numbers = #tpu.dot_dimension_numbers<[1], [0], [0], [1], [0, 0, 1, 1], [], []>} : vector<16x16xf32>, vector<16x4xf32>, vector<16x4xf32> -> vector<16x4xf32>
    %322 = vector.extract_strided_slice %255 {offsets = [0, 16], sizes = [16, 4], strides = [1, 1]} : vector<16x40xf32> to vector<16x4xf32>
    %323 = vector.extract_strided_slice %256 {offsets = [0, 16], sizes = [16, 4], strides = [1, 1]} : vector<16x40xf32> to vector<16x4xf32>
    %cst_105 = arith.constant dense<0.000000e+00> : vector<16x16xf32>
    %324 = tpu.matmul %322, %323, %cst_105 {dimension_numbers = #tpu.dot_dimension_numbers<[1], [1], [0], [0], [0, 0, 1, 0], [], []>} : vector<16x4xf32>, vector<16x4xf32>, vector<16x16xf32> -> vector<16x16xf32>
    %325 = arith.addf %324, %1 : vector<16x16xf32>
    %cst_106 = arith.constant dense<0xFF800000> : vector<16xf32>
    %326 = vector.multi_reduction <maximumf>, %325, %cst_106 [1] : vector<16x16xf32> to vector<16xf32>
    %327 = vector.shape_cast %326 : vector<16xf32> to vector<16x1xf32>
    %328 = vector.broadcast %327 : vector<16x1xf32> to vector<16x16xf32>
    %329 = arith.subf %325, %328 : vector<16x16xf32>
    %330 = math.exp %329 : vector<16x16xf32>
    %cst_107 = arith.constant dense<0.000000e+00> : vector<16xf32>
    %331 = vector.multi_reduction <add>, %330, %cst_107 [1] : vector<16x16xf32> to vector<16xf32>
    %332 = vector.shape_cast %331 : vector<16xf32> to vector<16x1xf32>
    %333 = tpu.reciprocal %332 {approx = true} : vector<16x1xf32> -> vector<16x1xf32>
    %334 = vector.broadcast %333 : vector<16x1xf32> to vector<16x16xf32>
    %335 = arith.mulf %330, %334 : vector<16x16xf32>
    %336 = vector.extract_strided_slice %257 {offsets = [0, 16], sizes = [16, 4], strides = [1, 1]} : vector<16x40xf32> to vector<16x4xf32>
    %cst_108 = arith.constant dense<0.000000e+00> : vector<16x4xf32>
    %337 = tpu.matmul %335, %336, %cst_108 {dimension_numbers = #tpu.dot_dimension_numbers<[1], [0], [0], [1], [0, 0, 1, 1], [], []>} : vector<16x16xf32>, vector<16x4xf32>, vector<16x4xf32> -> vector<16x4xf32>
    %338 = vector.extract_strided_slice %255 {offsets = [0, 20], sizes = [16, 4], strides = [1, 1]} : vector<16x40xf32> to vector<16x4xf32>
    %339 = vector.extract_strided_slice %256 {offsets = [0, 20], sizes = [16, 4], strides = [1, 1]} : vector<16x40xf32> to vector<16x4xf32>
    %cst_109 = arith.constant dense<0.000000e+00> : vector<16x16xf32>
    %340 = tpu.matmul %338, %339, %cst_109 {dimension_numbers = #tpu.dot_dimension_numbers<[1], [1], [0], [0], [0, 0, 1, 0], [], []>} : vector<16x4xf32>, vector<16x4xf32>, vector<16x16xf32> -> vector<16x16xf32>
    %341 = arith.addf %340, %1 : vector<16x16xf32>
    %cst_110 = arith.constant dense<0xFF800000> : vector<16xf32>
    %342 = vector.multi_reduction <maximumf>, %341, %cst_110 [1] : vector<16x16xf32> to vector<16xf32>
    %343 = vector.shape_cast %342 : vector<16xf32> to vector<16x1xf32>
    %344 = vector.broadcast %343 : vector<16x1xf32> to vector<16x16xf32>
    %345 = arith.subf %341, %344 : vector<16x16xf32>
    %346 = math.exp %345 : vector<16x16xf32>
    %cst_111 = arith.constant dense<0.000000e+00> : vector<16xf32>
    %347 = vector.multi_reduction <add>, %346, %cst_111 [1] : vector<16x16xf32> to vector<16xf32>
    %348 = vector.shape_cast %347 : vector<16xf32> to vector<16x1xf32>
    %349 = tpu.reciprocal %348 {approx = true} : vector<16x1xf32> -> vector<16x1xf32>
    %350 = vector.broadcast %349 : vector<16x1xf32> to vector<16x16xf32>
    %351 = arith.mulf %346, %350 : vector<16x16xf32>
    %352 = vector.extract_strided_slice %257 {offsets = [0, 20], sizes = [16, 4], strides = [1, 1]} : vector<16x40xf32> to vector<16x4xf32>
    %cst_112 = arith.constant dense<0.000000e+00> : vector<16x4xf32>
    %353 = tpu.matmul %351, %352, %cst_112 {dimension_numbers = #tpu.dot_dimension_numbers<[1], [0], [0], [1], [0, 0, 1, 1], [], []>} : vector<16x16xf32>, vector<16x4xf32>, vector<16x4xf32> -> vector<16x4xf32>
    %354 = vector.extract_strided_slice %255 {offsets = [0, 24], sizes = [16, 4], strides = [1, 1]} : vector<16x40xf32> to vector<16x4xf32>
    %355 = vector.extract_strided_slice %256 {offsets = [0, 24], sizes = [16, 4], strides = [1, 1]} : vector<16x40xf32> to vector<16x4xf32>
    %cst_113 = arith.constant dense<0.000000e+00> : vector<16x16xf32>
    %356 = tpu.matmul %354, %355, %cst_113 {dimension_numbers = #tpu.dot_dimension_numbers<[1], [1], [0], [0], [0, 0, 1, 0], [], []>} : vector<16x4xf32>, vector<16x4xf32>, vector<16x16xf32> -> vector<16x16xf32>
    %357 = arith.addf %356, %1 : vector<16x16xf32>
    %cst_114 = arith.constant dense<0xFF800000> : vector<16xf32>
    %358 = vector.multi_reduction <maximumf>, %357, %cst_114 [1] : vector<16x16xf32> to vector<16xf32>
    %359 = vector.shape_cast %358 : vector<16xf32> to vector<16x1xf32>
    %360 = vector.broadcast %359 : vector<16x1xf32> to vector<16x16xf32>
    %361 = arith.subf %357, %360 : vector<16x16xf32>
    %362 = math.exp %361 : vector<16x16xf32>
    %cst_115 = arith.constant dense<0.000000e+00> : vector<16xf32>
    %363 = vector.multi_reduction <add>, %362, %cst_115 [1] : vector<16x16xf32> to vector<16xf32>
    %364 = vector.shape_cast %363 : vector<16xf32> to vector<16x1xf32>
    %365 = tpu.reciprocal %364 {approx = true} : vector<16x1xf32> -> vector<16x1xf32>
    %366 = vector.broadcast %365 : vector<16x1xf32> to vector<16x16xf32>
    %367 = arith.mulf %362, %366 : vector<16x16xf32>
    %368 = vector.extract_strided_slice %257 {offsets = [0, 24], sizes = [16, 4], strides = [1, 1]} : vector<16x40xf32> to vector<16x4xf32>
    %cst_116 = arith.constant dense<0.000000e+00> : vector<16x4xf32>
    %369 = tpu.matmul %367, %368, %cst_116 {dimension_numbers = #tpu.dot_dimension_numbers<[1], [0], [0], [1], [0, 0, 1, 1], [], []>} : vector<16x16xf32>, vector<16x4xf32>, vector<16x4xf32> -> vector<16x4xf32>
    %370 = vector.extract_strided_slice %255 {offsets = [0, 28], sizes = [16, 4], strides = [1, 1]} : vector<16x40xf32> to vector<16x4xf32>
    %371 = vector.extract_strided_slice %256 {offsets = [0, 28], sizes = [16, 4], strides = [1, 1]} : vector<16x40xf32> to vector<16x4xf32>
    %cst_117 = arith.constant dense<0.000000e+00> : vector<16x16xf32>
    %372 = tpu.matmul %370, %371, %cst_117 {dimension_numbers = #tpu.dot_dimension_numbers<[1], [1], [0], [0], [0, 0, 1, 0], [], []>} : vector<16x4xf32>, vector<16x4xf32>, vector<16x16xf32> -> vector<16x16xf32>
    %373 = arith.addf %372, %1 : vector<16x16xf32>
    %cst_118 = arith.constant dense<0xFF800000> : vector<16xf32>
    %374 = vector.multi_reduction <maximumf>, %373, %cst_118 [1] : vector<16x16xf32> to vector<16xf32>
    %375 = vector.shape_cast %374 : vector<16xf32> to vector<16x1xf32>
    %376 = vector.broadcast %375 : vector<16x1xf32> to vector<16x16xf32>
    %377 = arith.subf %373, %376 : vector<16x16xf32>
    %378 = math.exp %377 : vector<16x16xf32>
    %cst_119 = arith.constant dense<0.000000e+00> : vector<16xf32>
    %379 = vector.multi_reduction <add>, %378, %cst_119 [1] : vector<16x16xf32> to vector<16xf32>
    %380 = vector.shape_cast %379 : vector<16xf32> to vector<16x1xf32>
    %381 = tpu.reciprocal %380 {approx = true} : vector<16x1xf32> -> vector<16x1xf32>
    %382 = vector.broadcast %381 : vector<16x1xf32> to vector<16x16xf32>
    %383 = arith.mulf %378, %382 : vector<16x16xf32>
    %384 = vector.extract_strided_slice %257 {offsets = [0, 28], sizes = [16, 4], strides = [1, 1]} : vector<16x40xf32> to vector<16x4xf32>
    %cst_120 = arith.constant dense<0.000000e+00> : vector<16x4xf32>
    %385 = tpu.matmul %383, %384, %cst_120 {dimension_numbers = #tpu.dot_dimension_numbers<[1], [0], [0], [1], [0, 0, 1, 1], [], []>} : vector<16x16xf32>, vector<16x4xf32>, vector<16x4xf32> -> vector<16x4xf32>
    %386 = vector.extract_strided_slice %255 {offsets = [0, 32], sizes = [16, 4], strides = [1, 1]} : vector<16x40xf32> to vector<16x4xf32>
    %387 = vector.extract_strided_slice %256 {offsets = [0, 32], sizes = [16, 4], strides = [1, 1]} : vector<16x40xf32> to vector<16x4xf32>
    %cst_121 = arith.constant dense<0.000000e+00> : vector<16x16xf32>
    %388 = tpu.matmul %386, %387, %cst_121 {dimension_numbers = #tpu.dot_dimension_numbers<[1], [1], [0], [0], [0, 0, 1, 0], [], []>} : vector<16x4xf32>, vector<16x4xf32>, vector<16x16xf32> -> vector<16x16xf32>
    %389 = arith.addf %388, %1 : vector<16x16xf32>
    %cst_122 = arith.constant dense<0xFF800000> : vector<16xf32>
    %390 = vector.multi_reduction <maximumf>, %389, %cst_122 [1] : vector<16x16xf32> to vector<16xf32>
    %391 = vector.shape_cast %390 : vector<16xf32> to vector<16x1xf32>
    %392 = vector.broadcast %391 : vector<16x1xf32> to vector<16x16xf32>
    %393 = arith.subf %389, %392 : vector<16x16xf32>
    %394 = math.exp %393 : vector<16x16xf32>
    %cst_123 = arith.constant dense<0.000000e+00> : vector<16xf32>
    %395 = vector.multi_reduction <add>, %394, %cst_123 [1] : vector<16x16xf32> to vector<16xf32>
    %396 = vector.shape_cast %395 : vector<16xf32> to vector<16x1xf32>
    %397 = tpu.reciprocal %396 {approx = true} : vector<16x1xf32> -> vector<16x1xf32>
    %398 = vector.broadcast %397 : vector<16x1xf32> to vector<16x16xf32>
    %399 = arith.mulf %394, %398 : vector<16x16xf32>
    %400 = vector.extract_strided_slice %257 {offsets = [0, 32], sizes = [16, 4], strides = [1, 1]} : vector<16x40xf32> to vector<16x4xf32>
    %cst_124 = arith.constant dense<0.000000e+00> : vector<16x4xf32>
    %401 = tpu.matmul %399, %400, %cst_124 {dimension_numbers = #tpu.dot_dimension_numbers<[1], [0], [0], [1], [0, 0, 1, 1], [], []>} : vector<16x16xf32>, vector<16x4xf32>, vector<16x4xf32> -> vector<16x4xf32>
    %402 = vector.extract_strided_slice %255 {offsets = [0, 36], sizes = [16, 4], strides = [1, 1]} : vector<16x40xf32> to vector<16x4xf32>
    %403 = vector.extract_strided_slice %256 {offsets = [0, 36], sizes = [16, 4], strides = [1, 1]} : vector<16x40xf32> to vector<16x4xf32>
    %cst_125 = arith.constant dense<0.000000e+00> : vector<16x16xf32>
    %404 = tpu.matmul %402, %403, %cst_125 {dimension_numbers = #tpu.dot_dimension_numbers<[1], [1], [0], [0], [0, 0, 1, 0], [], []>} : vector<16x4xf32>, vector<16x4xf32>, vector<16x16xf32> -> vector<16x16xf32>
    %405 = arith.addf %404, %1 : vector<16x16xf32>
    %cst_126 = arith.constant dense<0xFF800000> : vector<16xf32>
    %406 = vector.multi_reduction <maximumf>, %405, %cst_126 [1] : vector<16x16xf32> to vector<16xf32>
    %407 = vector.shape_cast %406 : vector<16xf32> to vector<16x1xf32>
    %408 = vector.broadcast %407 : vector<16x1xf32> to vector<16x16xf32>
    %409 = arith.subf %405, %408 : vector<16x16xf32>
    %410 = math.exp %409 : vector<16x16xf32>
    %cst_127 = arith.constant dense<0.000000e+00> : vector<16xf32>
    %411 = vector.multi_reduction <add>, %410, %cst_127 [1] : vector<16x16xf32> to vector<16xf32>
    %412 = vector.shape_cast %411 : vector<16xf32> to vector<16x1xf32>
    %413 = tpu.reciprocal %412 {approx = true} : vector<16x1xf32> -> vector<16x1xf32>
    %414 = vector.broadcast %413 : vector<16x1xf32> to vector<16x16xf32>
    %415 = arith.mulf %410, %414 : vector<16x16xf32>
    %416 = vector.extract_strided_slice %257 {offsets = [0, 36], sizes = [16, 4], strides = [1, 1]} : vector<16x40xf32> to vector<16x4xf32>
    %cst_128 = arith.constant dense<0.000000e+00> : vector<16x4xf32>
    %417 = tpu.matmul %415, %416, %cst_128 {dimension_numbers = #tpu.dot_dimension_numbers<[1], [0], [0], [1], [0, 0, 1, 1], [], []>} : vector<16x16xf32>, vector<16x4xf32>, vector<16x4xf32> -> vector<16x4xf32>
    %418 = tpu.concatenate %273, %289, %305, %321, %337, %353, %369, %385, %401, %417 in 1 : vector<16x4xf32>, vector<16x4xf32>, vector<16x4xf32>, vector<16x4xf32>, vector<16x4xf32>, vector<16x4xf32>, vector<16x4xf32>, vector<16x4xf32>, vector<16x4xf32>, vector<16x4xf32> -> vector<16x40xf32>
    %c1_129 = arith.constant 1 : index
    %c0_130 = arith.constant 0 : index
    %c0_131 = arith.constant 0 : index
    %419 = vector.load %arg4[%c1_129, %c0_130, %c0_131] : memref<2x40x40xf32, #tpu.memory_space<vmem>>, vector<1x40x40xf32>
    %420 = vector.shape_cast %419 : vector<1x40x40xf32> to vector<40x40xf32>
    %cst_132 = arith.constant dense<0.000000e+00> : vector<16x40xf32>
    %421 = tpu.matmul %418, %420, %cst_132 {dimension_numbers = #tpu.dot_dimension_numbers<[1], [0], [0], [1], [0, 0, 1, 1], [], []>} : vector<16x40xf32>, vector<40x40xf32>, vector<16x40xf32> -> vector<16x40xf32>
    %422 = vector.extract_strided_slice %245 {offsets = [0, 0], sizes = [1, 40], strides = [1, 1]} : vector<6x40xf32> to vector<1x40xf32>
    %423 = vector.broadcast %422 : vector<1x40xf32> to vector<16x40xf32>
    %424 = arith.addf %421, %423 : vector<16x40xf32>
    %425 = arith.addf %243, %424 : vector<16x40xf32>
    %426 = vector.extract_strided_slice %245 {offsets = [1, 0], sizes = [1, 40], strides = [1, 1]} : vector<6x40xf32> to vector<1x40xf32>
    %427 = vector.extract_strided_slice %245 {offsets = [2, 0], sizes = [1, 40], strides = [1, 1]} : vector<6x40xf32> to vector<1x40xf32>
    %cst_133 = arith.constant dense<0.000000e+00> : vector<16xf32>
    %428 = vector.multi_reduction <add>, %425, %cst_133 [1] : vector<16x40xf32> to vector<16xf32>
    %429 = vector.shape_cast %428 : vector<16xf32> to vector<16x1xf32>
    %cst_134 = arith.constant 4.000000e+01 : f32
    %430 = vector.broadcast %cst_134 : f32 to vector<16x1xf32>
    %431 = arith.divf %429, %430 : vector<16x1xf32>
    %432 = vector.broadcast %431 : vector<16x1xf32> to vector<16x40xf32>
    %433 = arith.subf %425, %432 : vector<16x40xf32>
    %434 = arith.mulf %433, %433 : vector<16x40xf32>
    %cst_135 = arith.constant dense<0.000000e+00> : vector<16xf32>
    %435 = vector.multi_reduction <add>, %434, %cst_135 [1] : vector<16x40xf32> to vector<16xf32>
    %436 = vector.shape_cast %435 : vector<16xf32> to vector<16x1xf32>
    %cst_136 = arith.constant 4.000000e+01 : f32
    %437 = vector.broadcast %cst_136 : f32 to vector<16x1xf32>
    %438 = arith.divf %436, %437 : vector<16x1xf32>
    %cst_137 = arith.constant 9.99999974E-6 : f32
    %439 = vector.broadcast %cst_137 : f32 to vector<16x1xf32>
    %440 = arith.addf %438, %439 : vector<16x1xf32>
    %441 = math.rsqrt %440 : vector<16x1xf32>
    %442 = vector.broadcast %441 : vector<16x1xf32> to vector<16x40xf32>
    %443 = arith.mulf %433, %442 : vector<16x40xf32>
    %444 = vector.broadcast %426 : vector<1x40xf32> to vector<16x40xf32>
    %445 = arith.mulf %443, %444 : vector<16x40xf32>
    %446 = vector.broadcast %427 : vector<1x40xf32> to vector<16x40xf32>
    %447 = arith.addf %445, %446 : vector<16x40xf32>
    %c1_138 = arith.constant 1 : index
    %c0_139 = arith.constant 0 : index
    %c0_140 = arith.constant 0 : index
    %448 = vector.load %arg5[%c1_138, %c0_139, %c0_140] : memref<2x40x64xf32, #tpu.memory_space<vmem>>, vector<1x40x64xf32>
    %449 = vector.shape_cast %448 : vector<1x40x64xf32> to vector<40x64xf32>
    %cst_141 = arith.constant dense<0.000000e+00> : vector<16x64xf32>
    %450 = tpu.matmul %447, %449, %cst_141 {dimension_numbers = #tpu.dot_dimension_numbers<[1], [0], [0], [1], [0, 0, 1, 1], [], []>} : vector<16x40xf32>, vector<40x64xf32>, vector<16x64xf32> -> vector<16x64xf32>
    %c1_142 = arith.constant 1 : index
    %c0_143 = arith.constant 0 : index
    %c0_144 = arith.constant 0 : index
    %451 = vector.load %arg8[%c1_142, %c0_143, %c0_144] : memref<2x1x64xf32, #tpu.memory_space<vmem>>, vector<1x1x64xf32>
    %452 = vector.shape_cast %451 : vector<1x1x64xf32> to vector<1x64xf32>
    %453 = vector.broadcast %452 : vector<1x64xf32> to vector<16x64xf32>
    %454 = arith.addf %450, %453 : vector<16x64xf32>
    %cst_145 = arith.constant 0.000000e+00 : f32
    %455 = vector.broadcast %cst_145 : f32 to vector<16x64xf32>
    %456 = arith.maximumf %454, %455 : vector<16x64xf32>
    %c1_146 = arith.constant 1 : index
    %c0_147 = arith.constant 0 : index
    %c0_148 = arith.constant 0 : index
    %457 = vector.load %arg6[%c1_146, %c0_147, %c0_148] : memref<2x64x40xf32, #tpu.memory_space<vmem>>, vector<1x64x40xf32>
    %458 = vector.shape_cast %457 : vector<1x64x40xf32> to vector<64x40xf32>
    %cst_149 = arith.constant dense<0.000000e+00> : vector<16x40xf32>
    %459 = tpu.matmul %456, %458, %cst_149 {dimension_numbers = #tpu.dot_dimension_numbers<[1], [0], [0], [1], [0, 0, 1, 1], [], []>} : vector<16x64xf32>, vector<64x40xf32>, vector<16x40xf32> -> vector<16x40xf32>
    %460 = vector.extract_strided_slice %245 {offsets = [5, 0], sizes = [1, 40], strides = [1, 1]} : vector<6x40xf32> to vector<1x40xf32>
    %461 = vector.broadcast %460 : vector<1x40xf32> to vector<16x40xf32>
    %462 = arith.addf %459, %461 : vector<16x40xf32>
    %463 = arith.addf %447, %462 : vector<16x40xf32>
    %464 = vector.extract_strided_slice %245 {offsets = [3, 0], sizes = [1, 40], strides = [1, 1]} : vector<6x40xf32> to vector<1x40xf32>
    %465 = vector.extract_strided_slice %245 {offsets = [4, 0], sizes = [1, 40], strides = [1, 1]} : vector<6x40xf32> to vector<1x40xf32>
    %cst_150 = arith.constant dense<0.000000e+00> : vector<16xf32>
    %466 = vector.multi_reduction <add>, %463, %cst_150 [1] : vector<16x40xf32> to vector<16xf32>
    %467 = vector.shape_cast %466 : vector<16xf32> to vector<16x1xf32>
    %cst_151 = arith.constant 4.000000e+01 : f32
    %468 = vector.broadcast %cst_151 : f32 to vector<16x1xf32>
    %469 = arith.divf %467, %468 : vector<16x1xf32>
    %470 = vector.broadcast %469 : vector<16x1xf32> to vector<16x40xf32>
    %471 = arith.subf %463, %470 : vector<16x40xf32>
    %472 = arith.mulf %471, %471 : vector<16x40xf32>
    %cst_152 = arith.constant dense<0.000000e+00> : vector<16xf32>
    %473 = vector.multi_reduction <add>, %472, %cst_152 [1] : vector<16x40xf32> to vector<16xf32>
    %474 = vector.shape_cast %473 : vector<16xf32> to vector<16x1xf32>
    %cst_153 = arith.constant 4.000000e+01 : f32
    %475 = vector.broadcast %cst_153 : f32 to vector<16x1xf32>
    %476 = arith.divf %474, %475 : vector<16x1xf32>
    %cst_154 = arith.constant 9.99999974E-6 : f32
    %477 = vector.broadcast %cst_154 : f32 to vector<16x1xf32>
    %478 = arith.addf %476, %477 : vector<16x1xf32>
    %479 = math.rsqrt %478 : vector<16x1xf32>
    %480 = vector.broadcast %479 : vector<16x1xf32> to vector<16x40xf32>
    %481 = arith.mulf %471, %480 : vector<16x40xf32>
    %482 = vector.broadcast %464 : vector<1x40xf32> to vector<16x40xf32>
    %483 = arith.mulf %481, %482 : vector<16x40xf32>
    %484 = vector.broadcast %465 : vector<1x40xf32> to vector<16x40xf32>
    %485 = arith.addf %483, %484 : vector<16x40xf32>
    %486 = vector.shape_cast %485 : vector<16x40xf32> to vector<2x8x40xf32>
    %c0_155 = arith.constant 0 : index
    %c0_156 = arith.constant 0 : index
    %c0_157 = arith.constant 0 : index
    %487 = vector.load %arg10[%c0_155, %c0_156, %c0_157] : memref<8x2x40xf32, #tpu.memory_space<vmem>>, vector<8x2x40xf32>
    %488 = vector.extract_strided_slice %487 {offsets = [0, 0, 0], sizes = [8, 1, 40], strides = [1, 1, 1]} : vector<8x2x40xf32> to vector<8x1x40xf32>
    %489 = vector.shape_cast %488 : vector<8x1x40xf32> to vector<8x40xf32>
    %490 = vector.shape_cast %489 : vector<8x40xf32> to vector<1x8x40xf32>
    %491 = vector.broadcast %490 : vector<1x8x40xf32> to vector<2x8x40xf32>
    %492 = arith.mulf %486, %491 : vector<2x8x40xf32>
    %cst_158 = arith.constant dense<0.000000e+00> : vector<2x8xf32>
    %493 = vector.multi_reduction <add>, %492, %cst_158 [2] : vector<2x8x40xf32> to vector<2x8xf32>
    %cst_159 = arith.constant dense<0.000000e+00> : vector<2xf32>
    %494 = vector.multi_reduction <add>, %493, %cst_159 [1] : vector<2x8xf32> to vector<2xf32>
    %495 = vector.shape_cast %494 : vector<2xf32> to vector<2x1xf32>
    %496 = vector.extract_strided_slice %487 {offsets = [0, 1, 0], sizes = [8, 1, 40], strides = [1, 1, 1]} : vector<8x2x40xf32> to vector<8x1x40xf32>
    %497 = vector.shape_cast %496 : vector<8x1x40xf32> to vector<8x40xf32>
    %498 = vector.shape_cast %497 : vector<8x40xf32> to vector<1x8x40xf32>
    %499 = vector.broadcast %498 : vector<1x8x40xf32> to vector<2x8x40xf32>
    %500 = arith.mulf %486, %499 : vector<2x8x40xf32>
    %cst_160 = arith.constant dense<0.000000e+00> : vector<2x8xf32>
    %501 = vector.multi_reduction <add>, %500, %cst_160 [2] : vector<2x8x40xf32> to vector<2x8xf32>
    %cst_161 = arith.constant dense<0.000000e+00> : vector<2xf32>
    %502 = vector.multi_reduction <add>, %501, %cst_161 [1] : vector<2x8xf32> to vector<2xf32>
    %503 = vector.shape_cast %502 : vector<2xf32> to vector<2x1xf32>
    %504 = tpu.concatenate %495, %503 in 1 : vector<2x1xf32>, vector<2x1xf32> -> vector<2x2xf32>
    %c0_162 = arith.constant 0 : index
    %c0_163 = arith.constant 0 : index
    %505 = vector.load %arg11[%c0_162, %c0_163] : memref<1x2xf32, #tpu.memory_space<vmem>>, vector<1x2xf32>
    %506 = vector.broadcast %505 : vector<1x2xf32> to vector<2x2xf32>
    %507 = arith.addf %504, %506 : vector<2x2xf32>
    %c0_164 = arith.constant 0 : index
    %c0_165 = arith.constant 0 : index
    %508 = vector.load %arg12[%c0_164, %c0_165] : memref<2x2xf32, #tpu.memory_space<vmem>>, vector<2x2xf32>
    tpu.vector_store %arg12[%c0_164, %c0_165], %507 {strides = array<i32>} : memref<2x2xf32, #tpu.memory_space<vmem>>, vector<2x2xf32>,
    return
  }
  func.func @transform_0(%arg0: i32) -> (i32, i32) {
    %c0_i32 = arith.constant 0 : i32
    %c0_i32_0 = arith.constant 0 : i32
    %c0_i32_1 = arith.constant 0 : i32
    return %c0_i32, %c0_i32_0 : i32, i32
  }
  func.func @transform_1(%arg0: i32) -> (i32, i32) {
    %c0_i32 = arith.constant 0 : i32
    %c0_i32_0 = arith.constant 0 : i32
    %c0_i32_1 = arith.constant 0 : i32
    return %c0_i32, %c0_i32_0 : i32, i32
  }
  func.func @transform_2(%arg0: i32) -> (i32, i32, i32) {
    %c0_i32 = arith.constant 0 : i32
    %c0_i32_0 = arith.constant 0 : i32
    %c0_i32_1 = arith.constant 0 : i32
    %c0_i32_2 = arith.constant 0 : i32
    return %c0_i32, %c0_i32_0, %c0_i32_1 : i32, i32, i32
  }
  func.func @transform_3(%arg0: i32) -> (i32, i32, i32) {
    %c0_i32 = arith.constant 0 : i32
    %c0_i32_0 = arith.constant 0 : i32
    %c0_i32_1 = arith.constant 0 : i32
    %c0_i32_2 = arith.constant 0 : i32
    return %c0_i32, %c0_i32_0, %c0_i32_1 : i32, i32, i32
  }
  func.func @transform_4(%arg0: i32) -> (i32, i32, i32) {
    %c0_i32 = arith.constant 0 : i32
    %c0_i32_0 = arith.constant 0 : i32
    %c0_i32_1 = arith.constant 0 : i32
    %c0_i32_2 = arith.constant 0 : i32
    return %c0_i32, %c0_i32_0, %c0_i32_1 : i32, i32, i32
  }
  func.func @transform_5(%arg0: i32) -> (i32, i32, i32) {
    %c0_i32 = arith.constant 0 : i32
    %c0_i32_0 = arith.constant 0 : i32
    %c0_i32_1 = arith.constant 0 : i32
    %c0_i32_2 = arith.constant 0 : i32
    return %c0_i32, %c0_i32_0, %c0_i32_1 : i32, i32, i32
  }
  func.func @transform_6(%arg0: i32) -> (i32, i32, i32) {
    %c0_i32 = arith.constant 0 : i32
    %c0_i32_0 = arith.constant 0 : i32
    %c0_i32_1 = arith.constant 0 : i32
    %c0_i32_2 = arith.constant 0 : i32
    return %c0_i32, %c0_i32_0, %c0_i32_1 : i32, i32, i32
  }
  func.func @transform_7(%arg0: i32) -> (i32, i32, i32) {
    %c0_i32 = arith.constant 0 : i32
    %c0_i32_0 = arith.constant 0 : i32
    %c0_i32_1 = arith.constant 0 : i32
    %c0_i32_2 = arith.constant 0 : i32
    return %c0_i32, %c0_i32_0, %c0_i32_1 : i32, i32, i32
  }
  func.func @transform_8(%arg0: i32) -> (i32, i32, i32) {
    %c0_i32 = arith.constant 0 : i32
    %c0_i32_0 = arith.constant 0 : i32
    %c0_i32_1 = arith.constant 0 : i32
    %c0_i32_2 = arith.constant 0 : i32
    return %c0_i32, %c0_i32_0, %c0_i32_1 : i32, i32, i32
  }
  func.func @transform_9(%arg0: i32) -> (i32, i32, i32) {
    %c0_i32 = arith.constant 0 : i32
    %c0_i32_0 = arith.constant 0 : i32
    %c0_i32_1 = arith.constant 0 : i32
    %c0_i32_2 = arith.constant 0 : i32
    return %c0_i32, %c0_i32_0, %c0_i32_1 : i32, i32, i32
  }
  func.func @transform_10(%arg0: i32) -> (i32, i32) {
    %c0_i32 = arith.constant 0 : i32
    %c0_i32_0 = arith.constant 0 : i32
    %c0_i32_1 = arith.constant 0 : i32
    return %c0_i32, %c0_i32_0 : i32, i32
  }
  func.func @transform_11(%arg0: i32) -> (i32, i32) {
    %c0_i32 = arith.constant 0 : i32
    %c0_i32_0 = arith.constant 0 : i32
    %c0_i32_1 = arith.constant 0 : i32
    return %c0_i32, %c0_i32_0 : i32, i32
  }
}

</mosaic_0001>

<llo_original>
// kernel: transformer_forward.1
$region0: #{transformer_forward.1}
  #allocation0 [shape = 'u32[]', space=smem, size = 0x4, offset = 0x4, fixed_abs, tag = 'smem constant byte address 0x4 - core index']
  #allocation1 [shape = 'u32[72,128]{1,0:T(1,128)}', space=vmem, size = 0x9000, scoped, tag = 'internal scratch']
  %s0 = inlined_call_operand.vmem [shape: f32[16,40], index: 0, kind: input, shape index: {}]
  %s1 = inlined_call_operand.vmem [shape: f32[16,16], index: 1, kind: input, shape index: {}]
  %s2 = inlined_call_operand.vmem [shape: f32[2,40,120], index: 2, kind: input, shape index: {}]
  %s3 = inlined_call_operand.vmem [shape: f32[2,40,40], index: 3, kind: input, shape index: {}]
  %s4 = inlined_call_operand.vmem [shape: f32[2,40,64], index: 4, kind: input, shape index: {}]
  %s5 = inlined_call_operand.vmem [shape: f32[2,64,40], index: 5, kind: input, shape index: {}]
  %s6 = inlined_call_operand.vmem [shape: f32[2,1,120], index: 6, kind: input, shape index: {}]
  %s7 = inlined_call_operand.vmem [shape: f32[2,1,64], index: 7, kind: input, shape index: {}]
  %s8 = inlined_call_operand.vmem [shape: f32[2,6,40], index: 8, kind: input, shape index: {}]
  %s9 = inlined_call_operand.vmem [shape: f32[8,2,40], index: 9, kind: input, shape index: {}]
  %s10 = inlined_call_operand.vmem [shape: f32[1,2], index: 10, kind: input, shape index: {}]
  %s11 = inlined_call_operand.hbm [shape: f32[2,2], index: 11, kind: output, shape index: {}]
  %s12 = sld [smem:[#allocation0]]
  $region54: #{transformer_forward.1} parent=0
    _
  %s14 = ssub.s32 1, %s12
  %s15 = scalar_select 0, %s14, %s12
  $region1: #{transformer_forward.1} parent=0
    #allocation2 [shape = 'u8[1024]{0}', space=vmem, size = 0x400, scoped, tag = 'output window, operand 0, single buffered']
    #allocation3 [shape = 's32[1]{0}', space=sflag, size = 0x4, scoped, tag = 'scoped memory for transformer_forward.1']
    %16 = vsyncpa [#allocation3], 0
    // Predicated region
    $region2: #{transformer_forward.1} parent=1 // pred_check
      _
    $region3: #{transformer_forward.1} parent=1 // pred_check_branch
      %18 = sbr.rel (0) target = $region5
    $region4: #{transformer_forward.1} parent=1 // pred_region
      _
    $region5: #{transformer_forward.1} parent=1 // pred_fallthru
      _
    // Predicated region
    $region6: #{transformer_forward.1} parent=1 // pred_check
      _
    $region7: #{transformer_forward.1} parent=1 // pred_check_branch
      %20 = sbr.rel (0) target = $region9
    $region8: #{transformer_forward.1} parent=1 // pred_region
      _
    $region9: #{transformer_forward.1} parent=1 // pred_fallthru
      _
    // Predicated region
    $region10: #{transformer_forward.1} parent=1 // pred_check
      _
    $region11: #{transformer_forward.1} parent=1 // pred_check_branch
      %22 = sbr.rel (0) target = $region13
    $region12: #{transformer_forward.1} parent=1 // pred_region
      _
    $region13: #{transformer_forward.1} parent=1 // pred_fallthru
      _
    // Predicated region
    $region14: #{transformer_forward.1} parent=1 // pred_check
      _
    $region15: #{transformer_forward.1} parent=1 // pred_check_branch
      %24 = sbr.rel (0) target = $region17
    $region16: #{transformer_forward.1} parent=1 // pred_region
      _
    $region17: #{transformer_forward.1} parent=1 // pred_fallthru
      _
    // Predicated region
    $region18: #{transformer_forward.1} parent=1 // pred_check
      _
    $region19: #{transformer_forward.1} parent=1 // pred_check_branch
      %26 = sbr.rel (0) target = $region21
    $region20: #{transformer_forward.1} parent=1 // pred_region
      _
    $region21: #{transformer_forward.1} parent=1 // pred_fallthru
      _
    // Predicated region
    $region22: #{transformer_forward.1} parent=1 // pred_check
      _
    $region23: #{transformer_forward.1} parent=1 // pred_check_branch
      %28 = sbr.rel (0) target = $region25
    $region24: #{transformer_forward.1} parent=1 // pred_region
      _
    $region25: #{transformer_forward.1} parent=1 // pred_fallthru
      _
    // Predicated region
    $region26: #{transformer_forward.1} parent=1 // pred_check
      _
    $region27: #{transformer_forward.1} parent=1 // pred_check_branch
      %30 = sbr.rel (0) target = $region29
    $region28: #{transformer_forward.1} parent=1 // pred_region
      _
    $region29: #{transformer_forward.1} parent=1 // pred_fallthru
      _
    // Predicated region
    $region30: #{transformer_forward.1} parent=1 // pred_check
      _
    $region31: #{transformer_forward.1} parent=1 // pred_check_branch
      %32 = sbr.rel (0) target = $region33
    $region32: #{transformer_forward.1} parent=1 // pred_region
      _
    $region33: #{transformer_forward.1} parent=1 // pred_fallthru
      _
    // Predicated region
    $region34: #{transformer_forward.1} parent=1 // pred_check
      _
    $region35: #{transformer_forward.1} parent=1 // pred_check_branch
      %34 = sbr.rel (0) target = $region37
    $region36: #{transformer_forward.1} parent=1 // pred_region
      _
    $region37: #{transformer_forward.1} parent=1 // pred_fallthru
      _
    // Predicated region
    $region38: #{transformer_forward.1} parent=1 // pred_check
      _
    $region39: #{transformer_forward.1} parent=1 // pred_check_branch
      %36 = sbr.rel (0) target = $region41
    $region40: #{transformer_forward.1} parent=1 // pred_region
      _
    $region41: #{transformer_forward.1} parent=1 // pred_fallthru
      _
    // Predicated region
    $region42: #{transformer_forward.1} parent=1 // pred_check
      _
    $region43: #{transformer_forward.1} parent=1 // pred_check_branch
      %38 = sbr.rel (0) target = $region45
    $region44: #{transformer_forward.1} parent=1 // pred_region
      _
    $region45: #{transformer_forward.1} parent=1 // pred_fallthru
      _
    %v39 = vld [vmem:[%s0] sm:$0xff]
    %v40 = vld [vmem:[%s0 + $0x8] sm:$0xff]
    %v41 = vld [vmem:[%s1] sm:$0xff]
    %v42 = vld [vmem:[%s1 + $0x8] sm:$0xff]
    %v43 = vld [vmem:[%s8] sm:$0x3f]
    %v44 = vld [vmem:[%s2] sm:$0xff]
    %v45 = vld [vmem:[%s2 + $0x8] sm:$0xff]
    %v46 = vld [vmem:[%s2 + $0x10] sm:$0xff]
    %v47 = vld [vmem:[%s2 + $0x18] sm:$0xff]
    %v48 = vld [vmem:[%s2 + $0x20] sm:$0xff]
    %v49 = vld [vmem:[%s6] sm:$0x1]
    %v51 = vperm.slane %v49, 0
    %vm53 = vcmask 326656
    %v55 = vsel %vm53, %v39, 0
    %v58 = vsel %vm53, %v40, 0
    %60 = vmatpush.msra.mxu0 0.0
    %61 = vmatpush.msra.mxu0 0.0
    %62 = vmatpush.msra.mxu0 0.0
    %63 = vmatpush.msra.mxu0 0.0
    %64 = vmatpush.msra.mxu0 0.0
    %65 = vmatpush.msra.mxu0 0.0
    %66 = vmatpush.msra.mxu0 0.0
    %67 = vmatpush.msra.mxu0 0.0
    %68 = vmatpush.msra.mxu0 0.0
    %69 = vmatpush.msra.mxu0 0.0
    %70 = vmatpush.msra.mxu0 0.0
    %71 = vmatpush.msra.mxu0 %v48
    %72 = vmatpush.msra.mxu0 %v47
    %73 = vmatpush.msra.mxu0 %v46
    %74 = vmatpush.msra.mxu0 %v45
    %75 = vmatpush.msra.mxu0 %v44
    %76 = vmatmul.f32.gmra.mxu0 %v55
    %v77 = vpop.f32.mrf.mxu0
    %v78 = vadd.f32 %v51, %v77
    %79 = vmatmul.f32.gmra.mxu0 %v58
    %v80 = vpop.f32.mrf.mxu0
    %v81 = vadd.f32 %v51, %v80
    %82 = vdwg.mxu0
    %v83 = vmul.f32 %v78, 0.5
    %v84 = vmul.f32 %v81, 0.5
    %87 = vrot.lane.b32.xlu0 %v78, 88
    %v88 = vpop.permute.xlu0 %87
    %89 = vrot.lane.b32.xlu0 %v81, 88
    %v90 = vpop.permute.xlu0 %89
    %vm91 = vcmask 31744
    %v93 = vsel %vm91, %v83, 0
    %v96 = vsel %vm91, %v84, 0
    %v98 = vsel %vm91, %v88, 0
    %v100 = vsel %vm91, %v90, 0
    %102 = vmatpush.xpose.msra.mxu0 0.0
    %103 = vmatpush.xpose.msra.mxu0 0.0
    %104 = vmatpush.xpose.msra.mxu0 0.0
    %105 = vmatpush.xpose.msra.mxu0 0.0
    %106 = vmatpush.xpose.msra.mxu0 0.0
    %107 = vmatpush.xpose.msra.mxu0 0.0
    %108 = vmatpush.xpose.msra.mxu0 0.0
    %109 = vmatpush.xpose.msra.mxu0 0.0
    %110 = vmatpush.xpose.msra.mxu0 0.0
    %111 = vmatpush.xpose.msra.mxu0 0.0
    %112 = vmatpush.xpose.msra.mxu0 0.0
    %113 = vmatpush.xpose.msra.mxu0 0.0
    %114 = vmatpush.xpose.msra.mxu0 0.0
    %115 = vmatpush.xpose.msra.mxu0 0.0
    %116 = vmatpush.xpose.msra.mxu0 %v100
    %117 = vmatpush.xpose.msra.mxu0 %v98
    %118 = vmatmul.f32.gmra.mxu0 %v93
    %v119 = vpop.f32.mrf.mxu0
    %v120 = vadd.f32 %v41, %v119
    %121 = vmatmul.f32.gmra.mxu0 %v96
    %v122 = vpop.f32.mrf.mxu0
    %v123 = vadd.f32 %v42, %v122
    %124 = vdwg.mxu0
    %vm125 = vcmask 130048
    %v126 = vsel %vm125, %v120, -inf
    %127 = vmax.xlane.f32.xlu0 %v126
    %v128 = vpop.xlane.xlu0 %127
    %v129 = vsel %vm125, %v123, -inf
    %130 = vmax.xlane.f32.xlu0 %v129
    %v131 = vpop.xlane.xlu0 %130
    %v132 = vsub.f32 %v120, %v128
    %v133 = vsub.f32 %v123, %v131
    %v134 = vmul.f32 %v132, 1.442695
    %v135 = vpow.pop %v134
    %v136 = vmul.f32 %v133, 1.442695
    %v137 = vpow.pop %v136
    %v138 = vsel %vm125, %v135, 0.0
    %139 = vadd.xlane.f32.xlu0 %v138
    %v140 = vpop.xlane.xlu0 %139
    %v141 = vsel %vm125, %v137, 0.0
    %142 = vadd.xlane.f32.xlu0 %v141
    %v143 = vpop.xlane.xlu0 %142
    %v144 = vrcp.pop %v140
    %v145 = vrcp.pop %v143
    %v146 = vmul.f32 %v135, %v144
    %v147 = vmul.f32 %v137, %v145
    %148 = vrot.lane.b32.xlu0 %v78, 48
    %v149 = vpop.permute.xlu0 %148
    %150 = vrot.lane.b32.xlu0 %v81, 48
    %v151 = vpop.permute.xlu0 %150
    %v155 = vsel %vm125, %v146, 0
    %v158 = vsel %vm125, %v147, 0
    %160 = vmatpush.msra.mxu0 0.0
    %161 = vmatpush.msra.mxu0 0.0
    %162 = vmatpush.msra.mxu0 0.0
    %163 = vmatpush.msra.mxu0 0.0
    %164 = vmatpush.msra.mxu0 0.0
    %165 = vmatpush.msra.mxu0 0.0
    %166 = vmatpush.msra.mxu0 0.0
    %167 = vmatpush.msra.mxu0 0.0
    %168 = vmatpush.msra.mxu0 0.0
    %169 = vmatpush.msra.mxu0 0.0
    %170 = vmatpush.msra.mxu0 0.0
    %171 = vmatpush.msra.mxu0 0.0
    %172 = vmatpush.msra.mxu0 0.0
    %173 = vmatpush.msra.mxu0 0.0
    %174 = vmatpush.msra.mxu0 %v151
    %175 = vmatpush.msra.mxu0 %v149
    %176 = vmatmul.f32.gmra.mxu0 %v155
    %v177 = vpop.f32.mrf.mxu0
    %v178 = vadd.f32 0.0, %v177
    %179 = vmatmul.f32.gmra.mxu0 %v158
    %v180 = vpop.f32.mrf.mxu0
    %v181 = vadd.f32 0.0, %v180
    %182 = vdwg.mxu0
    %183 = vrot.lane.b32.xlu0 %v83, 124
    %v184 = vpop.permute.xlu0 %183
    %185 = vrot.lane.b32.xlu0 %v84, 124
    %v186 = vpop.permute.xlu0 %185
    %187 = vrot.lane.b32.xlu0 %v78, 84
    %v188 = vpop.permute.xlu0 %187
    %189 = vrot.lane.b32.xlu0 %v81, 84
    %v190 = vpop.permute.xlu0 %189
    %v191 = vsel %vm91, %v184, 0
    %v193 = vsel %vm91, %v186, 0
    %v195 = vsel %vm91, %v188, 0
    %v197 = vsel %vm91, %v190, 0
    %199 = vmatpush.xpose.msra.mxu0 0.0
    %200 = vmatpush.xpose.msra.mxu0 0.0
    %201 = vmatpush.xpose.msra.mxu0 0.0
    %202 = vmatpush.xpose.msra.mxu0 0.0
    %203 = vmatpush.xpose.msra.mxu0 0.0
    %204 = vmatpush.xpose.msra.mxu0 0.0
    %205 = vmatpush.xpose.msra.mxu0 0.0
    %206 = vmatpush.xpose.msra.mxu0 0.0
    %207 = vmatpush.xpose.msra.mxu0 0.0
    %208 = vmatpush.xpose.msra.mxu0 0.0
    %209 = vmatpush.xpose.msra.mxu0 0.0
    %210 = vmatpush.xpose.msra.mxu0 0.0
    %211 = vmatpush.xpose.msra.mxu0 0.0
    %212 = vmatpush.xpose.msra.mxu0 0.0
    %213 = vmatpush.xpose.msra.mxu0 %v197
    %214 = vmatpush.xpose.msra.mxu0 %v195
    %215 = vmatmul.f32.gmra.mxu0 %v191
    %v216 = vpop.f32.mrf.mxu0
    %v217 = vadd.f32 %v41, %v216
    %218 = vmatmul.f32.gmra.mxu0 %v193
    %v219 = vpop.f32.mrf.mxu0
    %v220 = vadd.f32 %v42, %v219
    %221 = vdwg.mxu0
    %v222 = vsel %vm125, %v217, -inf
    %223 = vmax.xlane.f32.xlu0 %v222
    %v224 = vpop.xlane.xlu0 %223
    %v225 = vsel %vm125, %v220, -inf
    %226 = vmax.xlane.f32.xlu0 %v225
    %v227 = vpop.xlane.xlu0 %226
    %v228 = vsub.f32 %v217, %v224
    %v229 = vsub.f32 %v220, %v227
    %v230 = vmul.f32 %v228, 1.442695
    %v231 = vpow.pop %v230
    %v232 = vmul.f32 %v229, 1.442695
    %v233 = vpow.pop %v232
    %v234 = vsel %vm125, %v231, 0.0
    %235 = vadd.xlane.f32.xlu0 %v234
    %v236 = vpop.xlane.xlu0 %235
    %v237 = vsel %vm125, %v233, 0.0
    %238 = vadd.xlane.f32.xlu0 %v237
    %v239 = vpop.xlane.xlu0 %238
    %v240 = vrcp.pop %v236
    %v241 = vrcp.pop %v239
    %v242 = vmul.f32 %v231, %v240
    %v243 = vmul.f32 %v233, %v241
    %244 = vrot.lane.b32.xlu0 %v78, 44
    %v245 = vpop.permute.xlu0 %244
    %246 = vrot.lane.b32.xlu0 %v81, 44
    %v247 = vpop.permute.xlu0 %246
    %v251 = vsel %vm125, %v242, 0
    %v254 = vsel %vm125, %v243, 0
    %256 = vmatpush.msra.mxu0 0.0
    %257 = vmatpush.msra.mxu0 0.0
    %258 = vmatpush.msra.mxu0 0.0
    %259 = vmatpush.msra.mxu0 0.0
    %260 = vmatpush.msra.mxu0 0.0
    %261 = vmatpush.msra.mxu0 0.0
    %262 = vmatpush.msra.mxu0 0.0
    %263 = vmatpush.msra.mxu0 0.0
    %264 = vmatpush.msra.mxu0 0.0
    %265 = vmatpush.msra.mxu0 0.0
    %266 = vmatpush.msra.mxu0 0.0
    %267 = vmatpush.msra.mxu0 0.0
    %268 = vmatpush.msra.mxu0 0.0
    %269 = vmatpush.msra.mxu0 0.0
    %270 = vmatpush.msra.mxu0 %v247
    %271 = vmatpush.msra.mxu0 %v245
    %272 = vmatmul.f32.gmra.mxu0 %v251
    %v273 = vpop.f32.mrf.mxu0
    %v274 = vadd.f32 0.0, %v273
    %275 = vmatmul.f32.gmra.mxu0 %v254
    %v276 = vpop.f32.mrf.mxu0
    %v277 = vadd.f32 0.0, %v276
    %278 = vdwg.mxu0
    %279 = vrot.lane.b32.xlu0 %v83, 120
    %v280 = vpop.permute.xlu0 %279
    %281 = vrot.lane.b32.xlu0 %v84, 120
    %v282 = vpop.permute.xlu0 %281
    %283 = vrot.lane.b32.xlu0 %v78, 80
    %v284 = vpop.permute.xlu0 %283
    %285 = vrot.lane.b32.xlu0 %v81, 80
    %v286 = vpop.permute.xlu0 %285
    %v287 = vsel %vm91, %v280, 0
    %v289 = vsel %vm91, %v282, 0
    %v291 = vsel %vm91, %v284, 0
    %v293 = vsel %vm91, %v286, 0
    %295 = vmatpush.xpose.msra.mxu0 0.0
    %296 = vmatpush.xpose.msra.mxu0 0.0
    %297 = vmatpush.xpose.msra.mxu0 0.0
    %298 = vmatpush.xpose.msra.mxu0 0.0
    %299 = vmatpush.xpose.msra.mxu0 0.0
    %300 = vmatpush.xpose.msra.mxu0 0.0
    %301 = vmatpush.xpose.msra.mxu0 0.0
    %302 = vmatpush.xpose.msra.mxu0 0.0
    %303 = vmatpush.xpose.msra.mxu0 0.0
    %304 = vmatpush.xpose.msra.mxu0 0.0
    %305 = vmatpush.xpose.msra.mxu0 0.0
    %306 = vmatpush.xpose.msra.mxu0 0.0
    %307 = vmatpush.xpose.msra.mxu0 0.0
    %308 = vmatpush.xpose.msra.mxu0 0.0
    %309 = vmatpush.xpose.msra.mxu0 %v293
    %310 = vmatpush.xpose.msra.mxu0 %v291
    %311 = vmatmul.f32.gmra.mxu0 %v287
    %v312 = vpop.f32.mrf.mxu0
    %v313 = vadd.f32 %v41, %v312
    %314 = vmatmul.f32.gmra.mxu0 %v289
    %v315 = vpop.f32.mrf.mxu0
    %v316 = vadd.f32 %v42, %v315
    %317 = vdwg.mxu0
    %v318 = vsel %vm125, %v313, -inf
    %319 = vmax.xlane.f32.xlu0 %v318
    %v320 = vpop.xlane.xlu0 %319
    %v321 = vsel %vm125, %v316, -inf
    %322 = vmax.xlane.f32.xlu0 %v321
    %v323 = vpop.xlane.xlu0 %322
    %v324 = vsub.f32 %v313, %v320
    %v325 = vsub.f32 %v316, %v323
    %v326 = vmul.f32 %v324, 1.442695
    %v327 = vpow.pop %v326
    %v328 = vmul.f32 %v325, 1.442695
    %v329 = vpow.pop %v328
    %v330 = vsel %vm125, %v327, 0.0
    %331 = vadd.xlane.f32.xlu0 %v330
    %v332 = vpop.xlane.xlu0 %331
    %v333 = vsel %vm125, %v329, 0.0
    %334 = vadd.xlane.f32.xlu0 %v333
    %v335 = vpop.xlane.xlu0 %334
    %v336 = vrcp.pop %v332
    %v337 = vrcp.pop %v335
    %v338 = vmul.f32 %v327, %v336
    %v339 = vmul.f32 %v329, %v337
    %340 = vrot.lane.b32.xlu0 %v78, 40
    %v341 = vpop.permute.xlu0 %340
    %342 = vrot.lane.b32.xlu0 %v81, 40
    %v343 = vpop.permute.xlu0 %342
    %v347 = vsel %vm125, %v338, 0
    %v350 = vsel %vm125, %v339, 0
    %352 = vmatpush.msra.mxu0 0.0
    %353 = vmatpush.msra.mxu0 0.0
    %354 = vmatpush.msra.mxu0 0.0
    %355 = vmatpush.msra.mxu0 0.0
    %356 = vmatpush.msra.mxu0 0.0
    %357 = vmatpush.msra.mxu0 0.0
    %358 = vmatpush.msra.mxu0 0.0
    %359 = vmatpush.msra.mxu0 0.0
    %360 = vmatpush.msra.mxu0 0.0
    %361 = vmatpush.msra.mxu0 0.0
    %362 = vmatpush.msra.mxu0 0.0
    %363 = vmatpush.msra.mxu0 0.0
    %364 = vmatpush.msra.mxu0 0.0
    %365 = vmatpush.msra.mxu0 0.0
    %366 = vmatpush.msra.mxu0 %v343
    %367 = vmatpush.msra.mxu0 %v341
    %368 = vmatmul.f32.gmra.mxu0 %v347
    %v369 = vpop.f32.mrf.mxu0
    %v370 = vadd.f32 0.0, %v369
    %371 = vmatmul.f32.gmra.mxu0 %v350
    %v372 = vpop.f32.mrf.mxu0
    %v373 = vadd.f32 0.0, %v372
    %374 = vdwg.mxu0
    %375 = vrot.lane.b32.xlu0 %v83, 116
    %v376 = vpop.permute.xlu0 %375
    %377 = vrot.lane.b32.xlu0 %v84, 116
    %v378 = vpop.permute.xlu0 %377
    %379 = vrot.lane.b32.xlu0 %v78, 76
    %v380 = vpop.permute.xlu0 %379
    %381 = vrot.lane.b32.xlu0 %v81, 76
    %v382 = vpop.permute.xlu0 %381
    %v383 = vsel %vm91, %v376, 0
    %v385 = vsel %vm91, %v378, 0
    %v387 = vsel %vm91, %v380, 0
    %v389 = vsel %vm91, %v382, 0
    %391 = vmatpush.xpose.msra.mxu0 0.0
    %392 = vmatpush.xpose.msra.mxu0 0.0
    %393 = vmatpush.xpose.msra.mxu0 0.0
    %394 = vmatpush.xpose.msra.mxu0 0.0
    %395 = vmatpush.xpose.msra.mxu0 0.0
    %396 = vmatpush.xpose.msra.mxu0 0.0
    %397 = vmatpush.xpose.msra.mxu0 0.0
    %398 = vmatpush.xpose.msra.mxu0 0.0
    %399 = vmatpush.xpose.msra.mxu0 0.0
    %400 = vmatpush.xpose.msra.mxu0 0.0
    %401 = vmatpush.xpose.msra.mxu0 0.0
    %402 = vmatpush.xpose.msra.mxu0 0.0
    %403 = vmatpush.xpose.msra.mxu0 0.0
    %404 = vmatpush.xpose.msra.mxu0 0.0
    %405 = vmatpush.xpose.msra.mxu0 %v389
    %406 = vmatpush.xpose.msra.mxu0 %v387
    %407 = vmatmul.f32.gmra.mxu0 %v383
    %v408 = vpop.f32.mrf.mxu0
    %v409 = vadd.f32 %v41, %v408
    %410 = vmatmul.f32.gmra.mxu0 %v385
    %v411 = vpop.f32.mrf.mxu0
    %v412 = vadd.f32 %v42, %v411
    %413 = vdwg.mxu0
    %v414 = vsel %vm125, %v409, -inf
    %415 = vmax.xlane.f32.xlu0 %v414
    %v416 = vpop.xlane.xlu0 %415
    %v417 = vsel %vm125, %v412, -inf
    %418 = vmax.xlane.f32.xlu0 %v417
    %v419 = vpop.xlane.xlu0 %418
    %v420 = vsub.f32 %v409, %v416
    %v421 = vsub.f32 %v412, %v419
    %v422 = vmul.f32 %v420, 1.442695
    %v423 = vpow.pop %v422
    %v424 = vmul.f32 %v421, 1.442695
    %v425 = vpow.pop %v424
    %v426 = vsel %vm125, %v423, 0.0
    %427 = vadd.xlane.f32.xlu0 %v426
    %v428 = vpop.xlane.xlu0 %427
    %v429 = vsel %vm125, %v425, 0.0
    %430 = vadd.xlane.f32.xlu0 %v429
    %v431 = vpop.xlane.xlu0 %430
    %v432 = vrcp.pop %v428
    %v433 = vrcp.pop %v431
    %v434 = vmul.f32 %v423, %v432
    %v435 = vmul.f32 %v425, %v433
    %436 = vrot.lane.b32.xlu0 %v78, 36
    %v437 = vpop.permute.xlu0 %436
    %438 = vrot.lane.b32.xlu0 %v81, 36
    %v439 = vpop.permute.xlu0 %438
    %v443 = vsel %vm125, %v434, 0
    %v446 = vsel %vm125, %v435, 0
    %448 = vmatpush.msra.mxu0 0.0
    %449 = vmatpush.msra.mxu0 0.0
    %450 = vmatpush.msra.mxu0 0.0
    %451 = vmatpush.msra.mxu0 0.0
    %452 = vmatpush.msra.mxu0 0.0
    %453 = vmatpush.msra.mxu0 0.0
    %454 = vmatpush.msra.mxu0 0.0
    %455 = vmatpush.msra.mxu0 0.0
    %456 = vmatpush.msra.mxu0 0.0
    %457 = vmatpush.msra.mxu0 0.0
    %458 = vmatpush.msra.mxu0 0.0
    %459 = vmatpush.msra.mxu0 0.0
    %460 = vmatpush.msra.mxu0 0.0
    %461 = vmatpush.msra.mxu0 0.0
    %462 = vmatpush.msra.mxu0 %v439
    %463 = vmatpush.msra.mxu0 %v437
    %464 = vmatmul.f32.gmra.mxu0 %v443
    %v465 = vpop.f32.mrf.mxu0
    %v466 = vadd.f32 0.0, %v465
    %467 = vmatmul.f32.gmra.mxu0 %v446
    %v468 = vpop.f32.mrf.mxu0
    %v469 = vadd.f32 0.0, %v468
    %470 = vdwg.mxu0
    %471 = vrot.lane.b32.xlu0 %v83, 112
    %v472 = vpop.permute.xlu0 %471
    %473 = vrot.lane.b32.xlu0 %v84, 112
    %v474 = vpop.permute.xlu0 %473
    %475 = vrot.lane.b32.xlu0 %v78, 72
    %v476 = vpop.permute.xlu0 %475
    %477 = vrot.lane.b32.xlu0 %v81, 72
    %v478 = vpop.permute.xlu0 %477
    %v479 = vsel %vm91, %v472, 0
    %v481 = vsel %vm91, %v474, 0
    %v483 = vsel %vm91, %v476, 0
    %v485 = vsel %vm91, %v478, 0
    %487 = vmatpush.xpose.msra.mxu0 0.0
    %488 = vmatpush.xpose.msra.mxu0 0.0
    %489 = vmatpush.xpose.msra.mxu0 0.0
    %490 = vmatpush.xpose.msra.mxu0 0.0
    %491 = vmatpush.xpose.msra.mxu0 0.0
    %492 = vmatpush.xpose.msra.mxu0 0.0
    %493 = vmatpush.xpose.msra.mxu0 0.0
    %494 = vmatpush.xpose.msra.mxu0 0.0
    %495 = vmatpush.xpose.msra.mxu0 0.0
    %496 = vmatpush.xpose.msra.mxu0 0.0
    %497 = vmatpush.xpose.msra.mxu0 0.0
    %498 = vmatpush.xpose.msra.mxu0 0.0
    %499 = vmatpush.xpose.msra.mxu0 0.0
    %500 = vmatpush.xpose.msra.mxu0 0.0
    %501 = vmatpush.xpose.msra.mxu0 %v485
    %502 = vmatpush.xpose.msra.mxu0 %v483
    %503 = vmatmul.f32.gmra.mxu0 %v479
    %v504 = vpop.f32.mrf.mxu0
    %v505 = vadd.f32 %v41, %v504
    %506 = vmatmul.f32.gmra.mxu0 %v481
    %v507 = vpop.f32.mrf.mxu0
    %v508 = vadd.f32 %v42, %v507
    %509 = vdwg.mxu0
    %v510 = vsel %vm125, %v505, -inf
    %511 = vmax.xlane.f32.xlu0 %v510
    %v512 = vpop.xlane.xlu0 %511
    %v513 = vsel %vm125, %v508, -inf
    %514 = vmax.xlane.f32.xlu0 %v513
    %v515 = vpop.xlane.xlu0 %514
    %v516 = vsub.f32 %v505, %v512
    %v517 = vsub.f32 %v508, %v515
    %v518 = vmul.f32 %v516, 1.442695
    %v519 = vpow.pop %v518
    %v520 = vmul.f32 %v517, 1.442695
    %v521 = vpow.pop %v520
    %v522 = vsel %vm125, %v519, 0.0
    %523 = vadd.xlane.f32.xlu0 %v522
    %v524 = vpop.xlane.xlu0 %523
    %v525 = vsel %vm125, %v521, 0.0
    %526 = vadd.xlane.f32.xlu0 %v525
    %v527 = vpop.xlane.xlu0 %526
    %v528 = vrcp.pop %v524
    %v529 = vrcp.pop %v527
    %v530 = vmul.f32 %v519, %v528
    %v531 = vmul.f32 %v521, %v529
    %532 = vrot.lane.b32.xlu0 %v78, 32
    %v533 = vpop.permute.xlu0 %532
    %534 = vrot.lane.b32.xlu0 %v81, 32
    %v535 = vpop.permute.xlu0 %534
    %v539 = vsel %vm125, %v530, 0
    %v542 = vsel %vm125, %v531, 0
    %544 = vmatpush.msra.mxu0 0.0
    %545 = vmatpush.msra.mxu0 0.0
    %546 = vmatpush.msra.mxu0 0.0
    %547 = vmatpush.msra.mxu0 0.0
    %548 = vmatpush.msra.mxu0 0.0
    %549 = vmatpush.msra.mxu0 0.0
    %550 = vmatpush.msra.mxu0 0.0
    %551 = vmatpush.msra.mxu0 0.0
    %552 = vmatpush.msra.mxu0 0.0
    %553 = vmatpush.msra.mxu0 0.0
    %554 = vmatpush.msra.mxu0 0.0
    %555 = vmatpush.msra.mxu0 0.0
    %556 = vmatpush.msra.mxu0 0.0
    %557 = vmatpush.msra.mxu0 0.0
    %558 = vmatpush.msra.mxu0 %v535
    %559 = vmatpush.msra.mxu0 %v533
    %560 = vmatmul.f32.gmra.mxu0 %v539
    %v561 = vpop.f32.mrf.mxu0
    %v562 = vadd.f32 0.0, %v561
    %563 = vmatmul.f32.gmra.mxu0 %v542
    %v564 = vpop.f32.mrf.mxu0
    %v565 = vadd.f32 0.0, %v564
    %566 = vdwg.mxu0
    %567 = vrot.lane.b32.xlu0 %v83, 108
    %v568 = vpop.permute.xlu0 %567
    %569 = vrot.lane.b32.xlu0 %v84, 108
    %v570 = vpop.permute.xlu0 %569
    %571 = vrot.lane.b32.xlu0 %v78, 68
    %v572 = vpop.permute.xlu0 %571
    %573 = vrot.lane.b32.xlu0 %v81, 68
    %v574 = vpop.permute.xlu0 %573
    %v575 = vsel %vm91, %v568, 0
    %v577 = vsel %vm91, %v570, 0
    %v579 = vsel %vm91, %v572, 0
    %v581 = vsel %vm91, %v574, 0
    %583 = vmatpush.xpose.msra.mxu0 0.0
    %584 = vmatpush.xpose.msra.mxu0 0.0
    %585 = vmatpush.xpose.msra.mxu0 0.0
    %586 = vmatpush.xpose.msra.mxu0 0.0
    %587 = vmatpush.xpose.msra.mxu0 0.0
    %588 = vmatpush.xpose.msra.mxu0 0.0
    %589 = vmatpush.xpose.msra.mxu0 0.0
    %590 = vmatpush.xpose.msra.mxu0 0.0
    %591 = vmatpush.xpose.msra.mxu0 0.0
    %592 = vmatpush.xpose.msra.mxu0 0.0
    %593 = vmatpush.xpose.msra.mxu0 0.0
    %594 = vmatpush.xpose.msra.mxu0 0.0
    %595 = vmatpush.xpose.msra.mxu0 0.0
    %596 = vmatpush.xpose.msra.mxu0 0.0
    %597 = vmatpush.xpose.msra.mxu0 %v581
    %598 = vmatpush.xpose.msra.mxu0 %v579
    %599 = vmatmul.f32.gmra.mxu0 %v575
    %v600 = vpop.f32.mrf.mxu0
    %v601 = vadd.f32 %v41, %v600
    %602 = vmatmul.f32.gmra.mxu0 %v577
    %v603 = vpop.f32.mrf.mxu0
    %v604 = vadd.f32 %v42, %v603
    %605 = vdwg.mxu0
    %v606 = vsel %vm125, %v601, -inf
    %607 = vmax.xlane.f32.xlu0 %v606
    %v608 = vpop.xlane.xlu0 %607
    %v609 = vsel %vm125, %v604, -inf
    %610 = vmax.xlane.f32.xlu0 %v609
    %v611 = vpop.xlane.xlu0 %610
    %v612 = vsub.f32 %v601, %v608
    %v613 = vsub.f32 %v604, %v611
    %v614 = vmul.f32 %v612, 1.442695
    %v615 = vpow.pop %v614
    %v616 = vmul.f32 %v613, 1.442695
    %v617 = vpow.pop %v616
    %v618 = vsel %vm125, %v615, 0.0
    %619 = vadd.xlane.f32.xlu0 %v618
    %v620 = vpop.xlane.xlu0 %619
    %v621 = vsel %vm125, %v617, 0.0
    %622 = vadd.xlane.f32.xlu0 %v621
    %v623 = vpop.xlane.xlu0 %622
    %v624 = vrcp.pop %v620
    %v625 = vrcp.pop %v623
    %v626 = vmul.f32 %v615, %v624
    %v627 = vmul.f32 %v617, %v625
    %628 = vrot.lane.b32.xlu0 %v78, 28
    %v629 = vpop.permute.xlu0 %628
    %630 = vrot.lane.b32.xlu0 %v81, 28
    %v631 = vpop.permute.xlu0 %630
    %v635 = vsel %vm125, %v626, 0
    %v638 = vsel %vm125, %v627, 0
    %640 = vmatpush.msra.mxu0 0.0
    %641 = vmatpush.msra.mxu0 0.0
    %642 = vmatpush.msra.mxu0 0.0
    %643 = vmatpush.msra.mxu0 0.0
    %644 = vmatpush.msra.mxu0 0.0
    %645 = vmatpush.msra.mxu0 0.0
    %646 = vmatpush.msra.mxu0 0.0
    %647 = vmatpush.msra.mxu0 0.0
    %648 = vmatpush.msra.mxu0 0.0
    %649 = vmatpush.msra.mxu0 0.0
    %650 = vmatpush.msra.mxu0 0.0
    %651 = vmatpush.msra.mxu0 0.0
    %652 = vmatpush.msra.mxu0 0.0
    %653 = vmatpush.msra.mxu0 0.0
    %654 = vmatpush.msra.mxu0 %v631
    %655 = vmatpush.msra.mxu0 %v629
    %656 = vmatmul.f32.gmra.mxu0 %v635
    %v657 = vpop.f32.mrf.mxu0
    %v658 = vadd.f32 0.0, %v657
    %659 = vmatmul.f32.gmra.mxu0 %v638
    %v660 = vpop.f32.mrf.mxu0
    %v661 = vadd.f32 0.0, %v660
    %662 = vdwg.mxu0
    %663 = vrot.lane.b32.xlu0 %v83, 104
    %v664 = vpop.permute.xlu0 %663
    %665 = vrot.lane.b32.xlu0 %v84, 104
    %v666 = vpop.permute.xlu0 %665
    %667 = vrot.lane.b32.xlu0 %v78, 64
    %v668 = vpop.permute.xlu0 %667
    %669 = vrot.lane.b32.xlu0 %v81, 64
    %v670 = vpop.permute.xlu0 %669
    %v671 = vsel %vm91, %v664, 0
    %v673 = vsel %vm91, %v666, 0
    %v675 = vsel %vm91, %v668, 0
    %v677 = vsel %vm91, %v670, 0
    %679 = vmatpush.xpose.msra.mxu0 0.0
    %680 = vmatpush.xpose.msra.mxu0 0.0
    %681 = vmatpush.xpose.msra.mxu0 0.0
    %682 = vmatpush.xpose.msra.mxu0 0.0
    %683 = vmatpush.xpose.msra.mxu0 0.0
    %684 = vmatpush.xpose.msra.mxu0 0.0
    %685 = vmatpush.xpose.msra.mxu0 0.0
    %686 = vmatpush.xpose.msra.mxu0 0.0
    %687 = vmatpush.xpose.msra.mxu0 0.0
    %688 = vmatpush.xpose.msra.mxu0 0.0
    %689 = vmatpush.xpose.msra.mxu0 0.0
    %690 = vmatpush.xpose.msra.mxu0 0.0
    %691 = vmatpush.xpose.msra.mxu0 0.0
    %692 = vmatpush.xpose.msra.mxu0 0.0
    %693 = vmatpush.xpose.msra.mxu0 %v677
    %694 = vmatpush.xpose.msra.mxu0 %v675
    %695 = vmatmul.f32.gmra.mxu0 %v671
    %v696 = vpop.f32.mrf.mxu0
    %v697 = vadd.f32 %v41, %v696
    %698 = vmatmul.f32.gmra.mxu0 %v673
    %v699 = vpop.f32.mrf.mxu0
    %v700 = vadd.f32 %v42, %v699
    %701 = vdwg.mxu0
    %v702 = vsel %vm125, %v697, -inf
    %703 = vmax.xlane.f32.xlu0 %v702
    %v704 = vpop.xlane.xlu0 %703
    %v705 = vsel %vm125, %v700, -inf
    %706 = vmax.xlane.f32.xlu0 %v705
    %v707 = vpop.xlane.xlu0 %706
    %v708 = vsub.f32 %v697, %v704
    %v709 = vsub.f32 %v700, %v707
    %v710 = vmul.f32 %v708, 1.442695
    %v711 = vpow.pop %v710
    %v712 = vmul.f32 %v709, 1.442695
    %v713 = vpow.pop %v712
    %v714 = vsel %vm125, %v711, 0.0
    %715 = vadd.xlane.f32.xlu0 %v714
    %v716 = vpop.xlane.xlu0 %715
    %v717 = vsel %vm125, %v713, 0.0
    %718 = vadd.xlane.f32.xlu0 %v717
    %v719 = vpop.xlane.xlu0 %718
    %v720 = vrcp.pop %v716
    %v721 = vrcp.pop %v719
    %v722 = vmul.f32 %v711, %v720
    %v723 = vmul.f32 %v713, %v721
    %724 = vrot.lane.b32.xlu0 %v78, 24
    %v725 = vpop.permute.xlu0 %724
    %726 = vrot.lane.b32.xlu0 %v81, 24
    %v727 = vpop.permute.xlu0 %726
    %v731 = vsel %vm125, %v722, 0
    %v734 = vsel %vm125, %v723, 0
    %736 = vmatpush.msra.mxu0 0.0
    %737 = vmatpush.msra.mxu0 0.0
    %738 = vmatpush.msra.mxu0 0.0
    %739 = vmatpush.msra.mxu0 0.0
    %740 = vmatpush.msra.mxu0 0.0
    %741 = vmatpush.msra.mxu0 0.0
    %742 = vmatpush.msra.mxu0 0.0
    %743 = vmatpush.msra.mxu0 0.0
    %744 = vmatpush.msra.mxu0 0.0
    %745 = vmatpush.msra.mxu0 0.0
    %746 = vmatpush.msra.mxu0 0.0
    %747 = vmatpush.msra.mxu0 0.0
    %748 = vmatpush.msra.mxu0 0.0
    %749 = vmatpush.msra.mxu0 0.0
    %750 = vmatpush.msra.mxu0 %v727
    %751 = vmatpush.msra.mxu0 %v725
    %752 = vmatmul.f32.gmra.mxu0 %v731
    %v753 = vpop.f32.mrf.mxu0
    %v754 = vadd.f32 0.0, %v753
    %755 = vmatmul.f32.gmra.mxu0 %v734
    %v756 = vpop.f32.mrf.mxu0
    %v757 = vadd.f32 0.0, %v756
    %758 = vdwg.mxu0
    %759 = vrot.lane.b32.xlu0 %v83, 100
    %v760 = vpop.permute.xlu0 %759
    %761 = vrot.lane.b32.xlu0 %v84, 100
    %v762 = vpop.permute.xlu0 %761
    %763 = vrot.lane.b32.xlu0 %v78, 60
    %v764 = vpop.permute.xlu0 %763
    %765 = vrot.lane.b32.xlu0 %v81, 60
    %v766 = vpop.permute.xlu0 %765
    %v767 = vsel %vm91, %v760, 0
    %v769 = vsel %vm91, %v762, 0
    %v771 = vsel %vm91, %v764, 0
    %v773 = vsel %vm91, %v766, 0
    %775 = vmatpush.xpose.msra.mxu0 0.0
    %776 = vmatpush.xpose.msra.mxu0 0.0
    %777 = vmatpush.xpose.msra.mxu0 0.0
    %778 = vmatpush.xpose.msra.mxu0 0.0
    %779 = vmatpush.xpose.msra.mxu0 0.0
    %780 = vmatpush.xpose.msra.mxu0 0.0
    %781 = vmatpush.xpose.msra.mxu0 0.0
    %782 = vmatpush.xpose.msra.mxu0 0.0
    %783 = vmatpush.xpose.msra.mxu0 0.0
    %784 = vmatpush.xpose.msra.mxu0 0.0
    %785 = vmatpush.xpose.msra.mxu0 0.0
    %786 = vmatpush.xpose.msra.mxu0 0.0
    %787 = vmatpush.xpose.msra.mxu0 0.0
    %788 = vmatpush.xpose.msra.mxu0 0.0
    %789 = vmatpush.xpose.msra.mxu0 %v773
    %790 = vmatpush.xpose.msra.mxu0 %v771
    %791 = vmatmul.f32.gmra.mxu0 %v767
    %v792 = vpop.f32.mrf.mxu0
    %v793 = vadd.f32 %v41, %v792
    %794 = vmatmul.f32.gmra.mxu0 %v769
    %v795 = vpop.f32.mrf.mxu0
    %v796 = vadd.f32 %v42, %v795
    %797 = vdwg.mxu0
    %v798 = vsel %vm125, %v793, -inf
    %799 = vmax.xlane.f32.xlu0 %v798
    %v800 = vpop.xlane.xlu0 %799
    %v801 = vsel %vm125, %v796, -inf
    %802 = vmax.xlane.f32.xlu0 %v801
    %v803 = vpop.xlane.xlu0 %802
    %v804 = vsub.f32 %v793, %v800
    %v805 = vsub.f32 %v796, %v803
    %v806 = vmul.f32 %v804, 1.442695
    %v807 = vpow.pop %v806
    %v808 = vmul.f32 %v805, 1.442695
    %v809 = vpow.pop %v808
    %v810 = vsel %vm125, %v807, 0.0
    %811 = vadd.xlane.f32.xlu0 %v810
    %v812 = vpop.xlane.xlu0 %811
    %v813 = vsel %vm125, %v809, 0.0
    %814 = vadd.xlane.f32.xlu0 %v813
    %v815 = vpop.xlane.xlu0 %814
    %v816 = vrcp.pop %v812
    %v817 = vrcp.pop %v815
    %v818 = vmul.f32 %v807, %v816
    %v819 = vmul.f32 %v809, %v817
    %820 = vrot.lane.b32.xlu0 %v78, 20
    %v821 = vpop.permute.xlu0 %820
    %822 = vrot.lane.b32.xlu0 %v81, 20
    %v823 = vpop.permute.xlu0 %822
    %v827 = vsel %vm125, %v818, 0
    %v830 = vsel %vm125, %v819, 0
    %832 = vmatpush.msra.mxu0 0.0
    %833 = vmatpush.msra.mxu0 0.0
    %834 = vmatpush.msra.mxu0 0.0
    %835 = vmatpush.msra.mxu0 0.0
    %836 = vmatpush.msra.mxu0 0.0
    %837 = vmatpush.msra.mxu0 0.0
    %838 = vmatpush.msra.mxu0 0.0
    %839 = vmatpush.msra.mxu0 0.0
    %840 = vmatpush.msra.mxu0 0.0
    %841 = vmatpush.msra.mxu0 0.0
    %842 = vmatpush.msra.mxu0 0.0
    %843 = vmatpush.msra.mxu0 0.0
    %844 = vmatpush.msra.mxu0 0.0
    %845 = vmatpush.msra.mxu0 0.0
    %846 = vmatpush.msra.mxu0 %v823
    %847 = vmatpush.msra.mxu0 %v821
    %848 = vmatmul.f32.gmra.mxu0 %v827
    %v849 = vpop.f32.mrf.mxu0
    %v850 = vadd.f32 0.0, %v849
    %851 = vmatmul.f32.gmra.mxu0 %v830
    %v852 = vpop.f32.mrf.mxu0
    %v853 = vadd.f32 0.0, %v852
    %854 = vdwg.mxu0
    %855 = vrot.lane.b32.xlu0 %v83, 96
    %v856 = vpop.permute.xlu0 %855
    %857 = vrot.lane.b32.xlu0 %v84, 96
    %v858 = vpop.permute.xlu0 %857
    %859 = vrot.lane.b32.xlu0 %v78, 56
    %v860 = vpop.permute.xlu0 %859
    %861 = vrot.lane.b32.xlu0 %v81, 56
    %v862 = vpop.permute.xlu0 %861
    %v863 = vsel %vm91, %v856, 0
    %v865 = vsel %vm91, %v858, 0
    %v867 = vsel %vm91, %v860, 0
    %v869 = vsel %vm91, %v862, 0
    %871 = vmatpush.xpose.msra.mxu0 0.0
    %872 = vmatpush.xpose.msra.mxu0 0.0
    %873 = vmatpush.xpose.msra.mxu0 0.0
    %874 = vmatpush.xpose.msra.mxu0 0.0
    %875 = vmatpush.xpose.msra.mxu0 0.0
    %876 = vmatpush.xpose.msra.mxu0 0.0
    %877 = vmatpush.xpose.msra.mxu0 0.0
    %878 = vmatpush.xpose.msra.mxu0 0.0
    %879 = vmatpush.xpose.msra.mxu0 0.0
    %880 = vmatpush.xpose.msra.mxu0 0.0
    %881 = vmatpush.xpose.msra.mxu0 0.0
    %882 = vmatpush.xpose.msra.mxu0 0.0
    %883 = vmatpush.xpose.msra.mxu0 0.0
    %884 = vmatpush.xpose.msra.mxu0 0.0
    %885 = vmatpush.xpose.msra.mxu0 %v869
    %886 = vmatpush.xpose.msra.mxu0 %v867
    %887 = vmatmul.f32.gmra.mxu0 %v863
    %v888 = vpop.f32.mrf.mxu0
    %v889 = vadd.f32 %v41, %v888
    %890 = vmatmul.f32.gmra.mxu0 %v865
    %v891 = vpop.f32.mrf.mxu0
    %v892 = vadd.f32 %v42, %v891
    %893 = vdwg.mxu0
    %v894 = vsel %vm125, %v889, -inf
    %895 = vmax.xlane.f32.xlu0 %v894
    %v896 = vpop.xlane.xlu0 %895
    %v897 = vsel %vm125, %v892, -inf
    %898 = vmax.xlane.f32.xlu0 %v897
    %v899 = vpop.xlane.xlu0 %898
    %v900 = vsub.f32 %v889, %v896
    %v901 = vsub.f32 %v892, %v899
    %v902 = vmul.f32 %v900, 1.442695
    %v903 = vpow.pop %v902
    %v904 = vmul.f32 %v901, 1.442695
    %v905 = vpow.pop %v904
    %v906 = vsel %vm125, %v903, 0.0
    %907 = vadd.xlane.f32.xlu0 %v906
    %v908 = vpop.xlane.xlu0 %907
    %v909 = vsel %vm125, %v905, 0.0
    %910 = vadd.xlane.f32.xlu0 %v909
    %v911 = vpop.xlane.xlu0 %910
    %v912 = vrcp.pop %v908
    %v913 = vrcp.pop %v911
    %v914 = vmul.f32 %v903, %v912
    %v915 = vmul.f32 %v905, %v913
    %916 = vrot.lane.b32.xlu0 %v78, 16
    %v917 = vpop.permute.xlu0 %916
    %918 = vrot.lane.b32.xlu0 %v81, 16
    %v919 = vpop.permute.xlu0 %918
    %v923 = vsel %vm125, %v914, 0
    %v926 = vsel %vm125, %v915, 0
    %928 = vmatpush.msra.mxu0 0.0
    %929 = vmatpush.msra.mxu0 0.0
    %930 = vmatpush.msra.mxu0 0.0
    %931 = vmatpush.msra.mxu0 0.0
    %932 = vmatpush.msra.mxu0 0.0
    %933 = vmatpush.msra.mxu0 0.0
    %934 = vmatpush.msra.mxu0 0.0
    %935 = vmatpush.msra.mxu0 0.0
    %936 = vmatpush.msra.mxu0 0.0
    %937 = vmatpush.msra.mxu0 0.0
    %938 = vmatpush.msra.mxu0 0.0
    %939 = vmatpush.msra.mxu0 0.0
    %940 = vmatpush.msra.mxu0 0.0
    %941 = vmatpush.msra.mxu0 0.0
    %942 = vmatpush.msra.mxu0 %v919
    %943 = vmatpush.msra.mxu0 %v917
    %944 = vmatmul.f32.gmra.mxu0 %v923
    %v945 = vpop.f32.mrf.mxu0
    %v946 = vadd.f32 0.0, %v945
    %947 = vmatmul.f32.gmra.mxu0 %v926
    %v948 = vpop.f32.mrf.mxu0
    %v949 = vadd.f32 0.0, %v948
    %950 = vdwg.mxu0
    %951 = vrot.lane.b32.xlu0 %v83, 92
    %v952 = vpop.permute.xlu0 %951
    %953 = vrot.lane.b32.xlu0 %v84, 92
    %v954 = vpop.permute.xlu0 %953
    %955 = vrot.lane.b32.xlu0 %v78, 52
    %v956 = vpop.permute.xlu0 %955
    %957 = vrot.lane.b32.xlu0 %v81, 52
    %v958 = vpop.permute.xlu0 %957
    %v959 = vsel %vm91, %v952, 0
    %v961 = vsel %vm91, %v954, 0
    %v963 = vsel %vm91, %v956, 0
    %v965 = vsel %vm91, %v958, 0
    %967 = vmatpush.xpose.msra.mxu0 0.0
    %968 = vmatpush.xpose.msra.mxu0 0.0
    %969 = vmatpush.xpose.msra.mxu0 0.0
    %970 = vmatpush.xpose.msra.mxu0 0.0
    %971 = vmatpush.xpose.msra.mxu0 0.0
    %972 = vmatpush.xpose.msra.mxu0 0.0
    %973 = vmatpush.xpose.msra.mxu0 0.0
    %974 = vmatpush.xpose.msra.mxu0 0.0
    %975 = vmatpush.xpose.msra.mxu0 0.0
    %976 = vmatpush.xpose.msra.mxu0 0.0
    %977 = vmatpush.xpose.msra.mxu0 0.0
    %978 = vmatpush.xpose.msra.mxu0 0.0
    %979 = vmatpush.xpose.msra.mxu0 0.0
    %980 = vmatpush.xpose.msra.mxu0 0.0
    %981 = vmatpush.xpose.msra.mxu0 %v965
    %982 = vmatpush.xpose.msra.mxu0 %v963
    %983 = vmatmul.f32.gmra.mxu0 %v959
    %v984 = vpop.f32.mrf.mxu0
    %v985 = vadd.f32 %v41, %v984
    %986 = vmatmul.f32.gmra.mxu0 %v961
    %v987 = vpop.f32.mrf.mxu0
    %v988 = vadd.f32 %v42, %v987
    %989 = vdwg.mxu0
    %v990 = vsel %vm125, %v985, -inf
    %991 = vmax.xlane.f32.xlu0 %v990
    %v992 = vpop.xlane.xlu0 %991
    %v993 = vsel %vm125, %v988, -inf
    %994 = vmax.xlane.f32.xlu0 %v993
    %v995 = vpop.xlane.xlu0 %994
    %v996 = vsub.f32 %v985, %v992
    %v997 = vsub.f32 %v988, %v995
    %v998 = vmul.f32 %v996, 1.442695
    %v999 = vpow.pop %v998
    %v1000 = vmul.f32 %v997, 1.442695
    %v1001 = vpow.pop %v1000
    %v1002 = vsel %vm125, %v999, 0.0
    %1003 = vadd.xlane.f32.xlu0 %v1002
    %v1004 = vpop.xlane.xlu0 %1003
    %v1005 = vsel %vm125, %v1001, 0.0
    %1006 = vadd.xlane.f32.xlu0 %v1005
    %v1007 = vpop.xlane.xlu0 %1006
    %v1008 = vrcp.pop %v1004
    %v1009 = vrcp.pop %v1007
    %v1010 = vmul.f32 %v999, %v1008
    %v1011 = vmul.f32 %v1001, %v1009
    %1012 = vrot.lane.b32.xlu0 %v78, 12
    %v1013 = vpop.permute.xlu0 %1012
    %1014 = vrot.lane.b32.xlu0 %v81, 12
    %v1015 = vpop.permute.xlu0 %1014
    %v1019 = vsel %vm125, %v1010, 0
    %v1022 = vsel %vm125, %v1011, 0
    %1024 = vmatpush.msra.mxu0 0.0
    %1025 = vmatpush.msra.mxu0 0.0
    %1026 = vmatpush.msra.mxu0 0.0
    %1027 = vmatpush.msra.mxu0 0.0
    %1028 = vmatpush.msra.mxu0 0.0
    %1029 = vmatpush.msra.mxu0 0.0
    %1030 = vmatpush.msra.mxu0 0.0
    %1031 = vmatpush.msra.mxu0 0.0
    %1032 = vmatpush.msra.mxu0 0.0
    %1033 = vmatpush.msra.mxu0 0.0
    %1034 = vmatpush.msra.mxu0 0.0
    %1035 = vmatpush.msra.mxu0 0.0
    %1036 = vmatpush.msra.mxu0 0.0
    %1037 = vmatpush.msra.mxu0 0.0
    %1038 = vmatpush.msra.mxu0 %v1015
    %1039 = vmatpush.msra.mxu0 %v1013
    %1040 = vmatmul.f32.gmra.mxu0 %v1019
    %v1041 = vpop.f32.mrf.mxu0
    %v1042 = vadd.f32 0.0, %v1041
    %1043 = vmatmul.f32.gmra.mxu0 %v1022
    %v1044 = vpop.f32.mrf.mxu0
    %v1045 = vadd.f32 0.0, %v1044
    %1046 = vdwg.mxu0
    %1049 = vrot.lane.b32.xlu0 %v274, 4
    %v1050 = vpop.permute.xlu0 %1049
    %1051 = vrot.lane.b32.xlu0 %v277, 4
    %v1052 = vpop.permute.xlu0 %1051
    %1057 = vrot.lane.b32.xlu0 %v370, 8
    %v1058 = vpop.permute.xlu0 %1057
    %1059 = vrot.lane.b32.xlu0 %v373, 8
    %v1060 = vpop.permute.xlu0 %1059
    %1065 = vrot.lane.b32.xlu0 %v466, 12
    %v1066 = vpop.permute.xlu0 %1065
    %1067 = vrot.lane.b32.xlu0 %v469, 12
    %v1068 = vpop.permute.xlu0 %1067
    %1073 = vrot.lane.b32.xlu0 %v562, 16
    %v1074 = vpop.permute.xlu0 %1073
    %1075 = vrot.lane.b32.xlu0 %v565, 16
    %v1076 = vpop.permute.xlu0 %1075
    %1081 = vrot.lane.b32.xlu0 %v658, 20
    %v1082 = vpop.permute.xlu0 %1081
    %1083 = vrot.lane.b32.xlu0 %v661, 20
    %v1084 = vpop.permute.xlu0 %1083
    %1089 = vrot.lane.b32.xlu0 %v754, 24
    %v1090 = vpop.permute.xlu0 %1089
    %1091 = vrot.lane.b32.xlu0 %v757, 24
    %v1092 = vpop.permute.xlu0 %1091
    %1097 = vrot.lane.b32.xlu0 %v850, 28
    %v1098 = vpop.permute.xlu0 %1097
    %1099 = vrot.lane.b32.xlu0 %v853, 28
    %v1100 = vpop.permute.xlu0 %1099
    %1105 = vrot.lane.b32.xlu0 %v946, 32
    %v1106 = vpop.permute.xlu0 %1105
    %1107 = vrot.lane.b32.xlu0 %v949, 32
    %v1108 = vpop.permute.xlu0 %1107
    %1113 = vrot.lane.b32.xlu0 %v1042, 36
    %v1114 = vpop.permute.xlu0 %1113
    %1115 = vrot.lane.b32.xlu0 %v1045, 36
    %v1116 = vpop.permute.xlu0 %1115
    %v1119 = vsel %vm91, %v178, %v1050
    %v1120 = vsel %vm91, %v181, %v1052
    %vm1121 = vcmask 64512
    %v1122 = vsel %vm1121, %v1119, %v1058
    %v1123 = vsel %vm1121, %v1120, %v1060
    %vm1124 = vcmask 97280
    %v1125 = vsel %vm1124, %v1122, %v1066
    %v1126 = vsel %vm1124, %v1123, %v1068
    %v1127 = vsel %vm125, %v1125, %v1074
    %v1128 = vsel %vm125, %v1126, %v1076
    %vm1129 = vcmask 162816
    %v1130 = vsel %vm1129, %v1127, %v1082
    %v1131 = vsel %vm1129, %v1128, %v1084
    %vm1132 = vcmask 195584
    %v1133 = vsel %vm1132, %v1130, %v1090
    %v1134 = vsel %vm1132, %v1131, %v1092
    %vm1135 = vcmask 228352
    %v1136 = vsel %vm1135, %v1133, %v1098
    %v1137 = vsel %vm1135, %v1134, %v1100
    %vm1138 = vcmask 261120
    %v1139 = vsel %vm1138, %v1136, %v1106
    %v1140 = vsel %vm1138, %v1137, %v1108
    %vm1141 = vcmask 293888
    %v1142 = vsel %vm1141, %v1139, %v1114
    %v1143 = vsel %vm1141, %v1140, %v1116
    %v1144 = vld [vmem:[%s3] sm:$0xff]
    %v1145 = vld [vmem:[%s3 + $0x8] sm:$0xff]
    %v1146 = vld [vmem:[%s3 + $0x10] sm:$0xff]
    %v1147 = vld [vmem:[%s3 + $0x18] sm:$0xff]
    %v1148 = vld [vmem:[%s3 + $0x20] sm:$0xff]
    %v1149 = vperm.slane %v43, 0
    %v1151 = vsel %vm53, %v1142, 0
    %v1154 = vsel %vm53, %v1143, 0
    %1156 = vmatpush.msra.mxu0 0.0
    %1157 = vmatpush.msra.mxu0 0.0
    %1158 = vmatpush.msra.mxu0 0.0
    %1159 = vmatpush.msra.mxu0 0.0
    %1160 = vmatpush.msra.mxu0 0.0
    %1161 = vmatpush.msra.mxu0 0.0
    %1162 = vmatpush.msra.mxu0 0.0
    %1163 = vmatpush.msra.mxu0 0.0
    %1164 = vmatpush.msra.mxu0 0.0
    %1165 = vmatpush.msra.mxu0 0.0
    %1166 = vmatpush.msra.mxu0 0.0
    %1167 = vmatpush.msra.mxu0 %v1148
    %1168 = vmatpush.msra.mxu0 %v1147
    %1169 = vmatpush.msra.mxu0 %v1146
    %1170 = vmatpush.msra.mxu0 %v1145
    %1171 = vmatpush.msra.mxu0 %v1144
    %1172 = vmatmul.f32.gmra.mxu0 %v1151
    %v1173 = vpop.f32.mrf.mxu0
    %v1174 = vadd.f32 %v1149, %v1173
    %1175 = vmatmul.f32.gmra.mxu0 %v1154
    %v1176 = vpop.f32.mrf.mxu0
    %v1177 = vadd.f32 %v1149, %v1176
    %1178 = vdwg.mxu0
    %v1179 = vadd.f32 %v39, %v1174
    %v1180 = vadd.f32 %v40, %v1177
    %v1181 = vsel %vm53, %v1179, 0.0
    %1182 = vadd.xlane.f32.xlu0 %v1181
    %v1183 = vpop.xlane.xlu0 %1182
    %v1184 = vsel %vm53, %v1180, 0.0
    %1185 = vadd.xlane.f32.xlu0 %v1184
    %v1186 = vpop.xlane.xlu0 %1185
    %v1187 = vrcp.pop 40.0
    %v1188 = vmul.f32 40.0, %v1187
    %v1189 = vsub.f32 1.0, %v1188
    %v1190 = vmul.f32 %v1187, %v1189
    %v1191 = vadd.f32 %v1187, %v1190
    %vm1192 = vweird.f32 %v1187
    %v1193 = vsel %vm1192, %v1187, %v1191
    %v1194 = vmul.f32 %v1183, %v1193
    %v1195 = vmul.f32 %v1186, %v1193
    %v1196 = vsub.f32 %v1179, %v1194
    %v1197 = vsub.f32 %v1180, %v1195
    %v1198 = vmul.f32 %v1196, %v1196
    %v1199 = vmul.f32 %v1197, %v1197
    %v1200 = vsel %vm53, %v1198, 0.0
    %1201 = vadd.xlane.f32.xlu0 %v1200
    %v1202 = vpop.xlane.xlu0 %1201
    %v1203 = vsel %vm53, %v1199, 0.0
    %1204 = vadd.xlane.f32.xlu0 %v1203
    %v1205 = vpop.xlane.xlu0 %1204
    %v1206 = vmul.f32 %v1202, %v1193
    %v1207 = vmul.f32 %v1205, %v1193
    %v1208 = vadd.f32 %v1206, 1e-05
    %v1209 = vadd.f32 %v1207, 1e-05
    %v1210 = vrsqrt.pop %v1208
    %v1211 = vmul.f32 %v1210, %v1208
    %v1212 = vmul.f32 %v1211, %v1210
    %v1213 = vmul.f32 0.5, %v1212
    %v1214 = vsub.f32 1.5, %v1213
    %v1215 = vmul.f32 %v1210, %v1214
    %vm1216 = vweird.f32 %v1208
    %vm1217 = vweird.f32 %v1210
    %vm1218 = vmor %vm1216, %vm1217
    %v1219 = vsel %vm1218, %v1210, %v1215
    %v1220 = vrsqrt.pop %v1209
    %v1221 = vmul.f32 %v1220, %v1209
    %v1222 = vmul.f32 %v1221, %v1220
    %v1223 = vmul.f32 0.5, %v1222
    %v1224 = vsub.f32 1.5, %v1223
    %v1225 = vmul.f32 %v1220, %v1224
    %vm1226 = vweird.f32 %v1209
    %vm1227 = vweird.f32 %v1220
    %vm1228 = vmor %vm1226, %vm1227
    %v1229 = vsel %vm1228, %v1220, %v1225
    %v1230 = vmul.f32 %v1196, %v1219
    %v1231 = vmul.f32 %v1197, %v1229
    %v1232 = vperm.slane %v43, 1
    %v1233 = vmul.f32 %v1230, %v1232
    %v1234 = vmul.f32 %v1231, %v1232
    %v1235 = vperm.slane %v43, 2
    %v1236 = vadd.f32 %v1233, %v1235
    %v1237 = vadd.f32 %v1234, %v1235
    %v1238 = vld [vmem:[%s4] sm:$0xff]
    %v1239 = vld [vmem:[%s4 + $0x8] sm:$0xff]
    %v1240 = vld [vmem:[%s4 + $0x10] sm:$0xff]
    %v1241 = vld [vmem:[%s4 + $0x18] sm:$0xff]
    %v1242 = vld [vmem:[%s4 + $0x20] sm:$0xff]
    %v1243 = vld [vmem:[%s7] sm:$0x1]
    %v1245 = vperm.slane %v1243, 0
    %v1248 = vsel %vm53, %v1236, 0
    %v1251 = vsel %vm53, %v1237, 0
    %1253 = vmatpush.msra.mxu0 0.0
    %1254 = vmatpush.msra.mxu0 0.0
    %1255 = vmatpush.msra.mxu0 0.0
    %1256 = vmatpush.msra.mxu0 0.0
    %1257 = vmatpush.msra.mxu0 0.0
    %1258 = vmatpush.msra.mxu0 0.0
    %1259 = vmatpush.msra.mxu0 0.0
    %1260 = vmatpush.msra.mxu0 0.0
    %1261 = vmatpush.msra.mxu0 0.0
    %1262 = vmatpush.msra.mxu0 0.0
    %1263 = vmatpush.msra.mxu0 0.0
    %1264 = vmatpush.msra.mxu0 %v1242
    %1265 = vmatpush.msra.mxu0 %v1241
    %1266 = vmatpush.msra.mxu0 %v1240
    %1267 = vmatpush.msra.mxu0 %v1239
    %1268 = vmatpush.msra.mxu0 %v1238
    %1269 = vmatmul.f32.gmra.mxu0 %v1248
    %v1270 = vpop.f32.mrf.mxu0
    %v1271 = vadd.f32 %v1245, %v1270
    %1272 = vmatmul.f32.gmra.mxu0 %v1251
    %v1273 = vpop.f32.mrf.mxu0
    %v1274 = vadd.f32 %v1245, %v1273
    %1275 = vdwg.mxu0
    %v1276 = vmax.f32 %v1271, 0.0
    %v1277 = vmax.f32 %v1274, 0.0
    %v1278 = vld [vmem:[%s5] sm:$0xff]
    %v1279 = vld [vmem:[%s5 + $0x8] sm:$0xff]
    %v1280 = vld [vmem:[%s5 + $0x10] sm:$0xff]
    %v1281 = vld [vmem:[%s5 + $0x18] sm:$0xff]
    %v1282 = vld [vmem:[%s5 + $0x20] sm:$0xff]
    %v1283 = vld [vmem:[%s5 + $0x28] sm:$0xff]
    %v1284 = vld [vmem:[%s5 + $0x30] sm:$0xff]
    %v1285 = vld [vmem:[%s5 + $0x38] sm:$0xff]
    %v1286 = vperm.slane %v43, 5
    %vm1287 = vcmask 523264
    %v1289 = vsel %vm1287, %v1276, 0
    %v1292 = vsel %vm1287, %v1277, 0
    %1294 = vmatpush.msra.mxu0 0.0
    %1295 = vmatpush.msra.mxu0 0.0
    %1296 = vmatpush.msra.mxu0 0.0
    %1297 = vmatpush.msra.mxu0 0.0
    %1298 = vmatpush.msra.mxu0 0.0
    %1299 = vmatpush.msra.mxu0 0.0
    %1300 = vmatpush.msra.mxu0 0.0
    %1301 = vmatpush.msra.mxu0 0.0
    %1302 = vmatpush.msra.mxu0 %v1285
    %1303 = vmatpush.msra.mxu0 %v1284
    %1304 = vmatpush.msra.mxu0 %v1283
    %1305 = vmatpush.msra.mxu0 %v1282
    %1306 = vmatpush.msra.mxu0 %v1281
    %1307 = vmatpush.msra.mxu0 %v1280
    %1308 = vmatpush.msra.mxu0 %v1279
    %1309 = vmatpush.msra.mxu0 %v1278
    %1310 = vmatmul.f32.gmra.mxu0 %v1289
    %v1311 = vpop.f32.mrf.mxu0
    %v1312 = vadd.f32 %v1286, %v1311
    %1313 = vmatmul.f32.gmra.mxu0 %v1292
    %v1314 = vpop.f32.mrf.mxu0
    %v1315 = vadd.f32 %v1286, %v1314
    %1316 = vdwg.mxu0
    %v1317 = vadd.f32 %v1236, %v1312
    %v1318 = vadd.f32 %v1237, %v1315
    %v1319 = vsel %vm53, %v1317, 0.0
    %1320 = vadd.xlane.f32.xlu0 %v1319
    %v1321 = vpop.xlane.xlu0 %1320
    %v1322 = vsel %vm53, %v1318, 0.0
    %1323 = vadd.xlane.f32.xlu0 %v1322
    %v1324 = vpop.xlane.xlu0 %1323
    %v1325 = vmul.f32 %v1321, %v1193
    %v1326 = vmul.f32 %v1324, %v1193
    %v1327 = vsub.f32 %v1317, %v1325
    %v1328 = vsub.f32 %v1318, %v1326
    %v1329 = vmul.f32 %v1327, %v1327
    %v1330 = vmul.f32 %v1328, %v1328
    %v1331 = vsel %vm53, %v1329, 0.0
    %1332 = vadd.xlane.f32.xlu0 %v1331
    %v1333 = vpop.xlane.xlu0 %1332
    %v1334 = vsel %vm53, %v1330, 0.0
    %1335 = vadd.xlane.f32.xlu0 %v1334
    %v1336 = vpop.xlane.xlu0 %1335
    %v1337 = vmul.f32 %v1333, %v1193
    %v1338 = vmul.f32 %v1336, %v1193
    %v1339 = vadd.f32 %v1337, 1e-05
    %v1340 = vadd.f32 %v1338, 1e-05
    %v1341 = vrsqrt.pop %v1339
    %v1342 = vmul.f32 %v1341, %v1339
    %v1343 = vmul.f32 %v1342, %v1341
    %v1344 = vmul.f32 0.5, %v1343
    %v1345 = vsub.f32 1.5, %v1344
    %v1346 = vmul.f32 %v1341, %v1345
    %vm1347 = vweird.f32 %v1339
    %vm1348 = vweird.f32 %v1341
    %vm1349 = vmor %vm1347, %vm1348
    %v1350 = vsel %vm1349, %v1341, %v1346
    %v1351 = vrsqrt.pop %v1340
    %v1352 = vmul.f32 %v1351, %v1340
    %v1353 = vmul.f32 %v1352, %v1351
    %v1354 = vmul.f32 0.5, %v1353
    %v1355 = vsub.f32 1.5, %v1354
    %v1356 = vmul.f32 %v1351, %v1355
    %vm1357 = vweird.f32 %v1340
    %vm1358 = vweird.f32 %v1351
    %vm1359 = vmor %vm1357, %vm1358
    %v1360 = vsel %vm1359, %v1351, %v1356
    %v1361 = vmul.f32 %v1327, %v1350
    %v1362 = vmul.f32 %v1328, %v1360
    %v1363 = vperm.slane %v43, 3
    %v1364 = vmul.f32 %v1361, %v1363
    %v1365 = vmul.f32 %v1362, %v1363
    %v1366 = vperm.slane %v43, 4
    %v1367 = vadd.f32 %v1364, %v1366
    %v1368 = vadd.f32 %v1365, %v1366
    %s1369 = scalar_lea.vmem %s8, 8
    %v1370 = vld [vmem:[%s1369] sm:$0x3f]
    %s1371 = scalar_lea.vmem %s2, 40
    %v1372 = vld [vmem:[%s1371] sm:$0xff]
    %v1373 = vld [vmem:[%s1371 + $0x8] sm:$0xff]
    %v1374 = vld [vmem:[%s1371 + $0x10] sm:$0xff]
    %v1375 = vld [vmem:[%s1371 + $0x18] sm:$0xff]
    %v1376 = vld [vmem:[%s1371 + $0x20] sm:$0xff]
    %s1377 = scalar_lea.vmem %s6, 1
    %v1378 = vld [vmem:[%s1377] sm:$0x1]
    %v1380 = vperm.slane %v1378, 0
    %v1383 = vsel %vm53, %v1367, 0
    %v1386 = vsel %vm53, %v1368, 0
    %1388 = vmatpush.msra.mxu0 0.0
    %1389 = vmatpush.msra.mxu0 0.0
    %1390 = vmatpush.msra.mxu0 0.0
    %1391 = vmatpush.msra.mxu0 0.0
    %1392 = vmatpush.msra.mxu0 0.0
    %1393 = vmatpush.msra.mxu0 0.0
    %1394 = vmatpush.msra.mxu0 0.0
    %1395 = vmatpush.msra.mxu0 0.0
    %1396 = vmatpush.msra.mxu0 0.0
    %1397 = vmatpush.msra.mxu0 0.0
    %1398 = vmatpush.msra.mxu0 0.0
    %1399 = vmatpush.msra.mxu0 %v1376
    %1400 = vmatpush.msra.mxu0 %v1375
    %1401 = vmatpush.msra.mxu0 %v1374
    %1402 = vmatpush.msra.mxu0 %v1373
    %1403 = vmatpush.msra.mxu0 %v1372
    %1404 = vmatmul.f32.gmra.mxu0 %v1383
    %v1405 = vpop.f32.mrf.mxu0
    %v1406 = vadd.f32 %v1380, %v1405
    %1407 = vmatmul.f32.gmra.mxu0 %v1386
    %v1408 = vpop.f32.mrf.mxu0
    %v1409 = vadd.f32 %v1380, %v1408
    %1410 = vdwg.mxu0
    %v1411 = vmul.f32 %v1406, 0.5
    %v1412 = vmul.f32 %v1409, 0.5
    %1415 = vrot.lane.b32.xlu0 %v1406, 88
    %v1416 = vpop.permute.xlu0 %1415
    %1417 = vrot.lane.b32.xlu0 %v1409, 88
    %v1418 = vpop.permute.xlu0 %1417
    %v1420 = vsel %vm91, %v1411, 0
    %v1423 = vsel %vm91, %v1412, 0
    %v1425 = vsel %vm91, %v1416, 0
    %v1427 = vsel %vm91, %v1418, 0
    %1429 = vmatpush.xpose.msra.mxu0 0.0
    %1430 = vmatpush.xpose.msra.mxu0 0.0
    %1431 = vmatpush.xpose.msra.mxu0 0.0
    %1432 = vmatpush.xpose.msra.mxu0 0.0
    %1433 = vmatpush.xpose.msra.mxu0 0.0
    %1434 = vmatpush.xpose.msra.mxu0 0.0
    %1435 = vmatpush.xpose.msra.mxu0 0.0
    %1436 = vmatpush.xpose.msra.mxu0 0.0
    %1437 = vmatpush.xpose.msra.mxu0 0.0
    %1438 = vmatpush.xpose.msra.mxu0 0.0
    %1439 = vmatpush.xpose.msra.mxu0 0.0
    %1440 = vmatpush.xpose.msra.mxu0 0.0
    %1441 = vmatpush.xpose.msra.mxu0 0.0
    %1442 = vmatpush.xpose.msra.mxu0 0.0
    %1443 = vmatpush.xpose.msra.mxu0 %v1427
    %1444 = vmatpush.xpose.msra.mxu0 %v1425
    %1445 = vmatmul.f32.gmra.mxu0 %v1420
    %v1446 = vpop.f32.mrf.mxu0
    %v1447 = vadd.f32 %v41, %v1446
    %1448 = vmatmul.f32.gmra.mxu0 %v1423
    %v1449 = vpop.f32.mrf.mxu0
    %v1450 = vadd.f32 %v42, %v1449
    %1451 = vdwg.mxu0
    %v1452 = vsel %vm125, %v1447, -inf
    %1453 = vmax.xlane.f32.xlu0 %v1452
    %v1454 = vpop.xlane.xlu0 %1453
    %v1455 = vsel %vm125, %v1450, -inf
    %1456 = vmax.xlane.f32.xlu0 %v1455
    %v1457 = vpop.xlane.xlu0 %1456
    %v1458 = vsub.f32 %v1447, %v1454
    %v1459 = vsub.f32 %v1450, %v1457
    %v1460 = vmul.f32 %v1458, 1.442695
    %v1461 = vpow.pop %v1460
    %v1462 = vmul.f32 %v1459, 1.442695
    %v1463 = vpow.pop %v1462
    %v1464 = vsel %vm125, %v1461, 0.0
    %1465 = vadd.xlane.f32.xlu0 %v1464
    %v1466 = vpop.xlane.xlu0 %1465
    %v1467 = vsel %vm125, %v1463, 0.0
    %1468 = vadd.xlane.f32.xlu0 %v1467
    %v1469 = vpop.xlane.xlu0 %1468
    %v1470 = vrcp.pop %v1466
    %v1471 = vrcp.pop %v1469
    %v1472 = vmul.f32 %v1461, %v1470
    %v1473 = vmul.f32 %v1463, %v1471
    %1474 = vrot.lane.b32.xlu0 %v1406, 48
    %v1475 = vpop.permute.xlu0 %1474
    %1476 = vrot.lane.b32.xlu0 %v1409, 48
    %v1477 = vpop.permute.xlu0 %1476
    %v1481 = vsel %vm125, %v1472, 0
    %v1484 = vsel %vm125, %v1473, 0
    %1486 = vmatpush.msra.mxu0 0.0
    %1487 = vmatpush.msra.mxu0 0.0
    %1488 = vmatpush.msra.mxu0 0.0
    %1489 = vmatpush.msra.mxu0 0.0
    %1490 = vmatpush.msra.mxu0 0.0
    %1491 = vmatpush.msra.mxu0 0.0
    %1492 = vmatpush.msra.mxu0 0.0
    %1493 = vmatpush.msra.mxu0 0.0
    %1494 = vmatpush.msra.mxu0 0.0
    %1495 = vmatpush.msra.mxu0 0.0
    %1496 = vmatpush.msra.mxu0 0.0
    %1497 = vmatpush.msra.mxu0 0.0
    %1498 = vmatpush.msra.mxu0 0.0
    %1499 = vmatpush.msra.mxu0 0.0
    %1500 = vmatpush.msra.mxu0 %v1477
    %1501 = vmatpush.msra.mxu0 %v1475
    %1502 = vmatmul.f32.gmra.mxu0 %v1481
    %v1503 = vpop.f32.mrf.mxu0
    %v1504 = vadd.f32 0.0, %v1503
    %1505 = vmatmul.f32.gmra.mxu0 %v1484
    %v1506 = vpop.f32.mrf.mxu0
    %v1507 = vadd.f32 0.0, %v1506
    %1508 = vdwg.mxu0
    %1509 = vrot.lane.b32.xlu0 %v1411, 124
    %v1510 = vpop.permute.xlu0 %1509
    %1511 = vrot.lane.b32.xlu0 %v1412, 124
    %v1512 = vpop.permute.xlu0 %1511
    %1513 = vrot.lane.b32.xlu0 %v1406, 84
    %v1514 = vpop.permute.xlu0 %1513
    %1515 = vrot.lane.b32.xlu0 %v1409, 84
    %v1516 = vpop.permute.xlu0 %1515
    %v1517 = vsel %vm91, %v1510, 0
    %v1519 = vsel %vm91, %v1512, 0
    %v1521 = vsel %vm91, %v1514, 0
    %v1523 = vsel %vm91, %v1516, 0
    %1525 = vmatpush.xpose.msra.mxu0 0.0
    %1526 = vmatpush.xpose.msra.mxu0 0.0
    %1527 = vmatpush.xpose.msra.mxu0 0.0
    %1528 = vmatpush.xpose.msra.mxu0 0.0
    %1529 = vmatpush.xpose.msra.mxu0 0.0
    %1530 = vmatpush.xpose.msra.mxu0 0.0
    %1531 = vmatpush.xpose.msra.mxu0 0.0
    %1532 = vmatpush.xpose.msra.mxu0 0.0
    %1533 = vmatpush.xpose.msra.mxu0 0.0
    %1534 = vmatpush.xpose.msra.mxu0 0.0
    %1535 = vmatpush.xpose.msra.mxu0 0.0
    %1536 = vmatpush.xpose.msra.mxu0 0.0
    %1537 = vmatpush.xpose.msra.mxu0 0.0
    %1538 = vmatpush.xpose.msra.mxu0 0.0
    %1539 = vmatpush.xpose.msra.mxu0 %v1523
    %1540 = vmatpush.xpose.msra.mxu0 %v1521
    %1541 = vmatmul.f32.gmra.mxu0 %v1517
    %v1542 = vpop.f32.mrf.mxu0
    %v1543 = vadd.f32 %v41, %v1542
    %1544 = vmatmul.f32.gmra.mxu0 %v1519
    %v1545 = vpop.f32.mrf.mxu0
    %v1546 = vadd.f32 %v42, %v1545
    %1547 = vdwg.mxu0
    %v1548 = vsel %vm125, %v1543, -inf
    %1549 = vmax.xlane.f32.xlu0 %v1548
    %v1550 = vpop.xlane.xlu0 %1549
    %v1551 = vsel %vm125, %v1546, -inf
    %1552 = vmax.xlane.f32.xlu0 %v1551
    %v1553 = vpop.xlane.xlu0 %1552
    %v1554 = vsub.f32 %v1543, %v1550
    %v1555 = vsub.f32 %v1546, %v1553
    %v1556 = vmul.f32 %v1554, 1.442695
    %v1557 = vpow.pop %v1556
    %v1558 = vmul.f32 %v1555, 1.442695
    %v1559 = vpow.pop %v1558
    %v1560 = vsel %vm125, %v1557, 0.0
    %1561 = vadd.xlane.f32.xlu0 %v1560
    %v1562 = vpop.xlane.xlu0 %1561
    %v1563 = vsel %vm125, %v1559, 0.0
    %1564 = vadd.xlane.f32.xlu0 %v1563
    %v1565 = vpop.xlane.xlu0 %1564
    %v1566 = vrcp.pop %v1562
    %v1567 = vrcp.pop %v1565
    %v1568 = vmul.f32 %v1557, %v1566
    %v1569 = vmul.f32 %v1559, %v1567
    %1570 = vrot.lane.b32.xlu0 %v1406, 44
    %v1571 = vpop.permute.xlu0 %1570
    %1572 = vrot.lane.b32.xlu0 %v1409, 44
    %v1573 = vpop.permute.xlu0 %1572
    %v1577 = vsel %vm125, %v1568, 0
    %v1580 = vsel %vm125, %v1569, 0
    %1582 = vmatpush.msra.mxu0 0.0
    %1583 = vmatpush.msra.mxu0 0.0
    %1584 = vmatpush.msra.mxu0 0.0
    %1585 = vmatpush.msra.mxu0 0.0
    %1586 = vmatpush.msra.mxu0 0.0
    %1587 = vmatpush.msra.mxu0 0.0
    %1588 = vmatpush.msra.mxu0 0.0
    %1589 = vmatpush.msra.mxu0 0.0
    %1590 = vmatpush.msra.mxu0 0.0
    %1591 = vmatpush.msra.mxu0 0.0
    %1592 = vmatpush.msra.mxu0 0.0
    %1593 = vmatpush.msra.mxu0 0.0
    %1594 = vmatpush.msra.mxu0 0.0
    %1595 = vmatpush.msra.mxu0 0.0
    %1596 = vmatpush.msra.mxu0 %v1573
    %1597 = vmatpush.msra.mxu0 %v1571
    %1598 = vmatmul.f32.gmra.mxu0 %v1577
    %v1599 = vpop.f32.mrf.mxu0
    %v1600 = vadd.f32 0.0, %v1599
    %1601 = vmatmul.f32.gmra.mxu0 %v1580
    %v1602 = vpop.f32.mrf.mxu0
    %v1603 = vadd.f32 0.0, %v1602
    %1604 = vdwg.mxu0
    %1605 = vrot.lane.b32.xlu0 %v1411, 120
    %v1606 = vpop.permute.xlu0 %1605
    %1607 = vrot.lane.b32.xlu0 %v1412, 120
    %v1608 = vpop.permute.xlu0 %1607
    %1609 = vrot.lane.b32.xlu0 %v1406, 80
    %v1610 = vpop.permute.xlu0 %1609
    %1611 = vrot.lane.b32.xlu0 %v1409, 80
    %v1612 = vpop.permute.xlu0 %1611
    %v1613 = vsel %vm91, %v1606, 0
    %v1615 = vsel %vm91, %v1608, 0
    %v1617 = vsel %vm91, %v1610, 0
    %v1619 = vsel %vm91, %v1612, 0
    %1621 = vmatpush.xpose.msra.mxu0 0.0
    %1622 = vmatpush.xpose.msra.mxu0 0.0
    %1623 = vmatpush.xpose.msra.mxu0 0.0
    %1624 = vmatpush.xpose.msra.mxu0 0.0
    %1625 = vmatpush.xpose.msra.mxu0 0.0
    %1626 = vmatpush.xpose.msra.mxu0 0.0
    %1627 = vmatpush.xpose.msra.mxu0 0.0
    %1628 = vmatpush.xpose.msra.mxu0 0.0
    %1629 = vmatpush.xpose.msra.mxu0 0.0
    %1630 = vmatpush.xpose.msra.mxu0 0.0
    %1631 = vmatpush.xpose.msra.mxu0 0.0
    %1632 = vmatpush.xpose.msra.mxu0 0.0
    %1633 = vmatpush.xpose.msra.mxu0 0.0
    %1634 = vmatpush.xpose.msra.mxu0 0.0
    %1635 = vmatpush.xpose.msra.mxu0 %v1619
    %1636 = vmatpush.xpose.msra.mxu0 %v1617
    %1637 = vmatmul.f32.gmra.mxu0 %v1613
    %v1638 = vpop.f32.mrf.mxu0
    %v1639 = vadd.f32 %v41, %v1638
    %1640 = vmatmul.f32.gmra.mxu0 %v1615
    %v1641 = vpop.f32.mrf.mxu0
    %v1642 = vadd.f32 %v42, %v1641
    %1643 = vdwg.mxu0
    %v1644 = vsel %vm125, %v1639, -inf
    %1645 = vmax.xlane.f32.xlu0 %v1644
    %v1646 = vpop.xlane.xlu0 %1645
    %v1647 = vsel %vm125, %v1642, -inf
    %1648 = vmax.xlane.f32.xlu0 %v1647
    %v1649 = vpop.xlane.xlu0 %1648
    %v1650 = vsub.f32 %v1639, %v1646
    %v1651 = vsub.f32 %v1642, %v1649
    %v1652 = vmul.f32 %v1650, 1.442695
    %v1653 = vpow.pop %v1652
    %v1654 = vmul.f32 %v1651, 1.442695
    %v1655 = vpow.pop %v1654
    %v1656 = vsel %vm125, %v1653, 0.0
    %1657 = vadd.xlane.f32.xlu0 %v1656
    %v1658 = vpop.xlane.xlu0 %1657
    %v1659 = vsel %vm125, %v1655, 0.0
    %1660 = vadd.xlane.f32.xlu0 %v1659
    %v1661 = vpop.xlane.xlu0 %1660
    %v1662 = vrcp.pop %v1658
    %v1663 = vrcp.pop %v1661
    %v1664 = vmul.f32 %v1653, %v1662
    %v1665 = vmul.f32 %v1655, %v1663
    %1666 = vrot.lane.b32.xlu0 %v1406, 40
    %v1667 = vpop.permute.xlu0 %1666
    %1668 = vrot.lane.b32.xlu0 %v1409, 40
    %v1669 = vpop.permute.xlu0 %1668
    %v1673 = vsel %vm125, %v1664, 0
    %v1676 = vsel %vm125, %v1665, 0
    %1678 = vmatpush.msra.mxu0 0.0
    %1679 = vmatpush.msra.mxu0 0.0
    %1680 = vmatpush.msra.mxu0 0.0
    %1681 = vmatpush.msra.mxu0 0.0
    %1682 = vmatpush.msra.mxu0 0.0
    %1683 = vmatpush.msra.mxu0 0.0
    %1684 = vmatpush.msra.mxu0 0.0
    %1685 = vmatpush.msra.mxu0 0.0
    %1686 = vmatpush.msra.mxu0 0.0
    %1687 = vmatpush.msra.mxu0 0.0
    %1688 = vmatpush.msra.mxu0 0.0
    %1689 = vmatpush.msra.mxu0 0.0
    %1690 = vmatpush.msra.mxu0 0.0
    %1691 = vmatpush.msra.mxu0 0.0
    %1692 = vmatpush.msra.mxu0 %v1669
    %1693 = vmatpush.msra.mxu0 %v1667
    %1694 = vmatmul.f32.gmra.mxu0 %v1673
    %v1695 = vpop.f32.mrf.mxu0
    %v1696 = vadd.f32 0.0, %v1695
    %1697 = vmatmul.f32.gmra.mxu0 %v1676
    %v1698 = vpop.f32.mrf.mxu0
    %v1699 = vadd.f32 0.0, %v1698
    %1700 = vdwg.mxu0
    %1701 = vrot.lane.b32.xlu0 %v1411, 116
    %v1702 = vpop.permute.xlu0 %1701
    %1703 = vrot.lane.b32.xlu0 %v1412, 116
    %v1704 = vpop.permute.xlu0 %1703
    %1705 = vrot.lane.b32.xlu0 %v1406, 76
    %v1706 = vpop.permute.xlu0 %1705
    %1707 = vrot.lane.b32.xlu0 %v1409, 76
    %v1708 = vpop.permute.xlu0 %1707
    %v1709 = vsel %vm91, %v1702, 0
    %v1711 = vsel %vm91, %v1704, 0
    %v1713 = vsel %vm91, %v1706, 0
    %v1715 = vsel %vm91, %v1708, 0
    %1717 = vmatpush.xpose.msra.mxu0 0.0
    %1718 = vmatpush.xpose.msra.mxu0 0.0
    %1719 = vmatpush.xpose.msra.mxu0 0.0
    %1720 = vmatpush.xpose.msra.mxu0 0.0
    %1721 = vmatpush.xpose.msra.mxu0 0.0
    %1722 = vmatpush.xpose.msra.mxu0 0.0
    %1723 = vmatpush.xpose.msra.mxu0 0.0
    %1724 = vmatpush.xpose.msra.mxu0 0.0
    %1725 = vmatpush.xpose.msra.mxu0 0.0
    %1726 = vmatpush.xpose.msra.mxu0 0.0
    %1727 = vmatpush.xpose.msra.mxu0 0.0
    %1728 = vmatpush.xpose.msra.mxu0 0.0
    %1729 = vmatpush.xpose.msra.mxu0 0.0
    %1730 = vmatpush.xpose.msra.mxu0 0.0
    %1731 = vmatpush.xpose.msra.mxu0 %v1715
    %1732 = vmatpush.xpose.msra.mxu0 %v1713
    %1733 = vmatmul.f32.gmra.mxu0 %v1709
    %v1734 = vpop.f32.mrf.mxu0
    %v1735 = vadd.f32 %v41, %v1734
    %1736 = vmatmul.f32.gmra.mxu0 %v1711
    %v1737 = vpop.f32.mrf.mxu0
    %v1738 = vadd.f32 %v42, %v1737
    %1739 = vdwg.mxu0
    %v1740 = vsel %vm125, %v1735, -inf
    %1741 = vmax.xlane.f32.xlu0 %v1740
    %v1742 = vpop.xlane.xlu0 %1741
    %v1743 = vsel %vm125, %v1738, -inf
    %1744 = vmax.xlane.f32.xlu0 %v1743
    %v1745 = vpop.xlane.xlu0 %1744
    %v1746 = vsub.f32 %v1735, %v1742
    %v1747 = vsub.f32 %v1738, %v1745
    %v1748 = vmul.f32 %v1746, 1.442695
    %v1749 = vpow.pop %v1748
    %v1750 = vmul.f32 %v1747, 1.442695
    %v1751 = vpow.pop %v1750
    %v1752 = vsel %vm125, %v1749, 0.0
    %1753 = vadd.xlane.f32.xlu0 %v1752
    %v1754 = vpop.xlane.xlu0 %1753
    %v1755 = vsel %vm125, %v1751, 0.0
    %1756 = vadd.xlane.f32.xlu0 %v1755
    %v1757 = vpop.xlane.xlu0 %1756
    %v1758 = vrcp.pop %v1754
    %v1759 = vrcp.pop %v1757
    %v1760 = vmul.f32 %v1749, %v1758
    %v1761 = vmul.f32 %v1751, %v1759
    %1762 = vrot.lane.b32.xlu0 %v1406, 36
    %v1763 = vpop.permute.xlu0 %1762
    %1764 = vrot.lane.b32.xlu0 %v1409, 36
    %v1765 = vpop.permute.xlu0 %1764
    %v1769 = vsel %vm125, %v1760, 0
    %v1772 = vsel %vm125, %v1761, 0
    %1774 = vmatpush.msra.mxu0 0.0
    %1775 = vmatpush.msra.mxu0 0.0
    %1776 = vmatpush.msra.mxu0 0.0
    %1777 = vmatpush.msra.mxu0 0.0
    %1778 = vmatpush.msra.mxu0 0.0
    %1779 = vmatpush.msra.mxu0 0.0
    %1780 = vmatpush.msra.mxu0 0.0
    %1781 = vmatpush.msra.mxu0 0.0
    %1782 = vmatpush.msra.mxu0 0.0
    %1783 = vmatpush.msra.mxu0 0.0
    %1784 = vmatpush.msra.mxu0 0.0
    %1785 = vmatpush.msra.mxu0 0.0
    %1786 = vmatpush.msra.mxu0 0.0
    %1787 = vmatpush.msra.mxu0 0.0
    %1788 = vmatpush.msra.mxu0 %v1765
    %1789 = vmatpush.msra.mxu0 %v1763
    %1790 = vmatmul.f32.gmra.mxu0 %v1769
    %v1791 = vpop.f32.mrf.mxu0
    %v1792 = vadd.f32 0.0, %v1791
    %1793 = vmatmul.f32.gmra.mxu0 %v1772
    %v1794 = vpop.f32.mrf.mxu0
    %v1795 = vadd.f32 0.0, %v1794
    %1796 = vdwg.mxu0
    %1797 = vrot.lane.b32.xlu0 %v1411, 112
    %v1798 = vpop.permute.xlu0 %1797
    %1799 = vrot.lane.b32.xlu0 %v1412, 112
    %v1800 = vpop.permute.xlu0 %1799
    %1801 = vrot.lane.b32.xlu0 %v1406, 72
    %v1802 = vpop.permute.xlu0 %1801
    %1803 = vrot.lane.b32.xlu0 %v1409, 72
    %v1804 = vpop.permute.xlu0 %1803
    %v1805 = vsel %vm91, %v1798, 0
    %v1807 = vsel %vm91, %v1800, 0
    %v1809 = vsel %vm91, %v1802, 0
    %v1811 = vsel %vm91, %v1804, 0
    %1813 = vmatpush.xpose.msra.mxu0 0.0
    %1814 = vmatpush.xpose.msra.mxu0 0.0
    %1815 = vmatpush.xpose.msra.mxu0 0.0
    %1816 = vmatpush.xpose.msra.mxu0 0.0
    %1817 = vmatpush.xpose.msra.mxu0 0.0
    %1818 = vmatpush.xpose.msra.mxu0 0.0
    %1819 = vmatpush.xpose.msra.mxu0 0.0
    %1820 = vmatpush.xpose.msra.mxu0 0.0
    %1821 = vmatpush.xpose.msra.mxu0 0.0
    %1822 = vmatpush.xpose.msra.mxu0 0.0
    %1823 = vmatpush.xpose.msra.mxu0 0.0
    %1824 = vmatpush.xpose.msra.mxu0 0.0
    %1825 = vmatpush.xpose.msra.mxu0 0.0
    %1826 = vmatpush.xpose.msra.mxu0 0.0
    %1827 = vmatpush.xpose.msra.mxu0 %v1811
    %1828 = vmatpush.xpose.msra.mxu0 %v1809
    %1829 = vmatmul.f32.gmra.mxu0 %v1805
    %v1830 = vpop.f32.mrf.mxu0
    %v1831 = vadd.f32 %v41, %v1830
    %1832 = vmatmul.f32.gmra.mxu0 %v1807
    %v1833 = vpop.f32.mrf.mxu0
    %v1834 = vadd.f32 %v42, %v1833
    %1835 = vdwg.mxu0
    %v1836 = vsel %vm125, %v1831, -inf
    %1837 = vmax.xlane.f32.xlu0 %v1836
    %v1838 = vpop.xlane.xlu0 %1837
    %v1839 = vsel %vm125, %v1834, -inf
    %1840 = vmax.xlane.f32.xlu0 %v1839
    %v1841 = vpop.xlane.xlu0 %1840
    %v1842 = vsub.f32 %v1831, %v1838
    %v1843 = vsub.f32 %v1834, %v1841
    %v1844 = vmul.f32 %v1842, 1.442695
    %v1845 = vpow.pop %v1844
    %v1846 = vmul.f32 %v1843, 1.442695
    %v1847 = vpow.pop %v1846
    %v1848 = vsel %vm125, %v1845, 0.0
    %1849 = vadd.xlane.f32.xlu0 %v1848
    %v1850 = vpop.xlane.xlu0 %1849
    %v1851 = vsel %vm125, %v1847, 0.0
    %1852 = vadd.xlane.f32.xlu0 %v1851
    %v1853 = vpop.xlane.xlu0 %1852
    %v1854 = vrcp.pop %v1850
    %v1855 = vrcp.pop %v1853
    %v1856 = vmul.f32 %v1845, %v1854
    %v1857 = vmul.f32 %v1847, %v1855
    %1858 = vrot.lane.b32.xlu0 %v1406, 32
    %v1859 = vpop.permute.xlu0 %1858
    %1860 = vrot.lane.b32.xlu0 %v1409, 32
    %v1861 = vpop.permute.xlu0 %1860
    %v1865 = vsel %vm125, %v1856, 0
    %v1868 = vsel %vm125, %v1857, 0
    %1870 = vmatpush.msra.mxu0 0.0
    %1871 = vmatpush.msra.mxu0 0.0
    %1872 = vmatpush.msra.mxu0 0.0
    %1873 = vmatpush.msra.mxu0 0.0
    %1874 = vmatpush.msra.mxu0 0.0
    %1875 = vmatpush.msra.mxu0 0.0
    %1876 = vmatpush.msra.mxu0 0.0
    %1877 = vmatpush.msra.mxu0 0.0
    %1878 = vmatpush.msra.mxu0 0.0
    %1879 = vmatpush.msra.mxu0 0.0
    %1880 = vmatpush.msra.mxu0 0.0
    %1881 = vmatpush.msra.mxu0 0.0
    %1882 = vmatpush.msra.mxu0 0.0
    %1883 = vmatpush.msra.mxu0 0.0
    %1884 = vmatpush.msra.mxu0 %v1861
    %1885 = vmatpush.msra.mxu0 %v1859
    %1886 = vmatmul.f32.gmra.mxu0 %v1865
    %v1887 = vpop.f32.mrf.mxu0
    %v1888 = vadd.f32 0.0, %v1887
    %1889 = vmatmul.f32.gmra.mxu0 %v1868
    %v1890 = vpop.f32.mrf.mxu0
    %v1891 = vadd.f32 0.0, %v1890
    %1892 = vdwg.mxu0
    %1893 = vrot.lane.b32.xlu0 %v1411, 108
    %v1894 = vpop.permute.xlu0 %1893
    %1895 = vrot.lane.b32.xlu0 %v1412, 108
    %v1896 = vpop.permute.xlu0 %1895
    %1897 = vrot.lane.b32.xlu0 %v1406, 68
    %v1898 = vpop.permute.xlu0 %1897
    %1899 = vrot.lane.b32.xlu0 %v1409, 68
    %v1900 = vpop.permute.xlu0 %1899
    %v1901 = vsel %vm91, %v1894, 0
    %v1903 = vsel %vm91, %v1896, 0
    %v1905 = vsel %vm91, %v1898, 0
    %v1907 = vsel %vm91, %v1900, 0
    %1909 = vmatpush.xpose.msra.mxu0 0.0
    %1910 = vmatpush.xpose.msra.mxu0 0.0
    %1911 = vmatpush.xpose.msra.mxu0 0.0
    %1912 = vmatpush.xpose.msra.mxu0 0.0
    %1913 = vmatpush.xpose.msra.mxu0 0.0
    %1914 = vmatpush.xpose.msra.mxu0 0.0
    %1915 = vmatpush.xpose.msra.mxu0 0.0
    %1916 = vmatpush.xpose.msra.mxu0 0.0
    %1917 = vmatpush.xpose.msra.mxu0 0.0
    %1918 = vmatpush.xpose.msra.mxu0 0.0
    %1919 = vmatpush.xpose.msra.mxu0 0.0
    %1920 = vmatpush.xpose.msra.mxu0 0.0
    %1921 = vmatpush.xpose.msra.mxu0 0.0
    %1922 = vmatpush.xpose.msra.mxu0 0.0
    %1923 = vmatpush.xpose.msra.mxu0 %v1907
    %1924 = vmatpush.xpose.msra.mxu0 %v1905
    %1925 = vmatmul.f32.gmra.mxu0 %v1901
    %v1926 = vpop.f32.mrf.mxu0
    %v1927 = vadd.f32 %v41, %v1926
    %1928 = vmatmul.f32.gmra.mxu0 %v1903
    %v1929 = vpop.f32.mrf.mxu0
    %v1930 = vadd.f32 %v42, %v1929
    %1931 = vdwg.mxu0
    %v1932 = vsel %vm125, %v1927, -inf
    %1933 = vmax.xlane.f32.xlu0 %v1932
    %v1934 = vpop.xlane.xlu0 %1933
    %v1935 = vsel %vm125, %v1930, -inf
    %1936 = vmax.xlane.f32.xlu0 %v1935
    %v1937 = vpop.xlane.xlu0 %1936
    %v1938 = vsub.f32 %v1927, %v1934
    %v1939 = vsub.f32 %v1930, %v1937
    %v1940 = vmul.f32 %v1938, 1.442695
    %v1941 = vpow.pop %v1940
    %v1942 = vmul.f32 %v1939, 1.442695
    %v1943 = vpow.pop %v1942
    %v1944 = vsel %vm125, %v1941, 0.0
    %1945 = vadd.xlane.f32.xlu0 %v1944
    %v1946 = vpop.xlane.xlu0 %1945
    %v1947 = vsel %vm125, %v1943, 0.0
    %1948 = vadd.xlane.f32.xlu0 %v1947
    %v1949 = vpop.xlane.xlu0 %1948
    %v1950 = vrcp.pop %v1946
    %v1951 = vrcp.pop %v1949
    %v1952 = vmul.f32 %v1941, %v1950
    %v1953 = vmul.f32 %v1943, %v1951
    %1954 = vrot.lane.b32.xlu0 %v1406, 28
    %v1955 = vpop.permute.xlu0 %1954
    %1956 = vrot.lane.b32.xlu0 %v1409, 28
    %v1957 = vpop.permute.xlu0 %1956
    %v1961 = vsel %vm125, %v1952, 0
    %v1964 = vsel %vm125, %v1953, 0
    %1966 = vmatpush.msra.mxu0 0.0
    %1967 = vmatpush.msra.mxu0 0.0
    %1968 = vmatpush.msra.mxu0 0.0
    %1969 = vmatpush.msra.mxu0 0.0
    %1970 = vmatpush.msra.mxu0 0.0
    %1971 = vmatpush.msra.mxu0 0.0
    %1972 = vmatpush.msra.mxu0 0.0
    %1973 = vmatpush.msra.mxu0 0.0
    %1974 = vmatpush.msra.mxu0 0.0
    %1975 = vmatpush.msra.mxu0 0.0
    %1976 = vmatpush.msra.mxu0 0.0
    %1977 = vmatpush.msra.mxu0 0.0
    %1978 = vmatpush.msra.mxu0 0.0
    %1979 = vmatpush.msra.mxu0 0.0
    %1980 = vmatpush.msra.mxu0 %v1957
    %1981 = vmatpush.msra.mxu0 %v1955
    %1982 = vmatmul.f32.gmra.mxu0 %v1961
    %v1983 = vpop.f32.mrf.mxu0
    %v1984 = vadd.f32 0.0, %v1983
    %1985 = vmatmul.f32.gmra.mxu0 %v1964
    %v1986 = vpop.f32.mrf.mxu0
    %v1987 = vadd.f32 0.0, %v1986
    %1988 = vdwg.mxu0
    %1989 = vrot.lane.b32.xlu0 %v1411, 104
    %v1990 = vpop.permute.xlu0 %1989
    %1991 = vrot.lane.b32.xlu0 %v1412, 104
    %v1992 = vpop.permute.xlu0 %1991
    %1993 = vrot.lane.b32.xlu0 %v1406, 64
    %v1994 = vpop.permute.xlu0 %1993
    %1995 = vrot.lane.b32.xlu0 %v1409, 64
    %v1996 = vpop.permute.xlu0 %1995
    %v1997 = vsel %vm91, %v1990, 0
    %v1999 = vsel %vm91, %v1992, 0
    %v2001 = vsel %vm91, %v1994, 0
    %v2003 = vsel %vm91, %v1996, 0
    %2005 = vmatpush.xpose.msra.mxu0 0.0
    %2006 = vmatpush.xpose.msra.mxu0 0.0
    %2007 = vmatpush.xpose.msra.mxu0 0.0
    %2008 = vmatpush.xpose.msra.mxu0 0.0
    %2009 = vmatpush.xpose.msra.mxu0 0.0
    %2010 = vmatpush.xpose.msra.mxu0 0.0
    %2011 = vmatpush.xpose.msra.mxu0 0.0
    %2012 = vmatpush.xpose.msra.mxu0 0.0
    %2013 = vmatpush.xpose.msra.mxu0 0.0
    %2014 = vmatpush.xpose.msra.mxu0 0.0
    %2015 = vmatpush.xpose.msra.mxu0 0.0
    %2016 = vmatpush.xpose.msra.mxu0 0.0
    %2017 = vmatpush.xpose.msra.mxu0 0.0
    %2018 = vmatpush.xpose.msra.mxu0 0.0
    %2019 = vmatpush.xpose.msra.mxu0 %v2003
    %2020 = vmatpush.xpose.msra.mxu0 %v2001
    %2021 = vmatmul.f32.gmra.mxu0 %v1997
    %v2022 = vpop.f32.mrf.mxu0
    %v2023 = vadd.f32 %v41, %v2022
    %2024 = vmatmul.f32.gmra.mxu0 %v1999
    %v2025 = vpop.f32.mrf.mxu0
    %v2026 = vadd.f32 %v42, %v2025
    %2027 = vdwg.mxu0
    %v2028 = vsel %vm125, %v2023, -inf
    %2029 = vmax.xlane.f32.xlu0 %v2028
    %v2030 = vpop.xlane.xlu0 %2029
    %v2031 = vsel %vm125, %v2026, -inf
    %2032 = vmax.xlane.f32.xlu0 %v2031
    %v2033 = vpop.xlane.xlu0 %2032
    %v2034 = vsub.f32 %v2023, %v2030
    %v2035 = vsub.f32 %v2026, %v2033
    %v2036 = vmul.f32 %v2034, 1.442695
    %v2037 = vpow.pop %v2036
    %v2038 = vmul.f32 %v2035, 1.442695
    %v2039 = vpow.pop %v2038
    %v2040 = vsel %vm125, %v2037, 0.0
    %2041 = vadd.xlane.f32.xlu0 %v2040
    %v2042 = vpop.xlane.xlu0 %2041
    %v2043 = vsel %vm125, %v2039, 0.0
    %2044 = vadd.xlane.f32.xlu0 %v2043
    %v2045 = vpop.xlane.xlu0 %2044
    %v2046 = vrcp.pop %v2042
    %v2047 = vrcp.pop %v2045
    %v2048 = vmul.f32 %v2037, %v2046
    %v2049 = vmul.f32 %v2039, %v2047
    %2050 = vrot.lane.b32.xlu0 %v1406, 24
    %v2051 = vpop.permute.xlu0 %2050
    %2052 = vrot.lane.b32.xlu0 %v1409, 24
    %v2053 = vpop.permute.xlu0 %2052
    %v2057 = vsel %vm125, %v2048, 0
    %v2060 = vsel %vm125, %v2049, 0
    %2062 = vmatpush.msra.mxu0 0.0
    %2063 = vmatpush.msra.mxu0 0.0
    %2064 = vmatpush.msra.mxu0 0.0
    %2065 = vmatpush.msra.mxu0 0.0
    %2066 = vmatpush.msra.mxu0 0.0
    %2067 = vmatpush.msra.mxu0 0.0
    %2068 = vmatpush.msra.mxu0 0.0
    %2069 = vmatpush.msra.mxu0 0.0
    %2070 = vmatpush.msra.mxu0 0.0
    %2071 = vmatpush.msra.mxu0 0.0
    %2072 = vmatpush.msra.mxu0 0.0
    %2073 = vmatpush.msra.mxu0 0.0
    %2074 = vmatpush.msra.mxu0 0.0
    %2075 = vmatpush.msra.mxu0 0.0
    %2076 = vmatpush.msra.mxu0 %v2053
    %2077 = vmatpush.msra.mxu0 %v2051
    %2078 = vmatmul.f32.gmra.mxu0 %v2057
    %v2079 = vpop.f32.mrf.mxu0
    %v2080 = vadd.f32 0.0, %v2079
    %2081 = vmatmul.f32.gmra.mxu0 %v2060
    %v2082 = vpop.f32.mrf.mxu0
    %v2083 = vadd.f32 0.0, %v2082
    %2084 = vdwg.mxu0
    %2085 = vrot.lane.b32.xlu0 %v1411, 100
    %v2086 = vpop.permute.xlu0 %2085
    %2087 = vrot.lane.b32.xlu0 %v1412, 100
    %v2088 = vpop.permute.xlu0 %2087
    %2089 = vrot.lane.b32.xlu0 %v1406, 60
    %v2090 = vpop.permute.xlu0 %2089
    %2091 = vrot.lane.b32.xlu0 %v1409, 60
    %v2092 = vpop.permute.xlu0 %2091
    %v2093 = vsel %vm91, %v2086, 0
    %v2095 = vsel %vm91, %v2088, 0
    %v2097 = vsel %vm91, %v2090, 0
    %v2099 = vsel %vm91, %v2092, 0
    %2101 = vmatpush.xpose.msra.mxu0 0.0
    %2102 = vmatpush.xpose.msra.mxu0 0.0
    %2103 = vmatpush.xpose.msra.mxu0 0.0
    %2104 = vmatpush.xpose.msra.mxu0 0.0
    %2105 = vmatpush.xpose.msra.mxu0 0.0
    %2106 = vmatpush.xpose.msra.mxu0 0.0
    %2107 = vmatpush.xpose.msra.mxu0 0.0
    %2108 = vmatpush.xpose.msra.mxu0 0.0
    %2109 = vmatpush.xpose.msra.mxu0 0.0
    %2110 = vmatpush.xpose.msra.mxu0 0.0
    %2111 = vmatpush.xpose.msra.mxu0 0.0
    %2112 = vmatpush.xpose.msra.mxu0 0.0
    %2113 = vmatpush.xpose.msra.mxu0 0.0
    %2114 = vmatpush.xpose.msra.mxu0 0.0
    %2115 = vmatpush.xpose.msra.mxu0 %v2099
    %2116 = vmatpush.xpose.msra.mxu0 %v2097
    %2117 = vmatmul.f32.gmra.mxu0 %v2093
    %v2118 = vpop.f32.mrf.mxu0
    %v2119 = vadd.f32 %v41, %v2118
    %2120 = vmatmul.f32.gmra.mxu0 %v2095
    %v2121 = vpop.f32.mrf.mxu0
    %v2122 = vadd.f32 %v42, %v2121
    %2123 = vdwg.mxu0
    %v2124 = vsel %vm125, %v2119, -inf
    %2125 = vmax.xlane.f32.xlu0 %v2124
    %v2126 = vpop.xlane.xlu0 %2125
    %v2127 = vsel %vm125, %v2122, -inf
    %2128 = vmax.xlane.f32.xlu0 %v2127
    %v2129 = vpop.xlane.xlu0 %2128
    %v2130 = vsub.f32 %v2119, %v2126
    %v2131 = vsub.f32 %v2122, %v2129
    %v2132 = vmul.f32 %v2130, 1.442695
    %v2133 = vpow.pop %v2132
    %v2134 = vmul.f32 %v2131, 1.442695
    %v2135 = vpow.pop %v2134
    %v2136 = vsel %vm125, %v2133, 0.0
    %2137 = vadd.xlane.f32.xlu0 %v2136
    %v2138 = vpop.xlane.xlu0 %2137
    %v2139 = vsel %vm125, %v2135, 0.0
    %2140 = vadd.xlane.f32.xlu0 %v2139
    %v2141 = vpop.xlane.xlu0 %2140
    %v2142 = vrcp.pop %v2138
    %v2143 = vrcp.pop %v2141
    %v2144 = vmul.f32 %v2133, %v2142
    %v2145 = vmul.f32 %v2135, %v2143
    %2146 = vrot.lane.b32.xlu0 %v1406, 20
    %v2147 = vpop.permute.xlu0 %2146
    %2148 = vrot.lane.b32.xlu0 %v1409, 20
    %v2149 = vpop.permute.xlu0 %2148
    %v2153 = vsel %vm125, %v2144, 0
    %v2156 = vsel %vm125, %v2145, 0
    %2158 = vmatpush.msra.mxu0 0.0
    %2159 = vmatpush.msra.mxu0 0.0
    %2160 = vmatpush.msra.mxu0 0.0
    %2161 = vmatpush.msra.mxu0 0.0
    %2162 = vmatpush.msra.mxu0 0.0
    %2163 = vmatpush.msra.mxu0 0.0
    %2164 = vmatpush.msra.mxu0 0.0
    %2165 = vmatpush.msra.mxu0 0.0
    %2166 = vmatpush.msra.mxu0 0.0
    %2167 = vmatpush.msra.mxu0 0.0
    %2168 = vmatpush.msra.mxu0 0.0
    %2169 = vmatpush.msra.mxu0 0.0
    %2170 = vmatpush.msra.mxu0 0.0
    %2171 = vmatpush.msra.mxu0 0.0
    %2172 = vmatpush.msra.mxu0 %v2149
    %2173 = vmatpush.msra.mxu0 %v2147
    %2174 = vmatmul.f32.gmra.mxu0 %v2153
    %v2175 = vpop.f32.mrf.mxu0
    %v2176 = vadd.f32 0.0, %v2175
    %2177 = vmatmul.f32.gmra.mxu0 %v2156
    %v2178 = vpop.f32.mrf.mxu0
    %v2179 = vadd.f32 0.0, %v2178
    %2180 = vdwg.mxu0
    %2181 = vrot.lane.b32.xlu0 %v1411, 96
    %v2182 = vpop.permute.xlu0 %2181
    %2183 = vrot.lane.b32.xlu0 %v1412, 96
    %v2184 = vpop.permute.xlu0 %2183
    %2185 = vrot.lane.b32.xlu0 %v1406, 56
    %v2186 = vpop.permute.xlu0 %2185
    %2187 = vrot.lane.b32.xlu0 %v1409, 56
    %v2188 = vpop.permute.xlu0 %2187
    %v2189 = vsel %vm91, %v2182, 0
    %v2191 = vsel %vm91, %v2184, 0
    %v2193 = vsel %vm91, %v2186, 0
    %v2195 = vsel %vm91, %v2188, 0
    %2197 = vmatpush.xpose.msra.mxu0 0.0
    %2198 = vmatpush.xpose.msra.mxu0 0.0
    %2199 = vmatpush.xpose.msra.mxu0 0.0
    %2200 = vmatpush.xpose.msra.mxu0 0.0
    %2201 = vmatpush.xpose.msra.mxu0 0.0
    %2202 = vmatpush.xpose.msra.mxu0 0.0
    %2203 = vmatpush.xpose.msra.mxu0 0.0
    %2204 = vmatpush.xpose.msra.mxu0 0.0
    %2205 = vmatpush.xpose.msra.mxu0 0.0
    %2206 = vmatpush.xpose.msra.mxu0 0.0
    %2207 = vmatpush.xpose.msra.mxu0 0.0
    %2208 = vmatpush.xpose.msra.mxu0 0.0
    %2209 = vmatpush.xpose.msra.mxu0 0.0
    %2210 = vmatpush.xpose.msra.mxu0 0.0
    %2211 = vmatpush.xpose.msra.mxu0 %v2195
    %2212 = vmatpush.xpose.msra.mxu0 %v2193
    %2213 = vmatmul.f32.gmra.mxu0 %v2189
    %v2214 = vpop.f32.mrf.mxu0
    %v2215 = vadd.f32 %v41, %v2214
    %2216 = vmatmul.f32.gmra.mxu0 %v2191
    %v2217 = vpop.f32.mrf.mxu0
    %v2218 = vadd.f32 %v42, %v2217
    %2219 = vdwg.mxu0
    %v2220 = vsel %vm125, %v2215, -inf
    %2221 = vmax.xlane.f32.xlu0 %v2220
    %v2222 = vpop.xlane.xlu0 %2221
    %v2223 = vsel %vm125, %v2218, -inf
    %2224 = vmax.xlane.f32.xlu0 %v2223
    %v2225 = vpop.xlane.xlu0 %2224
    %v2226 = vsub.f32 %v2215, %v2222
    %v2227 = vsub.f32 %v2218, %v2225
    %v2228 = vmul.f32 %v2226, 1.442695
    %v2229 = vpow.pop %v2228
    %v2230 = vmul.f32 %v2227, 1.442695
    %v2231 = vpow.pop %v2230
    %v2232 = vsel %vm125, %v2229, 0.0
    %2233 = vadd.xlane.f32.xlu0 %v2232
    %v2234 = vpop.xlane.xlu0 %2233
    %v2235 = vsel %vm125, %v2231, 0.0
    %2236 = vadd.xlane.f32.xlu0 %v2235
    %v2237 = vpop.xlane.xlu0 %2236
    %v2238 = vrcp.pop %v2234
    %v2239 = vrcp.pop %v2237
    %v2240 = vmul.f32 %v2229, %v2238
    %v2241 = vmul.f32 %v2231, %v2239
    %2242 = vrot.lane.b32.xlu0 %v1406, 16
    %v2243 = vpop.permute.xlu0 %2242
    %2244 = vrot.lane.b32.xlu0 %v1409, 16
    %v2245 = vpop.permute.xlu0 %2244
    %v2249 = vsel %vm125, %v2240, 0
    %v2252 = vsel %vm125, %v2241, 0
    %2254 = vmatpush.msra.mxu0 0.0
    %2255 = vmatpush.msra.mxu0 0.0
    %2256 = vmatpush.msra.mxu0 0.0
    %2257 = vmatpush.msra.mxu0 0.0
    %2258 = vmatpush.msra.mxu0 0.0
    %2259 = vmatpush.msra.mxu0 0.0
    %2260 = vmatpush.msra.mxu0 0.0
    %2261 = vmatpush.msra.mxu0 0.0
    %2262 = vmatpush.msra.mxu0 0.0
    %2263 = vmatpush.msra.mxu0 0.0
    %2264 = vmatpush.msra.mxu0 0.0
    %2265 = vmatpush.msra.mxu0 0.0
    %2266 = vmatpush.msra.mxu0 0.0
    %2267 = vmatpush.msra.mxu0 0.0
    %2268 = vmatpush.msra.mxu0 %v2245
    %2269 = vmatpush.msra.mxu0 %v2243
    %2270 = vmatmul.f32.gmra.mxu0 %v2249
    %v2271 = vpop.f32.mrf.mxu0
    %v2272 = vadd.f32 0.0, %v2271
    %2273 = vmatmul.f32.gmra.mxu0 %v2252
    %v2274 = vpop.f32.mrf.mxu0
    %v2275 = vadd.f32 0.0, %v2274
    %2276 = vdwg.mxu0
    %2277 = vrot.lane.b32.xlu0 %v1411, 92
    %v2278 = vpop.permute.xlu0 %2277
    %2279 = vrot.lane.b32.xlu0 %v1412, 92
    %v2280 = vpop.permute.xlu0 %2279
    %2281 = vrot.lane.b32.xlu0 %v1406, 52
    %v2282 = vpop.permute.xlu0 %2281
    %2283 = vrot.lane.b32.xlu0 %v1409, 52
    %v2284 = vpop.permute.xlu0 %2283
    %v2285 = vsel %vm91, %v2278, 0
    %v2287 = vsel %vm91, %v2280, 0
    %v2289 = vsel %vm91, %v2282, 0
    %v2291 = vsel %vm91, %v2284, 0
    %2293 = vmatpush.xpose.msra.mxu0 0.0
    %2294 = vmatpush.xpose.msra.mxu0 0.0
    %2295 = vmatpush.xpose.msra.mxu0 0.0
    %2296 = vmatpush.xpose.msra.mxu0 0.0
    %2297 = vmatpush.xpose.msra.mxu0 0.0
    %2298 = vmatpush.xpose.msra.mxu0 0.0
    %2299 = vmatpush.xpose.msra.mxu0 0.0
    %2300 = vmatpush.xpose.msra.mxu0 0.0
    %2301 = vmatpush.xpose.msra.mxu0 0.0
    %2302 = vmatpush.xpose.msra.mxu0 0.0
    %2303 = vmatpush.xpose.msra.mxu0 0.0
    %2304 = vmatpush.xpose.msra.mxu0 0.0
    %2305 = vmatpush.xpose.msra.mxu0 0.0
    %2306 = vmatpush.xpose.msra.mxu0 0.0
    %2307 = vmatpush.xpose.msra.mxu0 %v2291
    %2308 = vmatpush.xpose.msra.mxu0 %v2289
    %2309 = vmatmul.f32.gmra.mxu0 %v2285
    %v2310 = vpop.f32.mrf.mxu0
    %v2311 = vadd.f32 %v41, %v2310
    %2312 = vmatmul.f32.gmra.mxu0 %v2287
    %v2313 = vpop.f32.mrf.mxu0
    %v2314 = vadd.f32 %v42, %v2313
    %2315 = vdwg.mxu0
    %v2316 = vsel %vm125, %v2311, -inf
    %2317 = vmax.xlane.f32.xlu0 %v2316
    %v2318 = vpop.xlane.xlu0 %2317
    %v2319 = vsel %vm125, %v2314, -inf
    %2320 = vmax.xlane.f32.xlu0 %v2319
    %v2321 = vpop.xlane.xlu0 %2320
    %v2322 = vsub.f32 %v2311, %v2318
    %v2323 = vsub.f32 %v2314, %v2321
    %v2324 = vmul.f32 %v2322, 1.442695
    %v2325 = vpow.pop %v2324
    %v2326 = vmul.f32 %v2323, 1.442695
    %v2327 = vpow.pop %v2326
    %v2328 = vsel %vm125, %v2325, 0.0
    %2329 = vadd.xlane.f32.xlu0 %v2328
    %v2330 = vpop.xlane.xlu0 %2329
    %v2331 = vsel %vm125, %v2327, 0.0
    %2332 = vadd.xlane.f32.xlu0 %v2331
    %v2333 = vpop.xlane.xlu0 %2332
    %v2334 = vrcp.pop %v2330
    %v2335 = vrcp.pop %v2333
    %v2336 = vmul.f32 %v2325, %v2334
    %v2337 = vmul.f32 %v2327, %v2335
    %2338 = vrot.lane.b32.xlu0 %v1406, 12
    %v2339 = vpop.permute.xlu0 %2338
    %2340 = vrot.lane.b32.xlu0 %v1409, 12
    %v2341 = vpop.permute.xlu0 %2340
    %v2345 = vsel %vm125, %v2336, 0
    %v2348 = vsel %vm125, %v2337, 0
    %2350 = vmatpush.msra.mxu0 0.0
    %2351 = vmatpush.msra.mxu0 0.0
    %2352 = vmatpush.msra.mxu0 0.0
    %2353 = vmatpush.msra.mxu0 0.0
    %2354 = vmatpush.msra.mxu0 0.0
    %2355 = vmatpush.msra.mxu0 0.0
    %2356 = vmatpush.msra.mxu0 0.0
    %2357 = vmatpush.msra.mxu0 0.0
    %2358 = vmatpush.msra.mxu0 0.0
    %2359 = vmatpush.msra.mxu0 0.0
    %2360 = vmatpush.msra.mxu0 0.0
    %2361 = vmatpush.msra.mxu0 0.0
    %2362 = vmatpush.msra.mxu0 0.0
    %2363 = vmatpush.msra.mxu0 0.0
    %2364 = vmatpush.msra.mxu0 %v2341
    %2365 = vmatpush.msra.mxu0 %v2339
    %2366 = vmatmul.f32.gmra.mxu0 %v2345
    %v2367 = vpop.f32.mrf.mxu0
    %v2368 = vadd.f32 0.0, %v2367
    %2369 = vmatmul.f32.gmra.mxu0 %v2348
    %v2370 = vpop.f32.mrf.mxu0
    %v2371 = vadd.f32 0.0, %v2370
    %2372 = vdwg.mxu0
    %2375 = vrot.lane.b32.xlu0 %v1600, 4
    %v2376 = vpop.permute.xlu0 %2375
    %2377 = vrot.lane.b32.xlu0 %v1603, 4
    %v2378 = vpop.permute.xlu0 %2377
    %2383 = vrot.lane.b32.xlu0 %v1696, 8
    %v2384 = vpop.permute.xlu0 %2383
    %2385 = vrot.lane.b32.xlu0 %v1699, 8
    %v2386 = vpop.permute.xlu0 %2385
    %2391 = vrot.lane.b32.xlu0 %v1792, 12
    %v2392 = vpop.permute.xlu0 %2391
    %2393 = vrot.lane.b32.xlu0 %v1795, 12
    %v2394 = vpop.permute.xlu0 %2393
    %2399 = vrot.lane.b32.xlu0 %v1888, 16
    %v2400 = vpop.permute.xlu0 %2399
    %2401 = vrot.lane.b32.xlu0 %v1891, 16
    %v2402 = vpop.permute.xlu0 %2401
    %2407 = vrot.lane.b32.xlu0 %v1984, 20
    %v2408 = vpop.permute.xlu0 %2407
    %2409 = vrot.lane.b32.xlu0 %v1987, 20
    %v2410 = vpop.permute.xlu0 %2409
    %2415 = vrot.lane.b32.xlu0 %v2080, 24
    %v2416 = vpop.permute.xlu0 %2415
    %2417 = vrot.lane.b32.xlu0 %v2083, 24
    %v2418 = vpop.permute.xlu0 %2417
    %2423 = vrot.lane.b32.xlu0 %v2176, 28
    %v2424 = vpop.permute.xlu0 %2423
    %2425 = vrot.lane.b32.xlu0 %v2179, 28
    %v2426 = vpop.permute.xlu0 %2425
    %2431 = vrot.lane.b32.xlu0 %v2272, 32
    %v2432 = vpop.permute.xlu0 %2431
    %2433 = vrot.lane.b32.xlu0 %v2275, 32
    %v2434 = vpop.permute.xlu0 %2433
    %2439 = vrot.lane.b32.xlu0 %v2368, 36
    %v2440 = vpop.permute.xlu0 %2439
    %2441 = vrot.lane.b32.xlu0 %v2371, 36
    %v2442 = vpop.permute.xlu0 %2441
    %v2445 = vsel %vm91, %v1504, %v2376
    %v2446 = vsel %vm91, %v1507, %v2378
    %v2447 = vsel %vm1121, %v2445, %v2384
    %v2448 = vsel %vm1121, %v2446, %v2386
    %v2449 = vsel %vm1124, %v2447, %v2392
    %v2450 = vsel %vm1124, %v2448, %v2394
    %v2451 = vsel %vm125, %v2449, %v2400
    %v2452 = vsel %vm125, %v2450, %v2402
    %v2453 = vsel %vm1129, %v2451, %v2408
    %v2454 = vsel %vm1129, %v2452, %v2410
    %v2455 = vsel %vm1132, %v2453, %v2416
    %v2456 = vsel %vm1132, %v2454, %v2418
    %v2457 = vsel %vm1135, %v2455, %v2424
    %v2458 = vsel %vm1135, %v2456, %v2426
    %v2459 = vsel %vm1138, %v2457, %v2432
    %v2460 = vsel %vm1138, %v2458, %v2434
    %v2461 = vsel %vm1141, %v2459, %v2440
    %v2462 = vsel %vm1141, %v2460, %v2442
    %s2463 = scalar_lea.vmem %s3, 40
    %v2464 = vld [vmem:[%s2463] sm:$0xff]
    %v2465 = vld [vmem:[%s2463 + $0x8] sm:$0xff]
    %v2466 = vld [vmem:[%s2463 + $0x10] sm:$0xff]
    %v2467 = vld [vmem:[%s2463 + $0x18] sm:$0xff]
    %v2468 = vld [vmem:[%s2463 + $0x20] sm:$0xff]
    %v2469 = vperm.slane %v1370, 0
    %v2471 = vsel %vm53, %v2461, 0
    %v2474 = vsel %vm53, %v2462, 0
    %2476 = vmatpush.msra.mxu0 0.0
    %2477 = vmatpush.msra.mxu0 0.0
    %2478 = vmatpush.msra.mxu0 0.0
    %2479 = vmatpush.msra.mxu0 0.0
    %2480 = vmatpush.msra.mxu0 0.0
    %2481 = vmatpush.msra.mxu0 0.0
    %2482 = vmatpush.msra.mxu0 0.0
    %2483 = vmatpush.msra.mxu0 0.0
    %2484 = vmatpush.msra.mxu0 0.0
    %2485 = vmatpush.msra.mxu0 0.0
    %2486 = vmatpush.msra.mxu0 0.0
    %2487 = vmatpush.msra.mxu0 %v2468
    %2488 = vmatpush.msra.mxu0 %v2467
    %2489 = vmatpush.msra.mxu0 %v2466
    %2490 = vmatpush.msra.mxu0 %v2465
    %2491 = vmatpush.msra.mxu0 %v2464
    %2492 = vmatmul.f32.gmra.mxu0 %v2471
    %v2493 = vpop.f32.mrf.mxu0
    %v2494 = vadd.f32 %v2469, %v2493
    %2495 = vmatmul.f32.gmra.mxu0 %v2474
    %v2496 = vpop.f32.mrf.mxu0
    %v2497 = vadd.f32 %v2469, %v2496
    %2498 = vdwg.mxu0
    %v2499 = vadd.f32 %v1367, %v2494
    %v2500 = vadd.f32 %v1368, %v2497
    %v2501 = vsel %vm53, %v2499, 0.0
    %2502 = vadd.xlane.f32.xlu0 %v2501
    %v2503 = vpop.xlane.xlu0 %2502
    %v2504 = vsel %vm53, %v2500, 0.0
    %2505 = vadd.xlane.f32.xlu0 %v2504
    %v2506 = vpop.xlane.xlu0 %2505
    %v2507 = vmul.f32 %v2503, %v1193
    %v2508 = vmul.f32 %v2506, %v1193
    %v2509 = vsub.f32 %v2499, %v2507
    %v2510 = vsub.f32 %v2500, %v2508
    %v2511 = vmul.f32 %v2509, %v2509
    %v2512 = vmul.f32 %v2510, %v2510
    %v2513 = vsel %vm53, %v2511, 0.0
    %2514 = vadd.xlane.f32.xlu0 %v2513
    %v2515 = vpop.xlane.xlu0 %2514
    %v2516 = vsel %vm53, %v2512, 0.0
    %2517 = vadd.xlane.f32.xlu0 %v2516
    %v2518 = vpop.xlane.xlu0 %2517
    %v2519 = vmul.f32 %v2515, %v1193
    %v2520 = vmul.f32 %v2518, %v1193
    %v2521 = vadd.f32 %v2519, 1e-05
    %v2522 = vadd.f32 %v2520, 1e-05
    %v2523 = vrsqrt.pop %v2521
    %v2524 = vmul.f32 %v2523, %v2521
    %v2525 = vmul.f32 %v2524, %v2523
    %v2526 = vmul.f32 0.5, %v2525
    %v2527 = vsub.f32 1.5, %v2526
    %v2528 = vmul.f32 %v2523, %v2527
    %vm2529 = vweird.f32 %v2521
    %vm2530 = vweird.f32 %v2523
    %vm2531 = vmor %vm2529, %vm2530
    %v2532 = vsel %vm2531, %v2523, %v2528
    %v2533 = vrsqrt.pop %v2522
    %v2534 = vmul.f32 %v2533, %v2522
    %v2535 = vmul.f32 %v2534, %v2533
    %v2536 = vmul.f32 0.5, %v2535
    %v2537 = vsub.f32 1.5, %v2536
    %v2538 = vmul.f32 %v2533, %v2537
    %vm2539 = vweird.f32 %v2522
    %vm2540 = vweird.f32 %v2533
    %vm2541 = vmor %vm2539, %vm2540
    %v2542 = vsel %vm2541, %v2533, %v2538
    %v2543 = vmul.f32 %v2509, %v2532
    %v2544 = vmul.f32 %v2510, %v2542
    %v2545 = vperm.slane %v1370, 1
    %v2546 = vmul.f32 %v2543, %v2545
    %v2547 = vmul.f32 %v2544, %v2545
    %v2548 = vperm.slane %v1370, 2
    %v2549 = vadd.f32 %v2546, %v2548
    %v2550 = vadd.f32 %v2547, %v2548
    %s2551 = scalar_lea.vmem %s4, 40
    %v2552 = vld [vmem:[%s2551] sm:$0xff]
    %v2553 = vld [vmem:[%s2551 + $0x8] sm:$0xff]
    %v2554 = vld [vmem:[%s2551 + $0x10] sm:$0xff]
    %v2555 = vld [vmem:[%s2551 + $0x18] sm:$0xff]
    %v2556 = vld [vmem:[%s2551 + $0x20] sm:$0xff]
    %s2557 = scalar_lea.vmem %s7, 1
    %v2558 = vld [vmem:[%s2557] sm:$0x1]
    %v2560 = vperm.slane %v2558, 0
    %v2563 = vsel %vm53, %v2549, 0
    %v2566 = vsel %vm53, %v2550, 0
    %2568 = vmatpush.msra.mxu0 0.0
    %2569 = vmatpush.msra.mxu0 0.0
    %2570 = vmatpush.msra.mxu0 0.0
    %2571 = vmatpush.msra.mxu0 0.0
    %2572 = vmatpush.msra.mxu0 0.0
    %2573 = vmatpush.msra.mxu0 0.0
    %2574 = vmatpush.msra.mxu0 0.0
    %2575 = vmatpush.msra.mxu0 0.0
    %2576 = vmatpush.msra.mxu0 0.0
    %2577 = vmatpush.msra.mxu0 0.0
    %2578 = vmatpush.msra.mxu0 0.0
    %2579 = vmatpush.msra.mxu0 %v2556
    %2580 = vmatpush.msra.mxu0 %v2555
    %2581 = vmatpush.msra.mxu0 %v2554
    %2582 = vmatpush.msra.mxu0 %v2553
    %2583 = vmatpush.msra.mxu0 %v2552
    %2584 = vmatmul.f32.gmra.mxu0 %v2563
    %v2585 = vpop.f32.mrf.mxu0
    %v2586 = vadd.f32 %v2560, %v2585
    %2587 = vmatmul.f32.gmra.mxu0 %v2566
    %v2588 = vpop.f32.mrf.mxu0
    %v2589 = vadd.f32 %v2560, %v2588
    %2590 = vdwg.mxu0
    %v2591 = vmax.f32 %v2586, 0.0
    %v2592 = vmax.f32 %v2589, 0.0
    %s2593 = scalar_lea.vmem %s5, 64
    %v2594 = vld [vmem:[%s2593] sm:$0xff]
    %v2595 = vld [vmem:[%s2593 + $0x8] sm:$0xff]
    %v2596 = vld [vmem:[%s2593 + $0x10] sm:$0xff]
    %v2597 = vld [vmem:[%s2593 + $0x18] sm:$0xff]
    %v2598 = vld [vmem:[%s2593 + $0x20] sm:$0xff]
    %v2599 = vld [vmem:[%s2593 + $0x28] sm:$0xff]
    %v2600 = vld [vmem:[%s2593 + $0x30] sm:$0xff]
    %v2601 = vld [vmem:[%s2593 + $0x38] sm:$0xff]
    %v2602 = vperm.slane %v1370, 5
    %v2604 = vsel %vm1287, %v2591, 0
    %v2607 = vsel %vm1287, %v2592, 0
    %2609 = vmatpush.msra.mxu0 0.0
    %2610 = vmatpush.msra.mxu0 0.0
    %2611 = vmatpush.msra.mxu0 0.0
    %2612 = vmatpush.msra.mxu0 0.0
    %2613 = vmatpush.msra.mxu0 0.0
    %2614 = vmatpush.msra.mxu0 0.0
    %2615 = vmatpush.msra.mxu0 0.0
    %2616 = vmatpush.msra.mxu0 0.0
    %2617 = vmatpush.msra.mxu0 %v2601
    %2618 = vmatpush.msra.mxu0 %v2600
    %2619 = vmatpush.msra.mxu0 %v2599
    %2620 = vmatpush.msra.mxu0 %v2598
    %2621 = vmatpush.msra.mxu0 %v2597
    %2622 = vmatpush.msra.mxu0 %v2596
    %2623 = vmatpush.msra.mxu0 %v2595
    %2624 = vmatpush.msra.mxu0 %v2594
    %2625 = vmatmul.f32.gmra.mxu0 %v2604
    %v2626 = vpop.f32.mrf.mxu0
    %v2627 = vadd.f32 %v2602, %v2626
    %2628 = vmatmul.f32.gmra.mxu0 %v2607
    %v2629 = vpop.f32.mrf.mxu0
    %v2630 = vadd.f32 %v2602, %v2629
    %2631 = vdwg.mxu0
    %v2632 = vadd.f32 %v2549, %v2627
    %v2633 = vadd.f32 %v2550, %v2630
    %v2634 = vsel %vm53, %v2632, 0.0
    %2635 = vadd.xlane.f32.xlu0 %v2634
    %v2636 = vpop.xlane.xlu0 %2635
    %v2637 = vsel %vm53, %v2633, 0.0
    %2638 = vadd.xlane.f32.xlu0 %v2637
    %v2639 = vpop.xlane.xlu0 %2638
    %v2640 = vmul.f32 %v2636, %v1193
    %v2641 = vmul.f32 %v2639, %v1193
    %v2642 = vsub.f32 %v2632, %v2640
    %v2643 = vsub.f32 %v2633, %v2641
    %v2644 = vmul.f32 %v2642, %v2642
    %v2645 = vmul.f32 %v2643, %v2643
    %v2646 = vsel %vm53, %v2644, 0.0
    %2647 = vadd.xlane.f32.xlu0 %v2646
    %v2648 = vpop.xlane.xlu0 %2647
    %v2649 = vsel %vm53, %v2645, 0.0
    %2650 = vadd.xlane.f32.xlu0 %v2649
    %v2651 = vpop.xlane.xlu0 %2650
    %v2652 = vmul.f32 %v2648, %v1193
    %v2653 = vmul.f32 %v2651, %v1193
    %v2654 = vadd.f32 %v2652, 1e-05
    %v2655 = vadd.f32 %v2653, 1e-05
    %v2656 = vrsqrt.pop %v2654
    %v2657 = vmul.f32 %v2656, %v2654
    %v2658 = vmul.f32 %v2657, %v2656
    %v2659 = vmul.f32 0.5, %v2658
    %v2660 = vsub.f32 1.5, %v2659
    %v2661 = vmul.f32 %v2656, %v2660
    %vm2662 = vweird.f32 %v2654
    %vm2663 = vweird.f32 %v2656
    %vm2664 = vmor %vm2662, %vm2663
    %v2665 = vsel %vm2664, %v2656, %v2661
    %v2666 = vrsqrt.pop %v2655
    %v2667 = vmul.f32 %v2666, %v2655
    %v2668 = vmul.f32 %v2667, %v2666
    %v2669 = vmul.f32 0.5, %v2668
    %v2670 = vsub.f32 1.5, %v2669
    %v2671 = vmul.f32 %v2666, %v2670
    %vm2672 = vweird.f32 %v2655
    %vm2673 = vweird.f32 %v2666
    %vm2674 = vmor %vm2672, %vm2673
    %v2675 = vsel %vm2674, %v2666, %v2671
    %v2676 = vmul.f32 %v2642, %v2665
    %v2677 = vmul.f32 %v2643, %v2675
    %v2678 = vperm.slane %v1370, 3
    %v2679 = vmul.f32 %v2676, %v2678
    %v2680 = vmul.f32 %v2677, %v2678
    %v2681 = vperm.slane %v1370, 4
    %v2682 = vadd.f32 %v2679, %v2681
    %v2683 = vadd.f32 %v2680, %v2681
    %v2684 = vld [vmem:[%s9] sm:$0x3]
    %v2685 = vld [vmem:[%s9 + $0x2] sm:$0x3]
    %v2686 = vld [vmem:[%s9 + $0x4] sm:$0x3]
    %v2687 = vld [vmem:[%s9 + $0x6] sm:$0x3]
    %v2688 = vld [vmem:[%s9 + $0x8] sm:$0x3]
    %v2689 = vld [vmem:[%s9 + $0xa] sm:$0x3]
    %v2690 = vld [vmem:[%s9 + $0xc] sm:$0x3]
    %v2691 = vld [vmem:[%s9 + $0xe] sm:$0x3]
    %v2700 = vrot.slane %v2685, 7
    %vm2701 = vcmask 1041409
    %v2702 = vsel %vm2701, %v2700, %v2684
    %v2703 = vrot.slane %v2686, 6
    %vm2704 = vcmask 1042434
    %v2705 = vsel %vm2704, %v2703, %v2702
    %v2706 = vrot.slane %v2687, 5
    %vm2707 = vcmask 1043459
    %v2708 = vsel %vm2707, %v2706, %v2705
    %v2709 = vrot.slane %v2688, 4
    %vm2710 = vcmask 1044484
    %v2711 = vsel %vm2710, %v2709, %v2708
    %v2712 = vrot.slane %v2689, 3
    %vm2713 = vcmask 1045509
    %v2714 = vsel %vm2713, %v2712, %v2711
    %v2715 = vrot.slane %v2690, 2
    %vm2716 = vcmask 1046534
    %v2717 = vsel %vm2716, %v2715, %v2714
    %v2718 = vrot.slane %v2691, 1
    %vm2719 = vcmask 1047559
    %v2720 = vsel %vm2719, %v2718, %v2717
    %v2722 = vmul.f32 %v2682, %v2720
    %v2723 = vmul.f32 %v2683, %v2720
    %v2724 = vsel %vm53, %v2722, 0.0
    %2725 = vadd.xlane.f32.xlu0 %v2724
    %v2726 = vpop.xlane.xlu0 %2725
    %v2727 = vsel %vm53, %v2723, 0.0
    %2728 = vadd.xlane.f32.xlu0 %v2727
    %v2729 = vpop.xlane.xlu0 %2728
    %v2732 = vlaneseq
    %v2733 = vand.u32 %v2732, 127
    %v2734 = vperm.slane %v2726, %v2733
    %v2735 = vperm.slane %v2729, %v2733
    %v2736 = vsel %vm2701, %v2735, %v2734
    %vm2738 = vcmask 58368
    %v2739 = vsel %vm2738, %v2736, 0.0
    %2740 = vadd.xlane.f32.xlu0 %v2739
    %v2741 = vpop.xlane.xlu0 %2740
    %v2742 = vrot.slane %v2684, 1
    %v2743 = vsel %vm2701, %v2685, %v2742
    %v2744 = vrot.slane %v2686, 7
    %v2745 = vsel %vm2704, %v2744, %v2743
    %v2746 = vrot.slane %v2687, 6
    %v2747 = vsel %vm2707, %v2746, %v2745
    %v2748 = vrot.slane %v2688, 5
    %v2749 = vsel %vm2710, %v2748, %v2747
    %v2750 = vrot.slane %v2689, 4
    %v2751 = vsel %vm2713, %v2750, %v2749
    %v2752 = vrot.slane %v2690, 3
    %v2753 = vsel %vm2716, %v2752, %v2751
    %v2754 = vrot.slane %v2691, 2
    %v2755 = vsel %vm2719, %v2754, %v2753
    %v2757 = vmul.f32 %v2682, %v2755
    %v2758 = vmul.f32 %v2683, %v2755
    %v2759 = vsel %vm53, %v2757, 0.0
    %2760 = vadd.xlane.f32.xlu0 %v2759
    %v2761 = vpop.xlane.xlu0 %2760
    %v2762 = vsel %vm53, %v2758, 0.0
    %2763 = vadd.xlane.f32.xlu0 %v2762
    %v2764 = vpop.xlane.xlu0 %2763
    %v2767 = vperm.slane %v2761, %v2733
    %v2768 = vperm.slane %v2764, %v2733
    %v2769 = vsel %vm2701, %v2768, %v2767
    %v2771 = vsel %vm2738, %v2769, 0.0
    %2772 = vadd.xlane.f32.xlu0 %v2771
    %v2773 = vpop.xlane.xlu0 %2772
    %vm2774 = vcmask 7168
    %v2775 = vsel %vm2774, %v2741, %v2773
    %v2776 = vld [vmem:[%s10] sm:$0x1]
    %v2778 = vperm.slane %v2776, 0
    %v2780 = vadd.f32 %v2775, %v2778
    %vm2781 = vcmask 9216
    %2782 = vst.msk [vmem:[#allocation2] sm:$0x3] %vm2781, %v2780
    // Predicated region
    $region46: #{transformer_forward.1} parent=1 // pred_check
      _
    $region47: #{transformer_forward.1} parent=1 // pred_check_branch
      %2784 = sbr.rel (0) target = $region49
    $region48: #{transformer_forward.1} parent=1 // pred_region
      %2786 = vsyncadd [#allocation3], 0
      %s2788 = sshll.u32 [#allocation2], 4
      %s2789 = int_to_ptr.vmem [resolvable:$true] %s2788
      %s2790 = sshll.u32 %s11, 4
      %s2791 = int_to_ptr.hbm [resolvable:$true] %s2790
      %2793 = dma.vmem_to_hbm [thread:$0]  %s2789, 32, %s2791, [#allocation3]
    $region49: #{transformer_forward.1} parent=1 // pred_fallthru
      _
    // Predicated region
    $region50: #{transformer_forward.1} parent=1 // pred_check
      _
    $region51: #{transformer_forward.1} parent=1 // pred_check_branch
      %2795 = sbr.rel (0) target = $region53
    $region52: #{transformer_forward.1} parent=1 // pred_region
      %2797 = dma.done [#allocation3], 32
    $region53: #{transformer_forward.1} parent=1 // pred_fallthru
      _
    %2798 = vsyncpa [#allocation3], 1

</llo_original>
